<compile_context>
chip_gen: v7x
topology: tpu7x:2x2x1
jax: 0.10.0
libtpu: 0.0.40
codegen_flags: <defaults>
</compile_context>

<pallas_src>
import functools

import jax
import jax.numpy as jnp
from jax.experimental import pallas as pl
from jax.experimental.pallas import tpu as pltpu


SUBLANE = 8  # f32 sublane height


# ---------------------------------------------------------------------------
# Weight-slab packing (wrapper side).  One (rows, 8H) f32 array; every block
# starts at a multiple of 8 rows so all in-kernel slices are sublane-aligned.
# ---------------------------------------------------------------------------
def _pack_slab(params, input_dim, hidden_dim):
    H, D = hidden_dim, input_dim
    L = 8 * H  # lane width of the slab (two 4H halves)

    blocks, offsets = [], {}
    row = 0

    def add(name, a):
        nonlocal row
        a = jnp.asarray(a, jnp.float32)
        n = a.shape[0]
        n_pad = -(-n // SUBLANE) * SUBLANE
        a = jnp.pad(a, ((0, n_pad - n), (0, L - a.shape[1])))
        offsets[name] = row
        blocks.append(a)
        row += n_pad

    p = params
    # fused [Whh0 | Wih1] for encoder / decoder: one dot on h0 feeds both the
    # next step's layer-0 recurrence and this step's layer-1 input term.
    add("w0c_enc", jnp.concatenate([p["e_whh0"], p["e_wih1"]], axis=1))  # (H, 8H)
    add("w0c_dec", jnp.concatenate([p["d_whh0"], p["d_wih1"]], axis=1))  # (H, 8H)
    add("whh1", jnp.concatenate([p["e_whh1"], p["d_whh1"]], axis=1))     # (H, 8H)
    add("d_wih0", p["d_wih0"])                                           # (H, 4H)
    add("e_wih0", p["e_wih0"])                                           # (D, 4H)
    add("b_enc", jnp.concatenate([p["e_b0"], p["e_b1"]], axis=1))        # (1, 8H)
    add("b_dec", jnp.concatenate([p["d_b0"], p["d_b1"]], axis=1))        # (1, 8H)
    if D == 1:
        add("w_out", p["w_out"].T)                                       # (1, H)
    else:
        add("w_out", p["w_out"])                                         # (H, D)
    add("b_out", p["b_out"])                                             # (1, D)

    slab = jnp.concatenate(blocks, axis=0)
    return slab, offsets


# ---------------------------------------------------------------------------
# Pallas kernel: full forward pass.
# ---------------------------------------------------------------------------
def lstm_ae_kernel(x_ref, slab_ref, out_ref, *,
                   seq_len, batch, hidden, input_dim, offs):
    T, B, H, D = seq_len, batch, hidden, input_dim
    H4 = 4 * H
    f32 = jnp.float32

    def gates(z, c):
        # One full-lane-width sigmoid pass + one tanh pass, then contiguous
        # static slices (PyTorch gate order: i, f, g, o).
        s = jax.nn.sigmoid(z)
        th = jnp.tanh(z)
        i = s[:, 0:H]
        f = s[:, H:2 * H]
        g = th[:, 2 * H:3 * H]
        o = s[:, 3 * H:H4]
        c_new = f * c + i * g
        return o * jnp.tanh(c_new), c_new

    x = x_ref[...].astype(f32)                                # (T*B, D)

    # ---- encoder weights (loaded at point of use, not at kernel top) --------
    r = offs["e_wih0"]
    e_wih0 = slab_ref[r:r + D, 0:H4]                          # (D, 4H)
    r = offs["b_enc"]
    e_b0 = slab_ref[r:r + 1, 0:H4]                            # (1, 4H)
    e_b1 = jnp.broadcast_to(slab_ref[r:r + 1, H4:2 * H4], (B, H4))
    r = offs["w0c_enc"]
    w0c_enc = slab_ref[r:r + H, :]                            # (H, 8H)
    r = offs["whh1"]
    e_whh1 = slab_ref[r:r + H, 0:H4]                          # (H, 4H)

    # Hoisted encoder layer-0 input projection (all timesteps at once).
    if D == 1:
        x_proj = x * e_wih0 + e_b0                            # VPU outer product
    else:
        x_proj = jnp.dot(x, e_wih0, preferred_element_type=f32) + e_b0

    zeros = jnp.zeros((B, H), f32)
    h0, c0, h1, c1 = zeros, zeros, zeros, zeros
    h0w = None                                                # h0 @ [Whh0 | Wih1]

    # ---------------- encoder (fully unrolled, T static) ---------------------
    for t in range(T):
        if t == 0:
            # zero initial state: skip the Whh0/Whh1 matmuls entirely.
            z0 = x_proj[0:B, :]
        else:
            z0 = x_proj[t * B:(t + 1) * B, :] + h0w[:, 0:H4]
        h0, c0 = gates(z0, c0)

        # layer-1 recurrent term depends only on previous h1 -> separate dot.
        if t == 0:
            z1_rec = e_b1
        else:
            z1_rec = jnp.dot(h1, e_whh1, preferred_element_type=f32) + e_b1

        h0w = jnp.dot(h0, w0c_enc, preferred_element_type=f32)   # (B, 8H)
        z1 = h0w[:, H4:2 * H4] + z1_rec
        h1, c1 = gates(z1, c1)

    # ---- decoder weights ----------------------------------------------------
    r = offs["d_wih0"]
    d_wih0 = slab_ref[r:r + H, 0:H4]
    r = offs["b_dec"]
    d_b0 = slab_ref[r:r + 1, 0:H4]
    d_b1 = jnp.broadcast_to(slab_ref[r:r + 1, H4:2 * H4], (B, H4))
    r = offs["w0c_dec"]
    w0c_dec = slab_ref[r:r + H, :]                            # (H, 8H)
    r = offs["whh1"]
    d_whh1 = slab_ref[r:r + H, H4:2 * H4]                     # (H, 4H)

    # decoder input = last hidden of the top encoder layer, repeated over time;
    # its layer-0 input projection is time-invariant -> compute once.
    dec_in_proj = jnp.dot(h1, d_wih0, preferred_element_type=f32) + d_b0  # (B,4H)

    # ---------------- decoder (initial state = encoder (hidden, cell)) -------
    g0, k0, g1, k1 = h0, c0, h1, c1
    g0w = jnp.dot(g0, w0c_dec, preferred_element_type=f32)    # prime recurrence
    hs = []
    for t in range(T):
        z0 = dec_in_proj + g0w[:, 0:H4]
        g0, k0 = gates(z0, k0)
        z1_rec = jnp.dot(g1, d_whh1, preferred_element_type=f32) + d_b1
        g0w = jnp.dot(g0, w0c_dec, preferred_element_type=f32)
        z1 = g0w[:, H4:2 * H4] + z1_rec
        g1, k1 = gates(z1, k1)
        hs.append(g1)                                         # no VMEM scratch

    hdec = jnp.concatenate(hs, axis=0)                        # (T*B, H)

    # ---------------- output projection --------------------------------------
    rb = offs["b_out"]
    rw = offs["w_out"]
    if D == 1:
        # VPU multiply + lane reduction instead of an N=1 MXU dot.
        w_vec = slab_ref[rw:rw + 1, 0:H]                      # (1, H)
        b_out = slab_ref[rb:rb + 1, 0:1]                      # (1, 1)
        y = jnp.sum(hdec * w_vec, axis=-1, keepdims=True) + b_out
    else:
        w_out = slab_ref[rw:rw + H, 0:D]
        b_out = slab_ref[rb:rb + 1, 0:D]
        y = jnp.dot(hdec, w_out, preferred_element_type=f32) + b_out

    out_ref[...] = y.astype(out_ref.dtype)                    # (T*B, D)


# ---------------------------------------------------------------------------
# Wrapper: batch-first (B, T, D) in / out, like the PyTorch module.
# ---------------------------------------------------------------------------
def lstm_autoencoder_forward(x, params):
    B, T, D = x.shape
    H = params["e_whh0"].shape[0]

    # Pad batch to a sublane multiple so every per-step slice is vreg-aligned.
    B_pad = max(SUBLANE, -(-B // SUBLANE) * SUBLANE)
    x_p = x if B_pad == B else jnp.pad(x, ((0, B_pad - B), (0, 0), (0, 0)))

    # Time-major, flattened: row t*B_pad + b == x[b, t].
    x_flat = jnp.transpose(x_p, (1, 0, 2)).reshape(T * B_pad, D)

    slab, offs = _pack_slab(params, D, H)                     # one DMA for weights

    kernel = functools.partial(lstm_ae_kernel, seq_len=T, batch=B_pad,
                               hidden=H, input_dim=D, offs=offs)
    vmem = pl.BlockSpec(memory_space=pltpu.MemorySpace.VMEM)
    out_flat = pl.pallas_call(
        kernel,
        out_shape=jax.ShapeDtypeStruct((T * B_pad, D), x.dtype),
        in_specs=[vmem, vmem],
        out_specs=vmem,
    )(x_flat, slab)

    out = jnp.transpose(out_flat.reshape(T, B_pad, D), (1, 0, 2))  # (B_pad, T, D)
    return out[:B]


PARAM_ORDER = [
    "e_wih0", "e_whh0", "e_b0",
    "e_wih1", "e_whh1", "e_b1",
    "d_wih0", "d_whh0", "d_b0",
    "d_wih1", "d_whh1", "d_b1",
    "w_out", "b_out",
]


# ---------------------------------------------------------------------------
# Deterministic parameter init (shapes follow nn.LSTM / nn.Linear, weights
# stored pre-transposed as (in, 4H) / (H, D_in) so the kernel does x @ W;
# biases are the fused b_ih + b_hh).
# ---------------------------------------------------------------------------
def init_params(key, input_dim, hidden_dim):
    H = hidden_dim
    k = 1.0 / float(jnp.sqrt(jnp.float32(H)))
    shapes = {
        "e_wih0": (input_dim, 4 * H), "e_whh0": (H, 4 * H), "e_b0": (1, 4 * H),
        "e_wih1": (H, 4 * H),         "e_whh1": (H, 4 * H), "e_b1": (1, 4 * H),
        "d_wih0": (H, 4 * H),         "d_whh0": (H, 4 * H), "d_b0": (1, 4 * H),
        "d_wih1": (H, 4 * H),         "d_whh1": (H, 4 * H), "d_b1": (1, 4 * H),
        "w_out": (H, input_dim),      "b_out": (1, input_dim),
    }
    params = {}
    for name in PARAM_ORDER:
        key, sub = jax.random.split(key)
        params[name] = jax.random.uniform(sub, shapes[name], jnp.float32, -k, k)
    return params


# ---------------------------------------------------------------------------
# Pure-JAX reference (same math, plain Python time loop) for verification.
# ---------------------------------------------------------------------------
def reference_forward(x, p):
    B, T, D = x.shape
    H = p["e_whh0"].shape[0]

    def cell(x_t, h, c, wih, whh, b):
        z = x_t @ wih + h @ whh + b
        i = jax.nn.sigmoid(z[:, :H])
        f = jax.nn.sigmoid(z[:, H:2 * H])
        g = jnp.tanh(z[:, 2 * H:3 * H])
        o = jax.nn.sigmoid(z[:, 3 * H:])
        c2 = f * c + i * g
        return o * jnp.tanh(c2), c2

    zeros = jnp.zeros((B, H), jnp.float32)
    h0 = c0 = h1 = c1 = zeros
    for t in range(T):
        h0, c0 = cell(x[:, t, :], h0, c0, p["e_wih0"], p["e_whh0"], p["e_b0"])
        h1, c1 = cell(h0, h1, c1, p["e_wih1"], p["e_whh1"], p["e_b1"])
    dec_in = h1
    g0, k0, g1, k1 = h0, c0, h1, c1
    outs = []
    for t in range(T):
        g0, k0 = cell(dec_in, g0, k0, p["d_wih0"], p["d_whh0"], p["d_b0"])
        g1, k1 = cell(g0, g1, k1, p["d_wih1"], p["d_whh1"], p["d_b1"])
        outs.append(g1 @ p["w_out"] + p["b_out"])
    return jnp.stack(outs, axis=1)


if __name__ == "__main__":
    # Small shapes consistent with the module: input_dim=1, hidden_dim=32,
    # num_layers=2, sequence_length=8, batch=2.
    B, T, D_IN, H = 2, 8, 1, 32

    key = jax.random.PRNGKey(0)
    key, pkey, xkey = jax.random.split(key, 3)
    params = init_params(pkey, D_IN, H)
    x = jax.random.normal(xkey, (B, T, D_IN), jnp.float32)

    out = lstm_autoencoder_forward(x, params)
    out = jax.block_until_ready(out)

    ref = reference_forward(x, params)
    assert out.shape == (B, T, D_IN)
    assert jnp.allclose(out, ref, atol=1e-4, rtol=1e-4), "mismatch vs reference"

    print("KERNEL_OK")
</pallas_src>

<mosaic_0001>
module attributes {stable_mosaic.version = 11 : i64} {
  func.func @lstm_ae_kernel(%arg0: memref<64x1xf32, #tpu.memory_space<vmem>>, %arg1: memref<168x256xf32, #tpu.memory_space<vmem>>, %arg2: memref<64x1xf32, #tpu.memory_space<vmem>>) attributes {dimension_semantics = [], scalar_prefetch = 0 : i64, scratch_operands = 0 : i64, tpu.core_type = #tpu.core_type<tc>} {
    %c0 = arith.constant 0 : index
    %c0_0 = arith.constant 0 : index
    %0 = vector.load %arg0[%c0, %c0_0] : memref<64x1xf32, #tpu.memory_space<vmem>>, vector<64x1xf32>
    %c128 = arith.constant 128 : index
    %c0_1 = arith.constant 0 : index
    %1 = vector.load %arg1[%c128, %c0_1] : memref<168x256xf32, #tpu.memory_space<vmem>>, vector<1x128xf32>
    %c136 = arith.constant 136 : index
    %c0_2 = arith.constant 0 : index
    %2 = vector.load %arg1[%c136, %c0_2] : memref<168x256xf32, #tpu.memory_space<vmem>>, vector<1x128xf32>
    %c136_3 = arith.constant 136 : index
    %c128_4 = arith.constant 128 : index
    %3 = vector.load %arg1[%c136_3, %c128_4] : memref<168x256xf32, #tpu.memory_space<vmem>>, vector<1x128xf32>
    %4 = vector.shape_cast %3 : vector<1x128xf32> to vector<1x128xf32>
    %5 = vector.broadcast %4 : vector<1x128xf32> to vector<8x128xf32>
    %c0_5 = arith.constant 0 : index
    %c0_6 = arith.constant 0 : index
    %6 = vector.load %arg1[%c0_5, %c0_6] : memref<168x256xf32, #tpu.memory_space<vmem>>, vector<32x256xf32>
    %c64 = arith.constant 64 : index
    %c0_7 = arith.constant 0 : index
    %7 = vector.load %arg1[%c64, %c0_7] : memref<168x256xf32, #tpu.memory_space<vmem>>, vector<32x128xf32>
    %8 = vector.broadcast %0 : vector<64x1xf32> to vector<64x128xf32>
    %9 = vector.broadcast %1 : vector<1x128xf32> to vector<64x128xf32>
    %10 = arith.mulf %8, %9 : vector<64x128xf32>
    %11 = vector.broadcast %2 : vector<1x128xf32> to vector<64x128xf32>
    %12 = arith.addf %10, %11 : vector<64x128xf32>
    %cst = arith.constant 0.000000e+00 : f32
    %13 = vector.broadcast %cst : f32 to vector<8x32xf32>
    %14 = vector.extract_strided_slice %12 {offsets = [0, 0], sizes = [8, 128], strides = [1, 1]} : vector<64x128xf32> to vector<8x128xf32>
    %15 = arith.negf %14 : vector<8x128xf32>
    %16 = math.exp %15 : vector<8x128xf32>
    %cst_8 = arith.constant 1.000000e+00 : f32
    %17 = vector.broadcast %cst_8 : f32 to vector<8x128xf32>
    %18 = arith.addf %17, %16 : vector<8x128xf32>
    %19 = arith.divf %17, %18 : vector<8x128xf32>
    %20 = math.tanh %14 : vector<8x128xf32>
    %21 = vector.extract_strided_slice %19 {offsets = [0, 0], sizes = [8, 32], strides = [1, 1]} : vector<8x128xf32> to vector<8x32xf32>
    %22 = vector.extract_strided_slice %19 {offsets = [0, 32], sizes = [8, 32], strides = [1, 1]} : vector<8x128xf32> to vector<8x32xf32>
    %23 = vector.extract_strided_slice %20 {offsets = [0, 64], sizes = [8, 32], strides = [1, 1]} : vector<8x128xf32> to vector<8x32xf32>
    %24 = vector.extract_strided_slice %19 {offsets = [0, 96], sizes = [8, 32], strides = [1, 1]} : vector<8x128xf32> to vector<8x32xf32>
    %25 = arith.mulf %22, %13 : vector<8x32xf32>
    %26 = arith.mulf %21, %23 : vector<8x32xf32>
    %27 = arith.addf %25, %26 : vector<8x32xf32>
    %28 = math.tanh %27 : vector<8x32xf32>
    %29 = arith.mulf %24, %28 : vector<8x32xf32>
    %cst_9 = arith.constant dense<0.000000e+00> : vector<8x256xf32>
    %30 = tpu.matmul %29, %6, %cst_9 {dimension_numbers = #tpu.dot_dimension_numbers<[1], [0], [0], [1], [0, 0, 1, 1], [], []>} : vector<8x32xf32>, vector<32x256xf32>, vector<8x256xf32> -> vector<8x256xf32>
    %31 = vector.extract_strided_slice %30 {offsets = [0, 128], sizes = [8, 128], strides = [1, 1]} : vector<8x256xf32> to vector<8x128xf32>
    %32 = arith.addf %31, %5 : vector<8x128xf32>
    %33 = arith.negf %32 : vector<8x128xf32>
    %34 = math.exp %33 : vector<8x128xf32>
    %cst_10 = arith.constant 1.000000e+00 : f32
    %35 = vector.broadcast %cst_10 : f32 to vector<8x128xf32>
    %36 = arith.addf %35, %34 : vector<8x128xf32>
    %37 = arith.divf %35, %36 : vector<8x128xf32>
    %38 = math.tanh %32 : vector<8x128xf32>
    %39 = vector.extract_strided_slice %37 {offsets = [0, 0], sizes = [8, 32], strides = [1, 1]} : vector<8x128xf32> to vector<8x32xf32>
    %40 = vector.extract_strided_slice %37 {offsets = [0, 32], sizes = [8, 32], strides = [1, 1]} : vector<8x128xf32> to vector<8x32xf32>
    %41 = vector.extract_strided_slice %38 {offsets = [0, 64], sizes = [8, 32], strides = [1, 1]} : vector<8x128xf32> to vector<8x32xf32>
    %42 = vector.extract_strided_slice %37 {offsets = [0, 96], sizes = [8, 32], strides = [1, 1]} : vector<8x128xf32> to vector<8x32xf32>
    %43 = arith.mulf %40, %13 : vector<8x32xf32>
    %44 = arith.mulf %39, %41 : vector<8x32xf32>
    %45 = arith.addf %43, %44 : vector<8x32xf32>
    %46 = math.tanh %45 : vector<8x32xf32>
    %47 = arith.mulf %42, %46 : vector<8x32xf32>
    %48 = vector.extract_strided_slice %12 {offsets = [8, 0], sizes = [8, 128], strides = [1, 1]} : vector<64x128xf32> to vector<8x128xf32>
    %49 = vector.extract_strided_slice %30 {offsets = [0, 0], sizes = [8, 128], strides = [1, 1]} : vector<8x256xf32> to vector<8x128xf32>
    %50 = arith.addf %48, %49 : vector<8x128xf32>
    %51 = arith.negf %50 : vector<8x128xf32>
    %52 = math.exp %51 : vector<8x128xf32>
    %cst_11 = arith.constant 1.000000e+00 : f32
    %53 = vector.broadcast %cst_11 : f32 to vector<8x128xf32>
    %54 = arith.addf %53, %52 : vector<8x128xf32>
    %55 = arith.divf %53, %54 : vector<8x128xf32>
    %56 = math.tanh %50 : vector<8x128xf32>
    %57 = vector.extract_strided_slice %55 {offsets = [0, 0], sizes = [8, 32], strides = [1, 1]} : vector<8x128xf32> to vector<8x32xf32>
    %58 = vector.extract_strided_slice %55 {offsets = [0, 32], sizes = [8, 32], strides = [1, 1]} : vector<8x128xf32> to vector<8x32xf32>
    %59 = vector.extract_strided_slice %56 {offsets = [0, 64], sizes = [8, 32], strides = [1, 1]} : vector<8x128xf32> to vector<8x32xf32>
    %60 = vector.extract_strided_slice %55 {offsets = [0, 96], sizes = [8, 32], strides = [1, 1]} : vector<8x128xf32> to vector<8x32xf32>
    %61 = arith.mulf %58, %27 : vector<8x32xf32>
    %62 = arith.mulf %57, %59 : vector<8x32xf32>
    %63 = arith.addf %61, %62 : vector<8x32xf32>
    %64 = math.tanh %63 : vector<8x32xf32>
    %65 = arith.mulf %60, %64 : vector<8x32xf32>
    %cst_12 = arith.constant dense<0.000000e+00> : vector<8x128xf32>
    %66 = tpu.matmul %47, %7, %cst_12 {dimension_numbers = #tpu.dot_dimension_numbers<[1], [0], [0], [1], [0, 0, 1, 1], [], []>} : vector<8x32xf32>, vector<32x128xf32>, vector<8x128xf32> -> vector<8x128xf32>
    %67 = arith.addf %66, %5 : vector<8x128xf32>
    %cst_13 = arith.constant dense<0.000000e+00> : vector<8x256xf32>
    %68 = tpu.matmul %65, %6, %cst_13 {dimension_numbers = #tpu.dot_dimension_numbers<[1], [0], [0], [1], [0, 0, 1, 1], [], []>} : vector<8x32xf32>, vector<32x256xf32>, vector<8x256xf32> -> vector<8x256xf32>
    %69 = vector.extract_strided_slice %68 {offsets = [0, 128], sizes = [8, 128], strides = [1, 1]} : vector<8x256xf32> to vector<8x128xf32>
    %70 = arith.addf %69, %67 : vector<8x128xf32>
    %71 = arith.negf %70 : vector<8x128xf32>
    %72 = math.exp %71 : vector<8x128xf32>
    %cst_14 = arith.constant 1.000000e+00 : f32
    %73 = vector.broadcast %cst_14 : f32 to vector<8x128xf32>
    %74 = arith.addf %73, %72 : vector<8x128xf32>
    %75 = arith.divf %73, %74 : vector<8x128xf32>
    %76 = math.tanh %70 : vector<8x128xf32>
    %77 = vector.extract_strided_slice %75 {offsets = [0, 0], sizes = [8, 32], strides = [1, 1]} : vector<8x128xf32> to vector<8x32xf32>
    %78 = vector.extract_strided_slice %75 {offsets = [0, 32], sizes = [8, 32], strides = [1, 1]} : vector<8x128xf32> to vector<8x32xf32>
    %79 = vector.extract_strided_slice %76 {offsets = [0, 64], sizes = [8, 32], strides = [1, 1]} : vector<8x128xf32> to vector<8x32xf32>
    %80 = vector.extract_strided_slice %75 {offsets = [0, 96], sizes = [8, 32], strides = [1, 1]} : vector<8x128xf32> to vector<8x32xf32>
    %81 = arith.mulf %78, %45 : vector<8x32xf32>
    %82 = arith.mulf %77, %79 : vector<8x32xf32>
    %83 = arith.addf %81, %82 : vector<8x32xf32>
    %84 = math.tanh %83 : vector<8x32xf32>
    %85 = arith.mulf %80, %84 : vector<8x32xf32>
    %86 = vector.extract_strided_slice %12 {offsets = [16, 0], sizes = [8, 128], strides = [1, 1]} : vector<64x128xf32> to vector<8x128xf32>
    %87 = vector.extract_strided_slice %68 {offsets = [0, 0], sizes = [8, 128], strides = [1, 1]} : vector<8x256xf32> to vector<8x128xf32>
    %88 = arith.addf %86, %87 : vector<8x128xf32>
    %89 = arith.negf %88 : vector<8x128xf32>
    %90 = math.exp %89 : vector<8x128xf32>
    %cst_15 = arith.constant 1.000000e+00 : f32
    %91 = vector.broadcast %cst_15 : f32 to vector<8x128xf32>
    %92 = arith.addf %91, %90 : vector<8x128xf32>
    %93 = arith.divf %91, %92 : vector<8x128xf32>
    %94 = math.tanh %88 : vector<8x128xf32>
    %95 = vector.extract_strided_slice %93 {offsets = [0, 0], sizes = [8, 32], strides = [1, 1]} : vector<8x128xf32> to vector<8x32xf32>
    %96 = vector.extract_strided_slice %93 {offsets = [0, 32], sizes = [8, 32], strides = [1, 1]} : vector<8x128xf32> to vector<8x32xf32>
    %97 = vector.extract_strided_slice %94 {offsets = [0, 64], sizes = [8, 32], strides = [1, 1]} : vector<8x128xf32> to vector<8x32xf32>
    %98 = vector.extract_strided_slice %93 {offsets = [0, 96], sizes = [8, 32], strides = [1, 1]} : vector<8x128xf32> to vector<8x32xf32>
    %99 = arith.mulf %96, %63 : vector<8x32xf32>
    %100 = arith.mulf %95, %97 : vector<8x32xf32>
    %101 = arith.addf %99, %100 : vector<8x32xf32>
    %102 = math.tanh %101 : vector<8x32xf32>
    %103 = arith.mulf %98, %102 : vector<8x32xf32>
    %cst_16 = arith.constant dense<0.000000e+00> : vector<8x128xf32>
    %104 = tpu.matmul %85, %7, %cst_16 {dimension_numbers = #tpu.dot_dimension_numbers<[1], [0], [0], [1], [0, 0, 1, 1], [], []>} : vector<8x32xf32>, vector<32x128xf32>, vector<8x128xf32> -> vector<8x128xf32>
    %105 = arith.addf %104, %5 : vector<8x128xf32>
    %cst_17 = arith.constant dense<0.000000e+00> : vector<8x256xf32>
    %106 = tpu.matmul %103, %6, %cst_17 {dimension_numbers = #tpu.dot_dimension_numbers<[1], [0], [0], [1], [0, 0, 1, 1], [], []>} : vector<8x32xf32>, vector<32x256xf32>, vector<8x256xf32> -> vector<8x256xf32>
    %107 = vector.extract_strided_slice %106 {offsets = [0, 128], sizes = [8, 128], strides = [1, 1]} : vector<8x256xf32> to vector<8x128xf32>
    %108 = arith.addf %107, %105 : vector<8x128xf32>
    %109 = arith.negf %108 : vector<8x128xf32>
    %110 = math.exp %109 : vector<8x128xf32>
    %cst_18 = arith.constant 1.000000e+00 : f32
    %111 = vector.broadcast %cst_18 : f32 to vector<8x128xf32>
    %112 = arith.addf %111, %110 : vector<8x128xf32>
    %113 = arith.divf %111, %112 : vector<8x128xf32>
    %114 = math.tanh %108 : vector<8x128xf32>
    %115 = vector.extract_strided_slice %113 {offsets = [0, 0], sizes = [8, 32], strides = [1, 1]} : vector<8x128xf32> to vector<8x32xf32>
    %116 = vector.extract_strided_slice %113 {offsets = [0, 32], sizes = [8, 32], strides = [1, 1]} : vector<8x128xf32> to vector<8x32xf32>
    %117 = vector.extract_strided_slice %114 {offsets = [0, 64], sizes = [8, 32], strides = [1, 1]} : vector<8x128xf32> to vector<8x32xf32>
    %118 = vector.extract_strided_slice %113 {offsets = [0, 96], sizes = [8, 32], strides = [1, 1]} : vector<8x128xf32> to vector<8x32xf32>
    %119 = arith.mulf %116, %83 : vector<8x32xf32>
    %120 = arith.mulf %115, %117 : vector<8x32xf32>
    %121 = arith.addf %119, %120 : vector<8x32xf32>
    %122 = math.tanh %121 : vector<8x32xf32>
    %123 = arith.mulf %118, %122 : vector<8x32xf32>
    %124 = vector.extract_strided_slice %12 {offsets = [24, 0], sizes = [8, 128], strides = [1, 1]} : vector<64x128xf32> to vector<8x128xf32>
    %125 = vector.extract_strided_slice %106 {offsets = [0, 0], sizes = [8, 128], strides = [1, 1]} : vector<8x256xf32> to vector<8x128xf32>
    %126 = arith.addf %124, %125 : vector<8x128xf32>
    %127 = arith.negf %126 : vector<8x128xf32>
    %128 = math.exp %127 : vector<8x128xf32>
    %cst_19 = arith.constant 1.000000e+00 : f32
    %129 = vector.broadcast %cst_19 : f32 to vector<8x128xf32>
    %130 = arith.addf %129, %128 : vector<8x128xf32>
    %131 = arith.divf %129, %130 : vector<8x128xf32>
    %132 = math.tanh %126 : vector<8x128xf32>
    %133 = vector.extract_strided_slice %131 {offsets = [0, 0], sizes = [8, 32], strides = [1, 1]} : vector<8x128xf32> to vector<8x32xf32>
    %134 = vector.extract_strided_slice %131 {offsets = [0, 32], sizes = [8, 32], strides = [1, 1]} : vector<8x128xf32> to vector<8x32xf32>
    %135 = vector.extract_strided_slice %132 {offsets = [0, 64], sizes = [8, 32], strides = [1, 1]} : vector<8x128xf32> to vector<8x32xf32>
    %136 = vector.extract_strided_slice %131 {offsets = [0, 96], sizes = [8, 32], strides = [1, 1]} : vector<8x128xf32> to vector<8x32xf32>
    %137 = arith.mulf %134, %101 : vector<8x32xf32>
    %138 = arith.mulf %133, %135 : vector<8x32xf32>
    %139 = arith.addf %137, %138 : vector<8x32xf32>
    %140 = math.tanh %139 : vector<8x32xf32>
    %141 = arith.mulf %136, %140 : vector<8x32xf32>
    %cst_20 = arith.constant dense<0.000000e+00> : vector<8x128xf32>
    %142 = tpu.matmul %123, %7, %cst_20 {dimension_numbers = #tpu.dot_dimension_numbers<[1], [0], [0], [1], [0, 0, 1, 1], [], []>} : vector<8x32xf32>, vector<32x128xf32>, vector<8x128xf32> -> vector<8x128xf32>
    %143 = arith.addf %142, %5 : vector<8x128xf32>
    %cst_21 = arith.constant dense<0.000000e+00> : vector<8x256xf32>
    %144 = tpu.matmul %141, %6, %cst_21 {dimension_numbers = #tpu.dot_dimension_numbers<[1], [0], [0], [1], [0, 0, 1, 1], [], []>} : vector<8x32xf32>, vector<32x256xf32>, vector<8x256xf32> -> vector<8x256xf32>
    %145 = vector.extract_strided_slice %144 {offsets = [0, 128], sizes = [8, 128], strides = [1, 1]} : vector<8x256xf32> to vector<8x128xf32>
    %146 = arith.addf %145, %143 : vector<8x128xf32>
    %147 = arith.negf %146 : vector<8x128xf32>
    %148 = math.exp %147 : vector<8x128xf32>
    %cst_22 = arith.constant 1.000000e+00 : f32
    %149 = vector.broadcast %cst_22 : f32 to vector<8x128xf32>
    %150 = arith.addf %149, %148 : vector<8x128xf32>
    %151 = arith.divf %149, %150 : vector<8x128xf32>
    %152 = math.tanh %146 : vector<8x128xf32>
    %153 = vector.extract_strided_slice %151 {offsets = [0, 0], sizes = [8, 32], strides = [1, 1]} : vector<8x128xf32> to vector<8x32xf32>
    %154 = vector.extract_strided_slice %151 {offsets = [0, 32], sizes = [8, 32], strides = [1, 1]} : vector<8x128xf32> to vector<8x32xf32>
    %155 = vector.extract_strided_slice %152 {offsets = [0, 64], sizes = [8, 32], strides = [1, 1]} : vector<8x128xf32> to vector<8x32xf32>
    %156 = vector.extract_strided_slice %151 {offsets = [0, 96], sizes = [8, 32], strides = [1, 1]} : vector<8x128xf32> to vector<8x32xf32>
    %157 = arith.mulf %154, %121 : vector<8x32xf32>
    %158 = arith.mulf %153, %155 : vector<8x32xf32>
    %159 = arith.addf %157, %158 : vector<8x32xf32>
    %160 = math.tanh %159 : vector<8x32xf32>
    %161 = arith.mulf %156, %160 : vector<8x32xf32>
    %162 = vector.extract_strided_slice %12 {offsets = [32, 0], sizes = [8, 128], strides = [1, 1]} : vector<64x128xf32> to vector<8x128xf32>
    %163 = vector.extract_strided_slice %144 {offsets = [0, 0], sizes = [8, 128], strides = [1, 1]} : vector<8x256xf32> to vector<8x128xf32>
    %164 = arith.addf %162, %163 : vector<8x128xf32>
    %165 = arith.negf %164 : vector<8x128xf32>
    %166 = math.exp %165 : vector<8x128xf32>
    %cst_23 = arith.constant 1.000000e+00 : f32
    %167 = vector.broadcast %cst_23 : f32 to vector<8x128xf32>
    %168 = arith.addf %167, %166 : vector<8x128xf32>
    %169 = arith.divf %167, %168 : vector<8x128xf32>
    %170 = math.tanh %164 : vector<8x128xf32>
    %171 = vector.extract_strided_slice %169 {offsets = [0, 0], sizes = [8, 32], strides = [1, 1]} : vector<8x128xf32> to vector<8x32xf32>
    %172 = vector.extract_strided_slice %169 {offsets = [0, 32], sizes = [8, 32], strides = [1, 1]} : vector<8x128xf32> to vector<8x32xf32>
    %173 = vector.extract_strided_slice %170 {offsets = [0, 64], sizes = [8, 32], strides = [1, 1]} : vector<8x128xf32> to vector<8x32xf32>
    %174 = vector.extract_strided_slice %169 {offsets = [0, 96], sizes = [8, 32], strides = [1, 1]} : vector<8x128xf32> to vector<8x32xf32>
    %175 = arith.mulf %172, %139 : vector<8x32xf32>
    %176 = arith.mulf %171, %173 : vector<8x32xf32>
    %177 = arith.addf %175, %176 : vector<8x32xf32>
    %178 = math.tanh %177 : vector<8x32xf32>
    %179 = arith.mulf %174, %178 : vector<8x32xf32>
    %cst_24 = arith.constant dense<0.000000e+00> : vector<8x128xf32>
    %180 = tpu.matmul %161, %7, %cst_24 {dimension_numbers = #tpu.dot_dimension_numbers<[1], [0], [0], [1], [0, 0, 1, 1], [], []>} : vector<8x32xf32>, vector<32x128xf32>, vector<8x128xf32> -> vector<8x128xf32>
    %181 = arith.addf %180, %5 : vector<8x128xf32>
    %cst_25 = arith.constant dense<0.000000e+00> : vector<8x256xf32>
    %182 = tpu.matmul %179, %6, %cst_25 {dimension_numbers = #tpu.dot_dimension_numbers<[1], [0], [0], [1], [0, 0, 1, 1], [], []>} : vector<8x32xf32>, vector<32x256xf32>, vector<8x256xf32> -> vector<8x256xf32>
    %183 = vector.extract_strided_slice %182 {offsets = [0, 128], sizes = [8, 128], strides = [1, 1]} : vector<8x256xf32> to vector<8x128xf32>
    %184 = arith.addf %183, %181 : vector<8x128xf32>
    %185 = arith.negf %184 : vector<8x128xf32>
    %186 = math.exp %185 : vector<8x128xf32>
    %cst_26 = arith.constant 1.000000e+00 : f32
    %187 = vector.broadcast %cst_26 : f32 to vector<8x128xf32>
    %188 = arith.addf %187, %186 : vector<8x128xf32>
    %189 = arith.divf %187, %188 : vector<8x128xf32>
    %190 = math.tanh %184 : vector<8x128xf32>
    %191 = vector.extract_strided_slice %189 {offsets = [0, 0], sizes = [8, 32], strides = [1, 1]} : vector<8x128xf32> to vector<8x32xf32>
    %192 = vector.extract_strided_slice %189 {offsets = [0, 32], sizes = [8, 32], strides = [1, 1]} : vector<8x128xf32> to vector<8x32xf32>
    %193 = vector.extract_strided_slice %190 {offsets = [0, 64], sizes = [8, 32], strides = [1, 1]} : vector<8x128xf32> to vector<8x32xf32>
    %194 = vector.extract_strided_slice %189 {offsets = [0, 96], sizes = [8, 32], strides = [1, 1]} : vector<8x128xf32> to vector<8x32xf32>
    %195 = arith.mulf %192, %159 : vector<8x32xf32>
    %196 = arith.mulf %191, %193 : vector<8x32xf32>
    %197 = arith.addf %195, %196 : vector<8x32xf32>
    %198 = math.tanh %197 : vector<8x32xf32>
    %199 = arith.mulf %194, %198 : vector<8x32xf32>
    %200 = vector.extract_strided_slice %12 {offsets = [40, 0], sizes = [8, 128], strides = [1, 1]} : vector<64x128xf32> to vector<8x128xf32>
    %201 = vector.extract_strided_slice %182 {offsets = [0, 0], sizes = [8, 128], strides = [1, 1]} : vector<8x256xf32> to vector<8x128xf32>
    %202 = arith.addf %200, %201 : vector<8x128xf32>
    %203 = arith.negf %202 : vector<8x128xf32>
    %204 = math.exp %203 : vector<8x128xf32>
    %cst_27 = arith.constant 1.000000e+00 : f32
    %205 = vector.broadcast %cst_27 : f32 to vector<8x128xf32>
    %206 = arith.addf %205, %204 : vector<8x128xf32>
    %207 = arith.divf %205, %206 : vector<8x128xf32>
    %208 = math.tanh %202 : vector<8x128xf32>
    %209 = vector.extract_strided_slice %207 {offsets = [0, 0], sizes = [8, 32], strides = [1, 1]} : vector<8x128xf32> to vector<8x32xf32>
    %210 = vector.extract_strided_slice %207 {offsets = [0, 32], sizes = [8, 32], strides = [1, 1]} : vector<8x128xf32> to vector<8x32xf32>
    %211 = vector.extract_strided_slice %208 {offsets = [0, 64], sizes = [8, 32], strides = [1, 1]} : vector<8x128xf32> to vector<8x32xf32>
    %212 = vector.extract_strided_slice %207 {offsets = [0, 96], sizes = [8, 32], strides = [1, 1]} : vector<8x128xf32> to vector<8x32xf32>
    %213 = arith.mulf %210, %177 : vector<8x32xf32>
    %214 = arith.mulf %209, %211 : vector<8x32xf32>
    %215 = arith.addf %213, %214 : vector<8x32xf32>
    %216 = math.tanh %215 : vector<8x32xf32>
    %217 = arith.mulf %212, %216 : vector<8x32xf32>
    %cst_28 = arith.constant dense<0.000000e+00> : vector<8x128xf32>
    %218 = tpu.matmul %199, %7, %cst_28 {dimension_numbers = #tpu.dot_dimension_numbers<[1], [0], [0], [1], [0, 0, 1, 1], [], []>} : vector<8x32xf32>, vector<32x128xf32>, vector<8x128xf32> -> vector<8x128xf32>
    %219 = arith.addf %218, %5 : vector<8x128xf32>
    %cst_29 = arith.constant dense<0.000000e+00> : vector<8x256xf32>
    %220 = tpu.matmul %217, %6, %cst_29 {dimension_numbers = #tpu.dot_dimension_numbers<[1], [0], [0], [1], [0, 0, 1, 1], [], []>} : vector<8x32xf32>, vector<32x256xf32>, vector<8x256xf32> -> vector<8x256xf32>
    %221 = vector.extract_strided_slice %220 {offsets = [0, 128], sizes = [8, 128], strides = [1, 1]} : vector<8x256xf32> to vector<8x128xf32>
    %222 = arith.addf %221, %219 : vector<8x128xf32>
    %223 = arith.negf %222 : vector<8x128xf32>
    %224 = math.exp %223 : vector<8x128xf32>
    %cst_30 = arith.constant 1.000000e+00 : f32
    %225 = vector.broadcast %cst_30 : f32 to vector<8x128xf32>
    %226 = arith.addf %225, %224 : vector<8x128xf32>
    %227 = arith.divf %225, %226 : vector<8x128xf32>
    %228 = math.tanh %222 : vector<8x128xf32>
    %229 = vector.extract_strided_slice %227 {offsets = [0, 0], sizes = [8, 32], strides = [1, 1]} : vector<8x128xf32> to vector<8x32xf32>
    %230 = vector.extract_strided_slice %227 {offsets = [0, 32], sizes = [8, 32], strides = [1, 1]} : vector<8x128xf32> to vector<8x32xf32>
    %231 = vector.extract_strided_slice %228 {offsets = [0, 64], sizes = [8, 32], strides = [1, 1]} : vector<8x128xf32> to vector<8x32xf32>
    %232 = vector.extract_strided_slice %227 {offsets = [0, 96], sizes = [8, 32], strides = [1, 1]} : vector<8x128xf32> to vector<8x32xf32>
    %233 = arith.mulf %230, %197 : vector<8x32xf32>
    %234 = arith.mulf %229, %231 : vector<8x32xf32>
    %235 = arith.addf %233, %234 : vector<8x32xf32>
    %236 = math.tanh %235 : vector<8x32xf32>
    %237 = arith.mulf %232, %236 : vector<8x32xf32>
    %238 = vector.extract_strided_slice %12 {offsets = [48, 0], sizes = [8, 128], strides = [1, 1]} : vector<64x128xf32> to vector<8x128xf32>
    %239 = vector.extract_strided_slice %220 {offsets = [0, 0], sizes = [8, 128], strides = [1, 1]} : vector<8x256xf32> to vector<8x128xf32>
    %240 = arith.addf %238, %239 : vector<8x128xf32>
    %241 = arith.negf %240 : vector<8x128xf32>
    %242 = math.exp %241 : vector<8x128xf32>
    %cst_31 = arith.constant 1.000000e+00 : f32
    %243 = vector.broadcast %cst_31 : f32 to vector<8x128xf32>
    %244 = arith.addf %243, %242 : vector<8x128xf32>
    %245 = arith.divf %243, %244 : vector<8x128xf32>
    %246 = math.tanh %240 : vector<8x128xf32>
    %247 = vector.extract_strided_slice %245 {offsets = [0, 0], sizes = [8, 32], strides = [1, 1]} : vector<8x128xf32> to vector<8x32xf32>
    %248 = vector.extract_strided_slice %245 {offsets = [0, 32], sizes = [8, 32], strides = [1, 1]} : vector<8x128xf32> to vector<8x32xf32>
    %249 = vector.extract_strided_slice %246 {offsets = [0, 64], sizes = [8, 32], strides = [1, 1]} : vector<8x128xf32> to vector<8x32xf32>
    %250 = vector.extract_strided_slice %245 {offsets = [0, 96], sizes = [8, 32], strides = [1, 1]} : vector<8x128xf32> to vector<8x32xf32>
    %251 = arith.mulf %248, %215 : vector<8x32xf32>
    %252 = arith.mulf %247, %249 : vector<8x32xf32>
    %253 = arith.addf %251, %252 : vector<8x32xf32>
    %254 = math.tanh %253 : vector<8x32xf32>
    %255 = arith.mulf %250, %254 : vector<8x32xf32>
    %cst_32 = arith.constant dense<0.000000e+00> : vector<8x128xf32>
    %256 = tpu.matmul %237, %7, %cst_32 {dimension_numbers = #tpu.dot_dimension_numbers<[1], [0], [0], [1], [0, 0, 1, 1], [], []>} : vector<8x32xf32>, vector<32x128xf32>, vector<8x128xf32> -> vector<8x128xf32>
    %257 = arith.addf %256, %5 : vector<8x128xf32>
    %cst_33 = arith.constant dense<0.000000e+00> : vector<8x256xf32>
    %258 = tpu.matmul %255, %6, %cst_33 {dimension_numbers = #tpu.dot_dimension_numbers<[1], [0], [0], [1], [0, 0, 1, 1], [], []>} : vector<8x32xf32>, vector<32x256xf32>, vector<8x256xf32> -> vector<8x256xf32>
    %259 = vector.extract_strided_slice %258 {offsets = [0, 128], sizes = [8, 128], strides = [1, 1]} : vector<8x256xf32> to vector<8x128xf32>
    %260 = arith.addf %259, %257 : vector<8x128xf32>
    %261 = arith.negf %260 : vector<8x128xf32>
    %262 = math.exp %261 : vector<8x128xf32>
    %cst_34 = arith.constant 1.000000e+00 : f32
    %263 = vector.broadcast %cst_34 : f32 to vector<8x128xf32>
    %264 = arith.addf %263, %262 : vector<8x128xf32>
    %265 = arith.divf %263, %264 : vector<8x128xf32>
    %266 = math.tanh %260 : vector<8x128xf32>
    %267 = vector.extract_strided_slice %265 {offsets = [0, 0], sizes = [8, 32], strides = [1, 1]} : vector<8x128xf32> to vector<8x32xf32>
    %268 = vector.extract_strided_slice %265 {offsets = [0, 32], sizes = [8, 32], strides = [1, 1]} : vector<8x128xf32> to vector<8x32xf32>
    %269 = vector.extract_strided_slice %266 {offsets = [0, 64], sizes = [8, 32], strides = [1, 1]} : vector<8x128xf32> to vector<8x32xf32>
    %270 = vector.extract_strided_slice %265 {offsets = [0, 96], sizes = [8, 32], strides = [1, 1]} : vector<8x128xf32> to vector<8x32xf32>
    %271 = arith.mulf %268, %235 : vector<8x32xf32>
    %272 = arith.mulf %267, %269 : vector<8x32xf32>
    %273 = arith.addf %271, %272 : vector<8x32xf32>
    %274 = math.tanh %273 : vector<8x32xf32>
    %275 = arith.mulf %270, %274 : vector<8x32xf32>
    %276 = vector.extract_strided_slice %12 {offsets = [56, 0], sizes = [8, 128], strides = [1, 1]} : vector<64x128xf32> to vector<8x128xf32>
    %277 = vector.extract_strided_slice %258 {offsets = [0, 0], sizes = [8, 128], strides = [1, 1]} : vector<8x256xf32> to vector<8x128xf32>
    %278 = arith.addf %276, %277 : vector<8x128xf32>
    %279 = arith.negf %278 : vector<8x128xf32>
    %280 = math.exp %279 : vector<8x128xf32>
    %cst_35 = arith.constant 1.000000e+00 : f32
    %281 = vector.broadcast %cst_35 : f32 to vector<8x128xf32>
    %282 = arith.addf %281, %280 : vector<8x128xf32>
    %283 = arith.divf %281, %282 : vector<8x128xf32>
    %284 = math.tanh %278 : vector<8x128xf32>
    %285 = vector.extract_strided_slice %283 {offsets = [0, 0], sizes = [8, 32], strides = [1, 1]} : vector<8x128xf32> to vector<8x32xf32>
    %286 = vector.extract_strided_slice %283 {offsets = [0, 32], sizes = [8, 32], strides = [1, 1]} : vector<8x128xf32> to vector<8x32xf32>
    %287 = vector.extract_strided_slice %284 {offsets = [0, 64], sizes = [8, 32], strides = [1, 1]} : vector<8x128xf32> to vector<8x32xf32>
    %288 = vector.extract_strided_slice %283 {offsets = [0, 96], sizes = [8, 32], strides = [1, 1]} : vector<8x128xf32> to vector<8x32xf32>
    %289 = arith.mulf %286, %253 : vector<8x32xf32>
    %290 = arith.mulf %285, %287 : vector<8x32xf32>
    %291 = arith.addf %289, %290 : vector<8x32xf32>
    %292 = math.tanh %291 : vector<8x32xf32>
    %293 = arith.mulf %288, %292 : vector<8x32xf32>
    %cst_36 = arith.constant dense<0.000000e+00> : vector<8x128xf32>
    %294 = tpu.matmul %275, %7, %cst_36 {dimension_numbers = #tpu.dot_dimension_numbers<[1], [0], [0], [1], [0, 0, 1, 1], [], []>} : vector<8x32xf32>, vector<32x128xf32>, vector<8x128xf32> -> vector<8x128xf32>
    %295 = arith.addf %294, %5 : vector<8x128xf32>
    %cst_37 = arith.constant dense<0.000000e+00> : vector<8x256xf32>
    %296 = tpu.matmul %293, %6, %cst_37 {dimension_numbers = #tpu.dot_dimension_numbers<[1], [0], [0], [1], [0, 0, 1, 1], [], []>} : vector<8x32xf32>, vector<32x256xf32>, vector<8x256xf32> -> vector<8x256xf32>
    %297 = vector.extract_strided_slice %296 {offsets = [0, 128], sizes = [8, 128], strides = [1, 1]} : vector<8x256xf32> to vector<8x128xf32>
    %298 = arith.addf %297, %295 : vector<8x128xf32>
    %299 = arith.negf %298 : vector<8x128xf32>
    %300 = math.exp %299 : vector<8x128xf32>
    %cst_38 = arith.constant 1.000000e+00 : f32
    %301 = vector.broadcast %cst_38 : f32 to vector<8x128xf32>
    %302 = arith.addf %301, %300 : vector<8x128xf32>
    %303 = arith.divf %301, %302 : vector<8x128xf32>
    %304 = math.tanh %298 : vector<8x128xf32>
    %305 = vector.extract_strided_slice %303 {offsets = [0, 0], sizes = [8, 32], strides = [1, 1]} : vector<8x128xf32> to vector<8x32xf32>
    %306 = vector.extract_strided_slice %303 {offsets = [0, 32], sizes = [8, 32], strides = [1, 1]} : vector<8x128xf32> to vector<8x32xf32>
    %307 = vector.extract_strided_slice %304 {offsets = [0, 64], sizes = [8, 32], strides = [1, 1]} : vector<8x128xf32> to vector<8x32xf32>
    %308 = vector.extract_strided_slice %303 {offsets = [0, 96], sizes = [8, 32], strides = [1, 1]} : vector<8x128xf32> to vector<8x32xf32>
    %309 = arith.mulf %306, %273 : vector<8x32xf32>
    %310 = arith.mulf %305, %307 : vector<8x32xf32>
    %311 = arith.addf %309, %310 : vector<8x32xf32>
    %312 = math.tanh %311 : vector<8x32xf32>
    %313 = arith.mulf %308, %312 : vector<8x32xf32>
    %c96 = arith.constant 96 : index
    %c0_39 = arith.constant 0 : index
    %314 = vector.load %arg1[%c96, %c0_39] : memref<168x256xf32, #tpu.memory_space<vmem>>, vector<32x128xf32>
    %c144 = arith.constant 144 : index
    %c0_40 = arith.constant 0 : index
    %315 = vector.load %arg1[%c144, %c0_40] : memref<168x256xf32, #tpu.memory_space<vmem>>, vector<1x128xf32>
    %c144_41 = arith.constant 144 : index
    %c128_42 = arith.constant 128 : index
    %316 = vector.load %arg1[%c144_41, %c128_42] : memref<168x256xf32, #tpu.memory_space<vmem>>, vector<1x128xf32>
    %317 = vector.shape_cast %316 : vector<1x128xf32> to vector<1x128xf32>
    %318 = vector.broadcast %317 : vector<1x128xf32> to vector<8x128xf32>
    %c32 = arith.constant 32 : index
    %c0_43 = arith.constant 0 : index
    %319 = vector.load %arg1[%c32, %c0_43] : memref<168x256xf32, #tpu.memory_space<vmem>>, vector<32x256xf32>
    %c64_44 = arith.constant 64 : index
    %c128_45 = arith.constant 128 : index
    %320 = vector.load %arg1[%c64_44, %c128_45] : memref<168x256xf32, #tpu.memory_space<vmem>>, vector<32x128xf32>
    %cst_46 = arith.constant dense<0.000000e+00> : vector<8x128xf32>
    %321 = tpu.matmul %313, %314, %cst_46 {dimension_numbers = #tpu.dot_dimension_numbers<[1], [0], [0], [1], [0, 0, 1, 1], [], []>} : vector<8x32xf32>, vector<32x128xf32>, vector<8x128xf32> -> vector<8x128xf32>
    %322 = vector.broadcast %315 : vector<1x128xf32> to vector<8x128xf32>
    %323 = arith.addf %321, %322 : vector<8x128xf32>
    %cst_47 = arith.constant dense<0.000000e+00> : vector<8x256xf32>
    %324 = tpu.matmul %293, %319, %cst_47 {dimension_numbers = #tpu.dot_dimension_numbers<[1], [0], [0], [1], [0, 0, 1, 1], [], []>} : vector<8x32xf32>, vector<32x256xf32>, vector<8x256xf32> -> vector<8x256xf32>
    %325 = vector.extract_strided_slice %324 {offsets = [0, 0], sizes = [8, 128], strides = [1, 1]} : vector<8x256xf32> to vector<8x128xf32>
    %326 = arith.addf %323, %325 : vector<8x128xf32>
    %327 = arith.negf %326 : vector<8x128xf32>
    %328 = math.exp %327 : vector<8x128xf32>
    %cst_48 = arith.constant 1.000000e+00 : f32
    %329 = vector.broadcast %cst_48 : f32 to vector<8x128xf32>
    %330 = arith.addf %329, %328 : vector<8x128xf32>
    %331 = arith.divf %329, %330 : vector<8x128xf32>
    %332 = math.tanh %326 : vector<8x128xf32>
    %333 = vector.extract_strided_slice %331 {offsets = [0, 0], sizes = [8, 32], strides = [1, 1]} : vector<8x128xf32> to vector<8x32xf32>
    %334 = vector.extract_strided_slice %331 {offsets = [0, 32], sizes = [8, 32], strides = [1, 1]} : vector<8x128xf32> to vector<8x32xf32>
    %335 = vector.extract_strided_slice %332 {offsets = [0, 64], sizes = [8, 32], strides = [1, 1]} : vector<8x128xf32> to vector<8x32xf32>
    %336 = vector.extract_strided_slice %331 {offsets = [0, 96], sizes = [8, 32], strides = [1, 1]} : vector<8x128xf32> to vector<8x32xf32>
    %337 = arith.mulf %334, %291 : vector<8x32xf32>
    %338 = arith.mulf %333, %335 : vector<8x32xf32>
    %339 = arith.addf %337, %338 : vector<8x32xf32>
    %340 = math.tanh %339 : vector<8x32xf32>
    %341 = arith.mulf %336, %340 : vector<8x32xf32>
    %cst_49 = arith.constant dense<0.000000e+00> : vector<8x128xf32>
    %342 = tpu.matmul %313, %320, %cst_49 {dimension_numbers = #tpu.dot_dimension_numbers<[1], [0], [0], [1], [0, 0, 1, 1], [], []>} : vector<8x32xf32>, vector<32x128xf32>, vector<8x128xf32> -> vector<8x128xf32>
    %343 = arith.addf %342, %318 : vector<8x128xf32>
    %cst_50 = arith.constant dense<0.000000e+00> : vector<8x256xf32>
    %344 = tpu.matmul %341, %319, %cst_50 {dimension_numbers = #tpu.dot_dimension_numbers<[1], [0], [0], [1], [0, 0, 1, 1], [], []>} : vector<8x32xf32>, vector<32x256xf32>, vector<8x256xf32> -> vector<8x256xf32>
    %345 = vector.extract_strided_slice %344 {offsets = [0, 128], sizes = [8, 128], strides = [1, 1]} : vector<8x256xf32> to vector<8x128xf32>
    %346 = arith.addf %345, %343 : vector<8x128xf32>
    %347 = arith.negf %346 : vector<8x128xf32>
    %348 = math.exp %347 : vector<8x128xf32>
    %cst_51 = arith.constant 1.000000e+00 : f32
    %349 = vector.broadcast %cst_51 : f32 to vector<8x128xf32>
    %350 = arith.addf %349, %348 : vector<8x128xf32>
    %351 = arith.divf %349, %350 : vector<8x128xf32>
    %352 = math.tanh %346 : vector<8x128xf32>
    %353 = vector.extract_strided_slice %351 {offsets = [0, 0], sizes = [8, 32], strides = [1, 1]} : vector<8x128xf32> to vector<8x32xf32>
    %354 = vector.extract_strided_slice %351 {offsets = [0, 32], sizes = [8, 32], strides = [1, 1]} : vector<8x128xf32> to vector<8x32xf32>
    %355 = vector.extract_strided_slice %352 {offsets = [0, 64], sizes = [8, 32], strides = [1, 1]} : vector<8x128xf32> to vector<8x32xf32>
    %356 = vector.extract_strided_slice %351 {offsets = [0, 96], sizes = [8, 32], strides = [1, 1]} : vector<8x128xf32> to vector<8x32xf32>
    %357 = arith.mulf %354, %311 : vector<8x32xf32>
    %358 = arith.mulf %353, %355 : vector<8x32xf32>
    %359 = arith.addf %357, %358 : vector<8x32xf32>
    %360 = math.tanh %359 : vector<8x32xf32>
    %361 = arith.mulf %356, %360 : vector<8x32xf32>
    %362 = vector.extract_strided_slice %344 {offsets = [0, 0], sizes = [8, 128], strides = [1, 1]} : vector<8x256xf32> to vector<8x128xf32>
    %363 = arith.addf %323, %362 : vector<8x128xf32>
    %364 = arith.negf %363 : vector<8x128xf32>
    %365 = math.exp %364 : vector<8x128xf32>
    %cst_52 = arith.constant 1.000000e+00 : f32
    %366 = vector.broadcast %cst_52 : f32 to vector<8x128xf32>
    %367 = arith.addf %366, %365 : vector<8x128xf32>
    %368 = arith.divf %366, %367 : vector<8x128xf32>
    %369 = math.tanh %363 : vector<8x128xf32>
    %370 = vector.extract_strided_slice %368 {offsets = [0, 0], sizes = [8, 32], strides = [1, 1]} : vector<8x128xf32> to vector<8x32xf32>
    %371 = vector.extract_strided_slice %368 {offsets = [0, 32], sizes = [8, 32], strides = [1, 1]} : vector<8x128xf32> to vector<8x32xf32>
    %372 = vector.extract_strided_slice %369 {offsets = [0, 64], sizes = [8, 32], strides = [1, 1]} : vector<8x128xf32> to vector<8x32xf32>
    %373 = vector.extract_strided_slice %368 {offsets = [0, 96], sizes = [8, 32], strides = [1, 1]} : vector<8x128xf32> to vector<8x32xf32>
    %374 = arith.mulf %371, %339 : vector<8x32xf32>
    %375 = arith.mulf %370, %372 : vector<8x32xf32>
    %376 = arith.addf %374, %375 : vector<8x32xf32>
    %377 = math.tanh %376 : vector<8x32xf32>
    %378 = arith.mulf %373, %377 : vector<8x32xf32>
    %cst_53 = arith.constant dense<0.000000e+00> : vector<8x128xf32>
    %379 = tpu.matmul %361, %320, %cst_53 {dimension_numbers = #tpu.dot_dimension_numbers<[1], [0], [0], [1], [0, 0, 1, 1], [], []>} : vector<8x32xf32>, vector<32x128xf32>, vector<8x128xf32> -> vector<8x128xf32>
    %380 = arith.addf %379, %318 : vector<8x128xf32>
    %cst_54 = arith.constant dense<0.000000e+00> : vector<8x256xf32>
    %381 = tpu.matmul %378, %319, %cst_54 {dimension_numbers = #tpu.dot_dimension_numbers<[1], [0], [0], [1], [0, 0, 1, 1], [], []>} : vector<8x32xf32>, vector<32x256xf32>, vector<8x256xf32> -> vector<8x256xf32>
    %382 = vector.extract_strided_slice %381 {offsets = [0, 128], sizes = [8, 128], strides = [1, 1]} : vector<8x256xf32> to vector<8x128xf32>
    %383 = arith.addf %382, %380 : vector<8x128xf32>
    %384 = arith.negf %383 : vector<8x128xf32>
    %385 = math.exp %384 : vector<8x128xf32>
    %cst_55 = arith.constant 1.000000e+00 : f32
    %386 = vector.broadcast %cst_55 : f32 to vector<8x128xf32>
    %387 = arith.addf %386, %385 : vector<8x128xf32>
    %388 = arith.divf %386, %387 : vector<8x128xf32>
    %389 = math.tanh %383 : vector<8x128xf32>
    %390 = vector.extract_strided_slice %388 {offsets = [0, 0], sizes = [8, 32], strides = [1, 1]} : vector<8x128xf32> to vector<8x32xf32>
    %391 = vector.extract_strided_slice %388 {offsets = [0, 32], sizes = [8, 32], strides = [1, 1]} : vector<8x128xf32> to vector<8x32xf32>
    %392 = vector.extract_strided_slice %389 {offsets = [0, 64], sizes = [8, 32], strides = [1, 1]} : vector<8x128xf32> to vector<8x32xf32>
    %393 = vector.extract_strided_slice %388 {offsets = [0, 96], sizes = [8, 32], strides = [1, 1]} : vector<8x128xf32> to vector<8x32xf32>
    %394 = arith.mulf %391, %359 : vector<8x32xf32>
    %395 = arith.mulf %390, %392 : vector<8x32xf32>
    %396 = arith.addf %394, %395 : vector<8x32xf32>
    %397 = math.tanh %396 : vector<8x32xf32>
    %398 = arith.mulf %393, %397 : vector<8x32xf32>
    %399 = vector.extract_strided_slice %381 {offsets = [0, 0], sizes = [8, 128], strides = [1, 1]} : vector<8x256xf32> to vector<8x128xf32>
    %400 = arith.addf %323, %399 : vector<8x128xf32>
    %401 = arith.negf %400 : vector<8x128xf32>
    %402 = math.exp %401 : vector<8x128xf32>
    %cst_56 = arith.constant 1.000000e+00 : f32
    %403 = vector.broadcast %cst_56 : f32 to vector<8x128xf32>
    %404 = arith.addf %403, %402 : vector<8x128xf32>
    %405 = arith.divf %403, %404 : vector<8x128xf32>
    %406 = math.tanh %400 : vector<8x128xf32>
    %407 = vector.extract_strided_slice %405 {offsets = [0, 0], sizes = [8, 32], strides = [1, 1]} : vector<8x128xf32> to vector<8x32xf32>
    %408 = vector.extract_strided_slice %405 {offsets = [0, 32], sizes = [8, 32], strides = [1, 1]} : vector<8x128xf32> to vector<8x32xf32>
    %409 = vector.extract_strided_slice %406 {offsets = [0, 64], sizes = [8, 32], strides = [1, 1]} : vector<8x128xf32> to vector<8x32xf32>
    %410 = vector.extract_strided_slice %405 {offsets = [0, 96], sizes = [8, 32], strides = [1, 1]} : vector<8x128xf32> to vector<8x32xf32>
    %411 = arith.mulf %408, %376 : vector<8x32xf32>
    %412 = arith.mulf %407, %409 : vector<8x32xf32>
    %413 = arith.addf %411, %412 : vector<8x32xf32>
    %414 = math.tanh %413 : vector<8x32xf32>
    %415 = arith.mulf %410, %414 : vector<8x32xf32>
    %cst_57 = arith.constant dense<0.000000e+00> : vector<8x128xf32>
    %416 = tpu.matmul %398, %320, %cst_57 {dimension_numbers = #tpu.dot_dimension_numbers<[1], [0], [0], [1], [0, 0, 1, 1], [], []>} : vector<8x32xf32>, vector<32x128xf32>, vector<8x128xf32> -> vector<8x128xf32>
    %417 = arith.addf %416, %318 : vector<8x128xf32>
    %cst_58 = arith.constant dense<0.000000e+00> : vector<8x256xf32>
    %418 = tpu.matmul %415, %319, %cst_58 {dimension_numbers = #tpu.dot_dimension_numbers<[1], [0], [0], [1], [0, 0, 1, 1], [], []>} : vector<8x32xf32>, vector<32x256xf32>, vector<8x256xf32> -> vector<8x256xf32>
    %419 = vector.extract_strided_slice %418 {offsets = [0, 128], sizes = [8, 128], strides = [1, 1]} : vector<8x256xf32> to vector<8x128xf32>
    %420 = arith.addf %419, %417 : vector<8x128xf32>
    %421 = arith.negf %420 : vector<8x128xf32>
    %422 = math.exp %421 : vector<8x128xf32>
    %cst_59 = arith.constant 1.000000e+00 : f32
    %423 = vector.broadcast %cst_59 : f32 to vector<8x128xf32>
    %424 = arith.addf %423, %422 : vector<8x128xf32>
    %425 = arith.divf %423, %424 : vector<8x128xf32>
    %426 = math.tanh %420 : vector<8x128xf32>
    %427 = vector.extract_strided_slice %425 {offsets = [0, 0], sizes = [8, 32], strides = [1, 1]} : vector<8x128xf32> to vector<8x32xf32>
    %428 = vector.extract_strided_slice %425 {offsets = [0, 32], sizes = [8, 32], strides = [1, 1]} : vector<8x128xf32> to vector<8x32xf32>
    %429 = vector.extract_strided_slice %426 {offsets = [0, 64], sizes = [8, 32], strides = [1, 1]} : vector<8x128xf32> to vector<8x32xf32>
    %430 = vector.extract_strided_slice %425 {offsets = [0, 96], sizes = [8, 32], strides = [1, 1]} : vector<8x128xf32> to vector<8x32xf32>
    %431 = arith.mulf %428, %396 : vector<8x32xf32>
    %432 = arith.mulf %427, %429 : vector<8x32xf32>
    %433 = arith.addf %431, %432 : vector<8x32xf32>
    %434 = math.tanh %433 : vector<8x32xf32>
    %435 = arith.mulf %430, %434 : vector<8x32xf32>
    %436 = vector.extract_strided_slice %418 {offsets = [0, 0], sizes = [8, 128], strides = [1, 1]} : vector<8x256xf32> to vector<8x128xf32>
    %437 = arith.addf %323, %436 : vector<8x128xf32>
    %438 = arith.negf %437 : vector<8x128xf32>
    %439 = math.exp %438 : vector<8x128xf32>
    %cst_60 = arith.constant 1.000000e+00 : f32
    %440 = vector.broadcast %cst_60 : f32 to vector<8x128xf32>
    %441 = arith.addf %440, %439 : vector<8x128xf32>
    %442 = arith.divf %440, %441 : vector<8x128xf32>
    %443 = math.tanh %437 : vector<8x128xf32>
    %444 = vector.extract_strided_slice %442 {offsets = [0, 0], sizes = [8, 32], strides = [1, 1]} : vector<8x128xf32> to vector<8x32xf32>
    %445 = vector.extract_strided_slice %442 {offsets = [0, 32], sizes = [8, 32], strides = [1, 1]} : vector<8x128xf32> to vector<8x32xf32>
    %446 = vector.extract_strided_slice %443 {offsets = [0, 64], sizes = [8, 32], strides = [1, 1]} : vector<8x128xf32> to vector<8x32xf32>
    %447 = vector.extract_strided_slice %442 {offsets = [0, 96], sizes = [8, 32], strides = [1, 1]} : vector<8x128xf32> to vector<8x32xf32>
    %448 = arith.mulf %445, %413 : vector<8x32xf32>
    %449 = arith.mulf %444, %446 : vector<8x32xf32>
    %450 = arith.addf %448, %449 : vector<8x32xf32>
    %451 = math.tanh %450 : vector<8x32xf32>
    %452 = arith.mulf %447, %451 : vector<8x32xf32>
    %cst_61 = arith.constant dense<0.000000e+00> : vector<8x128xf32>
    %453 = tpu.matmul %435, %320, %cst_61 {dimension_numbers = #tpu.dot_dimension_numbers<[1], [0], [0], [1], [0, 0, 1, 1], [], []>} : vector<8x32xf32>, vector<32x128xf32>, vector<8x128xf32> -> vector<8x128xf32>
    %454 = arith.addf %453, %318 : vector<8x128xf32>
    %cst_62 = arith.constant dense<0.000000e+00> : vector<8x256xf32>
    %455 = tpu.matmul %452, %319, %cst_62 {dimension_numbers = #tpu.dot_dimension_numbers<[1], [0], [0], [1], [0, 0, 1, 1], [], []>} : vector<8x32xf32>, vector<32x256xf32>, vector<8x256xf32> -> vector<8x256xf32>
    %456 = vector.extract_strided_slice %455 {offsets = [0, 128], sizes = [8, 128], strides = [1, 1]} : vector<8x256xf32> to vector<8x128xf32>
    %457 = arith.addf %456, %454 : vector<8x128xf32>
    %458 = arith.negf %457 : vector<8x128xf32>
    %459 = math.exp %458 : vector<8x128xf32>
    %cst_63 = arith.constant 1.000000e+00 : f32
    %460 = vector.broadcast %cst_63 : f32 to vector<8x128xf32>
    %461 = arith.addf %460, %459 : vector<8x128xf32>
    %462 = arith.divf %460, %461 : vector<8x128xf32>
    %463 = math.tanh %457 : vector<8x128xf32>
    %464 = vector.extract_strided_slice %462 {offsets = [0, 0], sizes = [8, 32], strides = [1, 1]} : vector<8x128xf32> to vector<8x32xf32>
    %465 = vector.extract_strided_slice %462 {offsets = [0, 32], sizes = [8, 32], strides = [1, 1]} : vector<8x128xf32> to vector<8x32xf32>
    %466 = vector.extract_strided_slice %463 {offsets = [0, 64], sizes = [8, 32], strides = [1, 1]} : vector<8x128xf32> to vector<8x32xf32>
    %467 = vector.extract_strided_slice %462 {offsets = [0, 96], sizes = [8, 32], strides = [1, 1]} : vector<8x128xf32> to vector<8x32xf32>
    %468 = arith.mulf %465, %433 : vector<8x32xf32>
    %469 = arith.mulf %464, %466 : vector<8x32xf32>
    %470 = arith.addf %468, %469 : vector<8x32xf32>
    %471 = math.tanh %470 : vector<8x32xf32>
    %472 = arith.mulf %467, %471 : vector<8x32xf32>
    %473 = vector.extract_strided_slice %455 {offsets = [0, 0], sizes = [8, 128], strides = [1, 1]} : vector<8x256xf32> to vector<8x128xf32>
    %474 = arith.addf %323, %473 : vector<8x128xf32>
    %475 = arith.negf %474 : vector<8x128xf32>
    %476 = math.exp %475 : vector<8x128xf32>
    %cst_64 = arith.constant 1.000000e+00 : f32
    %477 = vector.broadcast %cst_64 : f32 to vector<8x128xf32>
    %478 = arith.addf %477, %476 : vector<8x128xf32>
    %479 = arith.divf %477, %478 : vector<8x128xf32>
    %480 = math.tanh %474 : vector<8x128xf32>
    %481 = vector.extract_strided_slice %479 {offsets = [0, 0], sizes = [8, 32], strides = [1, 1]} : vector<8x128xf32> to vector<8x32xf32>
    %482 = vector.extract_strided_slice %479 {offsets = [0, 32], sizes = [8, 32], strides = [1, 1]} : vector<8x128xf32> to vector<8x32xf32>
    %483 = vector.extract_strided_slice %480 {offsets = [0, 64], sizes = [8, 32], strides = [1, 1]} : vector<8x128xf32> to vector<8x32xf32>
    %484 = vector.extract_strided_slice %479 {offsets = [0, 96], sizes = [8, 32], strides = [1, 1]} : vector<8x128xf32> to vector<8x32xf32>
    %485 = arith.mulf %482, %450 : vector<8x32xf32>
    %486 = arith.mulf %481, %483 : vector<8x32xf32>
    %487 = arith.addf %485, %486 : vector<8x32xf32>
    %488 = math.tanh %487 : vector<8x32xf32>
    %489 = arith.mulf %484, %488 : vector<8x32xf32>
    %cst_65 = arith.constant dense<0.000000e+00> : vector<8x128xf32>
    %490 = tpu.matmul %472, %320, %cst_65 {dimension_numbers = #tpu.dot_dimension_numbers<[1], [0], [0], [1], [0, 0, 1, 1], [], []>} : vector<8x32xf32>, vector<32x128xf32>, vector<8x128xf32> -> vector<8x128xf32>
    %491 = arith.addf %490, %318 : vector<8x128xf32>
    %cst_66 = arith.constant dense<0.000000e+00> : vector<8x256xf32>
    %492 = tpu.matmul %489, %319, %cst_66 {dimension_numbers = #tpu.dot_dimension_numbers<[1], [0], [0], [1], [0, 0, 1, 1], [], []>} : vector<8x32xf32>, vector<32x256xf32>, vector<8x256xf32> -> vector<8x256xf32>
    %493 = vector.extract_strided_slice %492 {offsets = [0, 128], sizes = [8, 128], strides = [1, 1]} : vector<8x256xf32> to vector<8x128xf32>
    %494 = arith.addf %493, %491 : vector<8x128xf32>
    %495 = arith.negf %494 : vector<8x128xf32>
    %496 = math.exp %495 : vector<8x128xf32>
    %cst_67 = arith.constant 1.000000e+00 : f32
    %497 = vector.broadcast %cst_67 : f32 to vector<8x128xf32>
    %498 = arith.addf %497, %496 : vector<8x128xf32>
    %499 = arith.divf %497, %498 : vector<8x128xf32>
    %500 = math.tanh %494 : vector<8x128xf32>
    %501 = vector.extract_strided_slice %499 {offsets = [0, 0], sizes = [8, 32], strides = [1, 1]} : vector<8x128xf32> to vector<8x32xf32>
    %502 = vector.extract_strided_slice %499 {offsets = [0, 32], sizes = [8, 32], strides = [1, 1]} : vector<8x128xf32> to vector<8x32xf32>
    %503 = vector.extract_strided_slice %500 {offsets = [0, 64], sizes = [8, 32], strides = [1, 1]} : vector<8x128xf32> to vector<8x32xf32>
    %504 = vector.extract_strided_slice %499 {offsets = [0, 96], sizes = [8, 32], strides = [1, 1]} : vector<8x128xf32> to vector<8x32xf32>
    %505 = arith.mulf %502, %470 : vector<8x32xf32>
    %506 = arith.mulf %501, %503 : vector<8x32xf32>
    %507 = arith.addf %505, %506 : vector<8x32xf32>
    %508 = math.tanh %507 : vector<8x32xf32>
    %509 = arith.mulf %504, %508 : vector<8x32xf32>
    %510 = vector.extract_strided_slice %492 {offsets = [0, 0], sizes = [8, 128], strides = [1, 1]} : vector<8x256xf32> to vector<8x128xf32>
    %511 = arith.addf %323, %510 : vector<8x128xf32>
    %512 = arith.negf %511 : vector<8x128xf32>
    %513 = math.exp %512 : vector<8x128xf32>
    %cst_68 = arith.constant 1.000000e+00 : f32
    %514 = vector.broadcast %cst_68 : f32 to vector<8x128xf32>
    %515 = arith.addf %514, %513 : vector<8x128xf32>
    %516 = arith.divf %514, %515 : vector<8x128xf32>
    %517 = math.tanh %511 : vector<8x128xf32>
    %518 = vector.extract_strided_slice %516 {offsets = [0, 0], sizes = [8, 32], strides = [1, 1]} : vector<8x128xf32> to vector<8x32xf32>
    %519 = vector.extract_strided_slice %516 {offsets = [0, 32], sizes = [8, 32], strides = [1, 1]} : vector<8x128xf32> to vector<8x32xf32>
    %520 = vector.extract_strided_slice %517 {offsets = [0, 64], sizes = [8, 32], strides = [1, 1]} : vector<8x128xf32> to vector<8x32xf32>
    %521 = vector.extract_strided_slice %516 {offsets = [0, 96], sizes = [8, 32], strides = [1, 1]} : vector<8x128xf32> to vector<8x32xf32>
    %522 = arith.mulf %519, %487 : vector<8x32xf32>
    %523 = arith.mulf %518, %520 : vector<8x32xf32>
    %524 = arith.addf %522, %523 : vector<8x32xf32>
    %525 = math.tanh %524 : vector<8x32xf32>
    %526 = arith.mulf %521, %525 : vector<8x32xf32>
    %cst_69 = arith.constant dense<0.000000e+00> : vector<8x128xf32>
    %527 = tpu.matmul %509, %320, %cst_69 {dimension_numbers = #tpu.dot_dimension_numbers<[1], [0], [0], [1], [0, 0, 1, 1], [], []>} : vector<8x32xf32>, vector<32x128xf32>, vector<8x128xf32> -> vector<8x128xf32>
    %528 = arith.addf %527, %318 : vector<8x128xf32>
    %cst_70 = arith.constant dense<0.000000e+00> : vector<8x256xf32>
    %529 = tpu.matmul %526, %319, %cst_70 {dimension_numbers = #tpu.dot_dimension_numbers<[1], [0], [0], [1], [0, 0, 1, 1], [], []>} : vector<8x32xf32>, vector<32x256xf32>, vector<8x256xf32> -> vector<8x256xf32>
    %530 = vector.extract_strided_slice %529 {offsets = [0, 128], sizes = [8, 128], strides = [1, 1]} : vector<8x256xf32> to vector<8x128xf32>
    %531 = arith.addf %530, %528 : vector<8x128xf32>
    %532 = arith.negf %531 : vector<8x128xf32>
    %533 = math.exp %532 : vector<8x128xf32>
    %cst_71 = arith.constant 1.000000e+00 : f32
    %534 = vector.broadcast %cst_71 : f32 to vector<8x128xf32>
    %535 = arith.addf %534, %533 : vector<8x128xf32>
    %536 = arith.divf %534, %535 : vector<8x128xf32>
    %537 = math.tanh %531 : vector<8x128xf32>
    %538 = vector.extract_strided_slice %536 {offsets = [0, 0], sizes = [8, 32], strides = [1, 1]} : vector<8x128xf32> to vector<8x32xf32>
    %539 = vector.extract_strided_slice %536 {offsets = [0, 32], sizes = [8, 32], strides = [1, 1]} : vector<8x128xf32> to vector<8x32xf32>
    %540 = vector.extract_strided_slice %537 {offsets = [0, 64], sizes = [8, 32], strides = [1, 1]} : vector<8x128xf32> to vector<8x32xf32>
    %541 = vector.extract_strided_slice %536 {offsets = [0, 96], sizes = [8, 32], strides = [1, 1]} : vector<8x128xf32> to vector<8x32xf32>
    %542 = arith.mulf %539, %507 : vector<8x32xf32>
    %543 = arith.mulf %538, %540 : vector<8x32xf32>
    %544 = arith.addf %542, %543 : vector<8x32xf32>
    %545 = math.tanh %544 : vector<8x32xf32>
    %546 = arith.mulf %541, %545 : vector<8x32xf32>
    %547 = vector.extract_strided_slice %529 {offsets = [0, 0], sizes = [8, 128], strides = [1, 1]} : vector<8x256xf32> to vector<8x128xf32>
    %548 = arith.addf %323, %547 : vector<8x128xf32>
    %549 = arith.negf %548 : vector<8x128xf32>
    %550 = math.exp %549 : vector<8x128xf32>
    %cst_72 = arith.constant 1.000000e+00 : f32
    %551 = vector.broadcast %cst_72 : f32 to vector<8x128xf32>
    %552 = arith.addf %551, %550 : vector<8x128xf32>
    %553 = arith.divf %551, %552 : vector<8x128xf32>
    %554 = math.tanh %548 : vector<8x128xf32>
    %555 = vector.extract_strided_slice %553 {offsets = [0, 0], sizes = [8, 32], strides = [1, 1]} : vector<8x128xf32> to vector<8x32xf32>
    %556 = vector.extract_strided_slice %553 {offsets = [0, 32], sizes = [8, 32], strides = [1, 1]} : vector<8x128xf32> to vector<8x32xf32>
    %557 = vector.extract_strided_slice %554 {offsets = [0, 64], sizes = [8, 32], strides = [1, 1]} : vector<8x128xf32> to vector<8x32xf32>
    %558 = vector.extract_strided_slice %553 {offsets = [0, 96], sizes = [8, 32], strides = [1, 1]} : vector<8x128xf32> to vector<8x32xf32>
    %559 = arith.mulf %556, %524 : vector<8x32xf32>
    %560 = arith.mulf %555, %557 : vector<8x32xf32>
    %561 = arith.addf %559, %560 : vector<8x32xf32>
    %562 = math.tanh %561 : vector<8x32xf32>
    %563 = arith.mulf %558, %562 : vector<8x32xf32>
    %cst_73 = arith.constant dense<0.000000e+00> : vector<8x128xf32>
    %564 = tpu.matmul %546, %320, %cst_73 {dimension_numbers = #tpu.dot_dimension_numbers<[1], [0], [0], [1], [0, 0, 1, 1], [], []>} : vector<8x32xf32>, vector<32x128xf32>, vector<8x128xf32> -> vector<8x128xf32>
    %565 = arith.addf %564, %318 : vector<8x128xf32>
    %cst_74 = arith.constant dense<0.000000e+00> : vector<8x256xf32>
    %566 = tpu.matmul %563, %319, %cst_74 {dimension_numbers = #tpu.dot_dimension_numbers<[1], [0], [0], [1], [0, 0, 1, 1], [], []>} : vector<8x32xf32>, vector<32x256xf32>, vector<8x256xf32> -> vector<8x256xf32>
    %567 = vector.extract_strided_slice %566 {offsets = [0, 128], sizes = [8, 128], strides = [1, 1]} : vector<8x256xf32> to vector<8x128xf32>
    %568 = arith.addf %567, %565 : vector<8x128xf32>
    %569 = arith.negf %568 : vector<8x128xf32>
    %570 = math.exp %569 : vector<8x128xf32>
    %cst_75 = arith.constant 1.000000e+00 : f32
    %571 = vector.broadcast %cst_75 : f32 to vector<8x128xf32>
    %572 = arith.addf %571, %570 : vector<8x128xf32>
    %573 = arith.divf %571, %572 : vector<8x128xf32>
    %574 = math.tanh %568 : vector<8x128xf32>
    %575 = vector.extract_strided_slice %573 {offsets = [0, 0], sizes = [8, 32], strides = [1, 1]} : vector<8x128xf32> to vector<8x32xf32>
    %576 = vector.extract_strided_slice %573 {offsets = [0, 32], sizes = [8, 32], strides = [1, 1]} : vector<8x128xf32> to vector<8x32xf32>
    %577 = vector.extract_strided_slice %574 {offsets = [0, 64], sizes = [8, 32], strides = [1, 1]} : vector<8x128xf32> to vector<8x32xf32>
    %578 = vector.extract_strided_slice %573 {offsets = [0, 96], sizes = [8, 32], strides = [1, 1]} : vector<8x128xf32> to vector<8x32xf32>
    %579 = arith.mulf %576, %544 : vector<8x32xf32>
    %580 = arith.mulf %575, %577 : vector<8x32xf32>
    %581 = arith.addf %579, %580 : vector<8x32xf32>
    %582 = math.tanh %581 : vector<8x32xf32>
    %583 = arith.mulf %578, %582 : vector<8x32xf32>
    %584 = vector.extract_strided_slice %566 {offsets = [0, 0], sizes = [8, 128], strides = [1, 1]} : vector<8x256xf32> to vector<8x128xf32>
    %585 = arith.addf %323, %584 : vector<8x128xf32>
    %586 = arith.negf %585 : vector<8x128xf32>
    %587 = math.exp %586 : vector<8x128xf32>
    %cst_76 = arith.constant 1.000000e+00 : f32
    %588 = vector.broadcast %cst_76 : f32 to vector<8x128xf32>
    %589 = arith.addf %588, %587 : vector<8x128xf32>
    %590 = arith.divf %588, %589 : vector<8x128xf32>
    %591 = math.tanh %585 : vector<8x128xf32>
    %592 = vector.extract_strided_slice %590 {offsets = [0, 0], sizes = [8, 32], strides = [1, 1]} : vector<8x128xf32> to vector<8x32xf32>
    %593 = vector.extract_strided_slice %590 {offsets = [0, 32], sizes = [8, 32], strides = [1, 1]} : vector<8x128xf32> to vector<8x32xf32>
    %594 = vector.extract_strided_slice %591 {offsets = [0, 64], sizes = [8, 32], strides = [1, 1]} : vector<8x128xf32> to vector<8x32xf32>
    %595 = vector.extract_strided_slice %590 {offsets = [0, 96], sizes = [8, 32], strides = [1, 1]} : vector<8x128xf32> to vector<8x32xf32>
    %596 = arith.mulf %593, %561 : vector<8x32xf32>
    %597 = arith.mulf %592, %594 : vector<8x32xf32>
    %598 = arith.addf %596, %597 : vector<8x32xf32>
    %599 = math.tanh %598 : vector<8x32xf32>
    %600 = arith.mulf %595, %599 : vector<8x32xf32>
    %cst_77 = arith.constant dense<0.000000e+00> : vector<8x128xf32>
    %601 = tpu.matmul %583, %320, %cst_77 {dimension_numbers = #tpu.dot_dimension_numbers<[1], [0], [0], [1], [0, 0, 1, 1], [], []>} : vector<8x32xf32>, vector<32x128xf32>, vector<8x128xf32> -> vector<8x128xf32>
    %602 = arith.addf %601, %318 : vector<8x128xf32>
    %cst_78 = arith.constant dense<0.000000e+00> : vector<8x256xf32>
    %603 = tpu.matmul %600, %319, %cst_78 {dimension_numbers = #tpu.dot_dimension_numbers<[1], [0], [0], [1], [0, 0, 1, 1], [], []>} : vector<8x32xf32>, vector<32x256xf32>, vector<8x256xf32> -> vector<8x256xf32>
    %604 = vector.extract_strided_slice %603 {offsets = [0, 128], sizes = [8, 128], strides = [1, 1]} : vector<8x256xf32> to vector<8x128xf32>
    %605 = arith.addf %604, %602 : vector<8x128xf32>
    %606 = arith.negf %605 : vector<8x128xf32>
    %607 = math.exp %606 : vector<8x128xf32>
    %cst_79 = arith.constant 1.000000e+00 : f32
    %608 = vector.broadcast %cst_79 : f32 to vector<8x128xf32>
    %609 = arith.addf %608, %607 : vector<8x128xf32>
    %610 = arith.divf %608, %609 : vector<8x128xf32>
    %611 = math.tanh %605 : vector<8x128xf32>
    %612 = vector.extract_strided_slice %610 {offsets = [0, 0], sizes = [8, 32], strides = [1, 1]} : vector<8x128xf32> to vector<8x32xf32>
    %613 = vector.extract_strided_slice %610 {offsets = [0, 32], sizes = [8, 32], strides = [1, 1]} : vector<8x128xf32> to vector<8x32xf32>
    %614 = vector.extract_strided_slice %611 {offsets = [0, 64], sizes = [8, 32], strides = [1, 1]} : vector<8x128xf32> to vector<8x32xf32>
    %615 = vector.extract_strided_slice %610 {offsets = [0, 96], sizes = [8, 32], strides = [1, 1]} : vector<8x128xf32> to vector<8x32xf32>
    %616 = arith.mulf %613, %581 : vector<8x32xf32>
    %617 = arith.mulf %612, %614 : vector<8x32xf32>
    %618 = arith.addf %616, %617 : vector<8x32xf32>
    %619 = math.tanh %618 : vector<8x32xf32>
    %620 = arith.mulf %615, %619 : vector<8x32xf32>
    %621 = tpu.concatenate %361, %398, %435, %472, %509, %546, %583, %620 in 0 : vector<8x32xf32>, vector<8x32xf32>, vector<8x32xf32>, vector<8x32xf32>, vector<8x32xf32>, vector<8x32xf32>, vector<8x32xf32>, vector<8x32xf32> -> vector<64x32xf32>
    %c152 = arith.constant 152 : index
    %c0_80 = arith.constant 0 : index
    %622 = vector.load %arg1[%c152, %c0_80] : memref<168x256xf32, #tpu.memory_space<vmem>>, vector<1x32xf32>
    %c160 = arith.constant 160 : index
    %c0_81 = arith.constant 0 : index
    %623 = vector.load %arg1[%c160, %c0_81] : memref<168x256xf32, #tpu.memory_space<vmem>>, vector<1x1xf32>
    %624 = vector.broadcast %622 : vector<1x32xf32> to vector<64x32xf32>
    %625 = arith.mulf %621, %624 : vector<64x32xf32>
    %cst_82 = arith.constant dense<0.000000e+00> : vector<64xf32>
    %626 = vector.multi_reduction <add>, %625, %cst_82 [1] : vector<64x32xf32> to vector<64xf32>
    %627 = vector.shape_cast %626 : vector<64xf32> to vector<64x1xf32>
    %628 = vector.broadcast %623 : vector<1x1xf32> to vector<64x1xf32>
    %629 = arith.addf %627, %628 : vector<64x1xf32>
    %c0_83 = arith.constant 0 : index
    %c0_84 = arith.constant 0 : index
    %630 = vector.load %arg2[%c0_83, %c0_84] : memref<64x1xf32, #tpu.memory_space<vmem>>, vector<64x1xf32>
    tpu.vector_store %arg2[%c0_83, %c0_84], %629 {strides = array<i32>} : memref<64x1xf32, #tpu.memory_space<vmem>>, vector<64x1xf32>,
    return
  }
}

</mosaic_0001>

<llo_original>
// kernel: tpu_custom_call.1
$region0: #{tpu_custom_call.1}
  #allocation0 [shape = 'u32[]', space=smem, size = 0x4, offset = 0x4, fixed_abs, tag = 'smem constant byte address 0x4 - core index']
  #allocation1 [shape = 'u32[144,128]{1,0:T(1,128)}', space=vmem, size = 0x12000, scoped, tag = 'internal scratch']
  %s0 = inlined_call_operand.vmem [shape: f32[64,1], index: 0, kind: input, shape index: {}]
  %s1 = inlined_call_operand.hbm [shape: f32[168,256], index: 1, kind: input, shape index: {}]
  %s2 = inlined_call_operand.vmem [shape: f32[64,1], index: 2, kind: output, shape index: {}]
  %s3 = sld [smem:[#allocation0]]
  $region22: #{tpu_custom_call.1} parent=0
    _
  %s5 = ssub.s32 1, %s3
  %s6 = scalar_select 0, %s5, %s3
  $region1: #{tpu_custom_call.1} parent=0
    #allocation2 [shape = 'u8[172032]{0}', space=vmem, size = 0x2a000, scoped, tag = 'input window, operand 1, single buffered']
    #allocation3 [shape = 's32[1]{0}', space=sflag, size = 0x4, scoped, tag = 'scoped memory for tpu_custom_call.1']
    %7 = vsyncpa [#allocation3], 0
    // Predicated region
    $region2: #{tpu_custom_call.1} parent=1 // pred_check
      _
    $region3: #{tpu_custom_call.1} parent=1 // pred_check_branch
      %9 = sbr.rel (0) target = $region5
    $region4: #{tpu_custom_call.1} parent=1 // pred_region
      _
    $region5: #{tpu_custom_call.1} parent=1 // pred_fallthru
      _
    // Predicated region
    $region6: #{tpu_custom_call.1} parent=1 // pred_check
      _
    $region7: #{tpu_custom_call.1} parent=1 // pred_check_branch
      %11 = sbr.rel (0) target = $region9
    $region8: #{tpu_custom_call.1} parent=1 // pred_region
      %s13 = ssub.s32 5376, 5376
      %14 = vsyncadd [#allocation3], %s13
      %s15 = sshll.u32 [#allocation2], 4
      %s16 = int_to_ptr.vmem [resolvable:$true] %s15
      %21 = dma.hbm_to_vmem [thread:$0]  %s1, 5376, %s16, [#allocation3], 256, 256, 16
    $region9: #{tpu_custom_call.1} parent=1 // pred_fallthru
      _
    // Predicated region
    $region10: #{tpu_custom_call.1} parent=1 // pred_check
      _
    $region11: #{tpu_custom_call.1} parent=1 // pred_check_branch
      %23 = sbr.rel (0) target = $region13
    $region12: #{tpu_custom_call.1} parent=1 // pred_region
      %24 = dma.done [#allocation3], 5376
    $region13: #{tpu_custom_call.1} parent=1 // pred_fallthru
      _
    %v25 = vld [vmem:[%s0] sm:$0xff]
    %v26 = vld [vmem:[%s0 + $0x8] sm:$0xff]
    %v27 = vld [vmem:[%s0 + $0x10] sm:$0xff]
    %v28 = vld [vmem:[%s0 + $0x18] sm:$0xff]
    %v29 = vld [vmem:[%s0 + $0x20] sm:$0xff]
    %v30 = vld [vmem:[%s0 + $0x28] sm:$0xff]
    %v31 = vld [vmem:[%s0 + $0x30] sm:$0xff]
    %v32 = vld [vmem:[%s0 + $0x38] sm:$0xff]
    %v33 = vld [vmem:[#allocation2 + $0x100] ss:$0 sm:$0xff]
    %v34 = vld [vmem:[#allocation2 + $0x110] ss:$0 sm:$0xff]
    %v35 = vld [vmem:[#allocation2 + $0x118] ss:$0 sm:$0xff]
    %v36 = vld [vmem:[#allocation2] sm:$0xff]
    %v37 = vld [vmem:[#allocation2 + $0x8] sm:$0xff]
    %v38 = vld [vmem:[#allocation2 + $0x10] sm:$0xff]
    %v39 = vld [vmem:[#allocation2 + $0x18] sm:$0xff]
    %v40 = vld [vmem:[#allocation2 + $0x20] sm:$0xff]
    %v41 = vld [vmem:[#allocation2 + $0x28] sm:$0xff]
    %v42 = vld [vmem:[#allocation2 + $0x30] sm:$0xff]
    %v43 = vld [vmem:[#allocation2 + $0x38] sm:$0xff]
    %v44 = vld [vmem:[#allocation2 + $0x80] sm:$0xff]
    %v45 = vld [vmem:[#allocation2 + $0x90] sm:$0xff]
    %v46 = vld [vmem:[#allocation2 + $0xa0] sm:$0xff]
    %v47 = vld [vmem:[#allocation2 + $0xb0] sm:$0xff]
    %49 = vset.pattern.permute.xlu0 0
    %50 = vperm.xlu0 %49, %v25
    %v51 = vpop.permute.xlu0 %50
    %54 = vset.pattern.permute.xlu0 0
    %55 = vperm.xlu0 %54, %v26
    %v56 = vpop.permute.xlu0 %55
    %59 = vset.pattern.permute.xlu0 0
    %60 = vperm.xlu0 %59, %v27
    %v61 = vpop.permute.xlu0 %60
    %64 = vset.pattern.permute.xlu0 0
    %65 = vperm.xlu0 %64, %v28
    %v66 = vpop.permute.xlu0 %65
    %69 = vset.pattern.permute.xlu0 0
    %70 = vperm.xlu0 %69, %v29
    %v71 = vpop.permute.xlu0 %70
    %74 = vset.pattern.permute.xlu0 0
    %75 = vperm.xlu0 %74, %v30
    %v76 = vpop.permute.xlu0 %75
    %79 = vset.pattern.permute.xlu0 0
    %80 = vperm.xlu0 %79, %v31
    %v81 = vpop.permute.xlu0 %80
    %84 = vset.pattern.permute.xlu0 0
    %85 = vperm.xlu0 %84, %v32
    %v86 = vpop.permute.xlu0 %85
    %v88 = vmul.f32 %v51, %v33
    %v89 = vmul.f32 %v56, %v33
    %v90 = vmul.f32 %v61, %v33
    %v91 = vmul.f32 %v66, %v33
    %v92 = vmul.f32 %v71, %v33
    %v93 = vmul.f32 %v76, %v33
    %v94 = vmul.f32 %v81, %v33
    %v95 = vmul.f32 %v86, %v33
    %v96 = vadd.f32 %v88, %v34
    %v97 = vadd.f32 %v89, %v34
    %v98 = vadd.f32 %v90, %v34
    %v99 = vadd.f32 %v91, %v34
    %v100 = vadd.f32 %v92, %v34
    %v101 = vadd.f32 %v93, %v34
    %v102 = vadd.f32 %v94, %v34
    %v103 = vadd.f32 %v95, %v34
    %v104 = vxor.u32 %v96, 2147483648
    %v105 = vmul.f32 %v104, 1.442695
    %v106 = vpow.pop %v105
    %v107 = vadd.f32 %v106, 1.0
    %v108 = vrcp.pop %v107
    %v109 = vmul.f32 1.0, %v108
    %v110 = vtanh.pop %v96
    %v111 = vmul.f32 %v109, 0.0
    %113 = vrot.lane.b32.xlu0 %v110, 64
    %v114 = vpop.permute.xlu0 %113
    %v116 = vmul.f32 %v109, %v114
    %118 = vrot.lane.b32.xlu0 %v116, 32
    %v119 = vpop.permute.xlu0 %118
    %v121 = vadd.f32 %v111, %v119
    %v122 = vtanh.pop %v121
    %124 = vrot.lane.b32.xlu0 %v122, 64
    %v125 = vpop.permute.xlu0 %124
    %v127 = vmul.f32 %v109, %v125
    %129 = vrot.lane.b32.xlu0 %v127, 32
    %v130 = vpop.permute.xlu0 %129
    %vm131 = vcmask 261120
    %v132 = vsel %vm131, %v130, 0
    %134 = vmatprep.subr.mxu0 %v37
    %135 = vmatpush1.msra.mxu0 %v36
    %136 = vmatprep.subr.mxu0 %v39
    %137 = vmatpush1.msra.mxu0 %v38
    %138 = vmatprep.subr.mxu0 %v41
    %139 = vmatpush1.msra.mxu0 %v40
    %140 = vmatprep.subr.mxu0 %v43
    %141 = vmatpush1.msra.mxu0 %v42
    %142 = vmatprep.subr.mxu0 0.0
    %143 = vmatpush1.msra.mxu0 0.0
    %144 = vmatprep.subr.mxu0 0.0
    %145 = vmatpush1.msra.mxu0 0.0
    %146 = vmatprep.subr.mxu0 0.0
    %147 = vmatpush1.msra.mxu0 0.0
    %148 = vmatprep.subr.mxu0 0.0
    %149 = vmatpush1.msra.mxu0 0.0
    %150 = vmatprep.subr.mxu0 0.0
    %151 = vmatpush1.msra.mxu0 0.0
    %152 = vmatprep.subr.mxu0 0.0
    %153 = vmatpush1.msra.mxu0 0.0
    %154 = vmatprep.subr.mxu0 0.0
    %155 = vmatpush1.msra.mxu0 0.0
    %156 = vmatprep.subr.mxu0 0.0
    %157 = vmatpush1.msra.mxu0 0.0
    %158 = vmatprep.subr.mxu0 0.0
    %159 = vmatpush1.msra.mxu0 0.0
    %160 = vmatprep.subr.mxu0 0.0
    %161 = vmatpush1.msra.mxu0 0.0
    %162 = vmatprep.subr.mxu0 0.0
    %163 = vmatpush1.msra.mxu0 0.0
    %164 = vmatprep.subr.mxu0 0.0
    %165 = vmatpush1.msra.mxu0 0.0
    %166 = vmatprep.subr.mxu0 0.0
    %167 = vmatpush1.msra.mxu0 0.0
    %168 = vmatprep.subr.mxu0 0.0
    %169 = vmatpush1.msra.mxu0 0.0
    %170 = vmatprep.subr.mxu0 0.0
    %171 = vmatpush1.msra.mxu0 0.0
    %172 = vmatprep.subr.mxu0 0.0
    %173 = vmatpush1.msra.mxu0 0.0
    %174 = vmatprep.subr.mxu0 0.0
    %175 = vmatpush1.msra.mxu0 0.0
    %176 = vmatprep.subr.mxu0 0.0
    %177 = vmatpush1.msra.mxu0 0.0
    %178 = vmatprep.subr.mxu0 0.0
    %179 = vmatpush1.msra.mxu0 0.0
    %180 = vmatprep.subr.mxu0 0.0
    %181 = vmatpush1.msra.mxu0 0.0
    %182 = vmatprep.subr.mxu0 0.0
    %183 = vmatpush1.msra.mxu0 0.0
    %184 = vmatprep.subr.mxu0 0.0
    %185 = vmatpush1.msra.mxu0 0.0
    %186 = vmatprep.subr.mxu0 0.0
    %187 = vmatpush1.msra.mxu0 0.0
    %188 = vmatprep.subr.mxu0 0.0
    %189 = vmatpush1.msra.mxu0 0.0
    %190 = vmatprep.subr.mxu0 0.0
    %191 = vmatpush1.msra.mxu0 0.0
    %192 = vmatprep.subr.mxu0 0.0
    %193 = vmatpush1.msra.mxu0 0.0
    %194 = vmatprep.subr.mxu0 0.0
    %195 = vmatpush1.msra.mxu0 0.0
    %196 = vmatprep.subr.mxu0 0.0
    %197 = vmatpush1.msra.mxu0 0.0
    %198 = vmatprep.mubr.f32.mxu0 0.0
    %199 = vmatmul.mubr.f32.gmra.mrb[0].mxu0 %v132
    %v200 = vpop.f32.mrb[0].mxu0
    %v201 = vadd.f32 0.0, %v200
    %v202 = vpop.f32.mrb[0].mxu0
    %v203 = vadd.f32 0.0, %v202
    %204 = vdwg.mxu0
    %v205 = vadd.f32 %v203, %v35
    %v206 = vxor.u32 %v205, 2147483648
    %v207 = vmul.f32 %v206, 1.442695
    %v208 = vpow.pop %v207
    %v209 = vadd.f32 %v208, 1.0
    %v210 = vrcp.pop %v209
    %v211 = vmul.f32 1.0, %v210
    %v212 = vtanh.pop %v205
    %v213 = vmul.f32 %v211, 0.0
    %215 = vrot.lane.b32.xlu0 %v212, 64
    %v216 = vpop.permute.xlu0 %215
    %v218 = vmul.f32 %v211, %v216
    %220 = vrot.lane.b32.xlu0 %v218, 32
    %v221 = vpop.permute.xlu0 %220
    %v223 = vadd.f32 %v213, %v221
    %v224 = vtanh.pop %v223
    %226 = vrot.lane.b32.xlu0 %v224, 64
    %v227 = vpop.permute.xlu0 %226
    %v229 = vmul.f32 %v211, %v227
    %v230 = vadd.f32 %v97, %v201
    %v231 = vxor.u32 %v230, 2147483648
    %v232 = vmul.f32 %v231, 1.442695
    %v233 = vpow.pop %v232
    %v234 = vadd.f32 %v233, 1.0
    %v235 = vrcp.pop %v234
    %v236 = vmul.f32 1.0, %v235
    %v237 = vtanh.pop %v230
    %v238 = vmul.f32 %v236, %v121
    %240 = vrot.lane.b32.xlu0 %v237, 64
    %v241 = vpop.permute.xlu0 %240
    %v243 = vmul.f32 %v236, %v241
    %245 = vrot.lane.b32.xlu0 %v243, 32
    %v246 = vpop.permute.xlu0 %245
    %v248 = vadd.f32 %v238, %v246
    %v249 = vtanh.pop %v248
    %251 = vrot.lane.b32.xlu0 %v249, 64
    %v252 = vpop.permute.xlu0 %251
    %v254 = vmul.f32 %v236, %v252
    %256 = vrot.lane.b32.xlu0 %v229, 32
    %v257 = vpop.permute.xlu0 %256
    %v258 = vsel %vm131, %v257, 0
    %260 = vmatprep.subr.mxu0 0.0
    %261 = vmatpush1.msra.mxu0 %v44
    %262 = vmatprep.subr.mxu0 0.0
    %263 = vmatpush1.msra.mxu0 %v45
    %264 = vmatprep.subr.mxu0 0.0
    %265 = vmatpush1.msra.mxu0 %v46
    %266 = vmatprep.subr.mxu0 0.0
    %267 = vmatpush1.msra.mxu0 %v47
    %268 = vmatprep.subr.mxu0 0.0
    %269 = vmatpush1.msra.mxu0 0.0
    %270 = vmatprep.subr.mxu0 0.0
    %271 = vmatpush1.msra.mxu0 0.0
    %272 = vmatprep.subr.mxu0 0.0
    %273 = vmatpush1.msra.mxu0 0.0
    %274 = vmatprep.subr.mxu0 0.0
    %275 = vmatpush1.msra.mxu0 0.0
    %276 = vmatprep.subr.mxu0 0.0
    %277 = vmatpush1.msra.mxu0 0.0
    %278 = vmatprep.subr.mxu0 0.0
    %279 = vmatpush1.msra.mxu0 0.0
    %280 = vmatprep.subr.mxu0 0.0
    %281 = vmatpush1.msra.mxu0 0.0
    %282 = vmatprep.subr.mxu0 0.0
    %283 = vmatpush1.msra.mxu0 0.0
    %284 = vmatprep.subr.mxu0 0.0
    %285 = vmatpush1.msra.mxu0 0.0
    %286 = vmatprep.subr.mxu0 0.0
    %287 = vmatpush1.msra.mxu0 0.0
    %288 = vmatprep.subr.mxu0 0.0
    %289 = vmatpush1.msra.mxu0 0.0
    %290 = vmatprep.subr.mxu0 0.0
    %291 = vmatpush1.msra.mxu0 0.0
    %292 = vmatprep.subr.mxu0 0.0
    %293 = vmatpush1.msra.mxu0 0.0
    %294 = vmatprep.subr.mxu0 0.0
    %295 = vmatpush1.msra.mxu0 0.0
    %296 = vmatprep.subr.mxu0 0.0
    %297 = vmatpush1.msra.mxu0 0.0
    %298 = vmatprep.subr.mxu0 0.0
    %299 = vmatpush1.msra.mxu0 0.0
    %300 = vmatprep.subr.mxu0 0.0
    %301 = vmatpush1.msra.mxu0 0.0
    %302 = vmatprep.subr.mxu0 0.0
    %303 = vmatpush1.msra.mxu0 0.0
    %304 = vmatprep.subr.mxu0 0.0
    %305 = vmatpush1.msra.mxu0 0.0
    %306 = vmatprep.subr.mxu0 0.0
    %307 = vmatpush1.msra.mxu0 0.0
    %308 = vmatprep.subr.mxu0 0.0
    %309 = vmatpush1.msra.mxu0 0.0
    %310 = vmatprep.subr.mxu0 0.0
    %311 = vmatpush1.msra.mxu0 0.0
    %312 = vmatprep.subr.mxu0 0.0
    %313 = vmatpush1.msra.mxu0 0.0
    %314 = vmatprep.subr.mxu0 0.0
    %315 = vmatpush1.msra.mxu0 0.0
    %316 = vmatprep.subr.mxu0 0.0
    %317 = vmatpush1.msra.mxu0 0.0
    %318 = vmatprep.subr.mxu0 0.0
    %319 = vmatpush1.msra.mxu0 0.0
    %320 = vmatprep.subr.mxu0 0.0
    %321 = vmatpush1.msra.mxu0 0.0
    %322 = vmatprep.subr.mxu0 0.0
    %323 = vmatpush1.msra.mxu0 0.0
    %324 = vmatprep.mubr.f32.mxu0 0.0
    %325 = vmatmul.mubr.f32.gmra.mrb[0].mxu0 %v258
    %v326 = vpop.f32.mrb[0].mxu0
    %v327 = vadd.f32 %v35, %v326
    %v328 = vpop.f32.mrb[0].mxu0
    %329 = vdwg.mxu0
    %331 = vrot.lane.b32.xlu0 %v254, 32
    %v332 = vpop.permute.xlu0 %331
    %v333 = vsel %vm131, %v332, 0
    %335 = vmatprep.subr.mxu0 %v37
    %336 = vmatpush1.msra.mxu0 %v36
    %337 = vmatprep.subr.mxu0 %v39
    %338 = vmatpush1.msra.mxu0 %v38
    %339 = vmatprep.subr.mxu0 %v41
    %340 = vmatpush1.msra.mxu0 %v40
    %341 = vmatprep.subr.mxu0 %v43
    %342 = vmatpush1.msra.mxu0 %v42
    %343 = vmatprep.subr.mxu0 0.0
    %344 = vmatpush1.msra.mxu0 0.0
    %345 = vmatprep.subr.mxu0 0.0
    %346 = vmatpush1.msra.mxu0 0.0
    %347 = vmatprep.subr.mxu0 0.0
    %348 = vmatpush1.msra.mxu0 0.0
    %349 = vmatprep.subr.mxu0 0.0
    %350 = vmatpush1.msra.mxu0 0.0
    %351 = vmatprep.subr.mxu0 0.0
    %352 = vmatpush1.msra.mxu0 0.0
    %353 = vmatprep.subr.mxu0 0.0
    %354 = vmatpush1.msra.mxu0 0.0
    %355 = vmatprep.subr.mxu0 0.0
    %356 = vmatpush1.msra.mxu0 0.0
    %357 = vmatprep.subr.mxu0 0.0
    %358 = vmatpush1.msra.mxu0 0.0
    %359 = vmatprep.subr.mxu0 0.0
    %360 = vmatpush1.msra.mxu0 0.0
    %361 = vmatprep.subr.mxu0 0.0
    %362 = vmatpush1.msra.mxu0 0.0
    %363 = vmatprep.subr.mxu0 0.0
    %364 = vmatpush1.msra.mxu0 0.0
    %365 = vmatprep.subr.mxu0 0.0
    %366 = vmatpush1.msra.mxu0 0.0
    %367 = vmatprep.subr.mxu0 0.0
    %368 = vmatpush1.msra.mxu0 0.0
    %369 = vmatprep.subr.mxu0 0.0
    %370 = vmatpush1.msra.mxu0 0.0
    %371 = vmatprep.subr.mxu0 0.0
    %372 = vmatpush1.msra.mxu0 0.0
    %373 = vmatprep.subr.mxu0 0.0
    %374 = vmatpush1.msra.mxu0 0.0
    %375 = vmatprep.subr.mxu0 0.0
    %376 = vmatpush1.msra.mxu0 0.0
    %377 = vmatprep.subr.mxu0 0.0
    %378 = vmatpush1.msra.mxu0 0.0
    %379 = vmatprep.subr.mxu0 0.0
    %380 = vmatpush1.msra.mxu0 0.0
    %381 = vmatprep.subr.mxu0 0.0
    %382 = vmatpush1.msra.mxu0 0.0
    %383 = vmatprep.subr.mxu0 0.0
    %384 = vmatpush1.msra.mxu0 0.0
    %385 = vmatprep.subr.mxu0 0.0
    %386 = vmatpush1.msra.mxu0 0.0
    %387 = vmatprep.subr.mxu0 0.0
    %388 = vmatpush1.msra.mxu0 0.0
    %389 = vmatprep.subr.mxu0 0.0
    %390 = vmatpush1.msra.mxu0 0.0
    %391 = vmatprep.subr.mxu0 0.0
    %392 = vmatpush1.msra.mxu0 0.0
    %393 = vmatprep.subr.mxu0 0.0
    %394 = vmatpush1.msra.mxu0 0.0
    %395 = vmatprep.subr.mxu0 0.0
    %396 = vmatpush1.msra.mxu0 0.0
    %397 = vmatprep.subr.mxu0 0.0
    %398 = vmatpush1.msra.mxu0 0.0
    %399 = vmatprep.mubr.f32.mxu0 0.0
    %400 = vmatmul.mubr.f32.gmra.mrb[0].mxu0 %v333
    %v401 = vpop.f32.mrb[0].mxu0
    %v402 = vadd.f32 0.0, %v401
    %v403 = vpop.f32.mrb[0].mxu0
    %v404 = vadd.f32 0.0, %v403
    %405 = vdwg.mxu0
    %v406 = vadd.f32 %v404, %v327
    %v407 = vxor.u32 %v406, 2147483648
    %v408 = vmul.f32 %v407, 1.442695
    %v409 = vpow.pop %v408
    %v410 = vadd.f32 %v409, 1.0
    %v411 = vrcp.pop %v410
    %v412 = vmul.f32 1.0, %v411
    %v413 = vtanh.pop %v406
    %v414 = vmul.f32 %v412, %v223
    %416 = vrot.lane.b32.xlu0 %v413, 64
    %v417 = vpop.permute.xlu0 %416
    %v419 = vmul.f32 %v412, %v417
    %421 = vrot.lane.b32.xlu0 %v419, 32
    %v422 = vpop.permute.xlu0 %421
    %v424 = vadd.f32 %v414, %v422
    %v425 = vtanh.pop %v424
    %427 = vrot.lane.b32.xlu0 %v425, 64
    %v428 = vpop.permute.xlu0 %427
    %v430 = vmul.f32 %v412, %v428
    %v431 = vadd.f32 %v98, %v402
    %v432 = vxor.u32 %v431, 2147483648
    %v433 = vmul.f32 %v432, 1.442695
    %v434 = vpow.pop %v433
    %v435 = vadd.f32 %v434, 1.0
    %v436 = vrcp.pop %v435
    %v437 = vmul.f32 1.0, %v436
    %v438 = vtanh.pop %v431
    %v439 = vmul.f32 %v437, %v248
    %441 = vrot.lane.b32.xlu0 %v438, 64
    %v442 = vpop.permute.xlu0 %441
    %v444 = vmul.f32 %v437, %v442
    %446 = vrot.lane.b32.xlu0 %v444, 32
    %v447 = vpop.permute.xlu0 %446
    %v449 = vadd.f32 %v439, %v447
    %v450 = vtanh.pop %v449
    %452 = vrot.lane.b32.xlu0 %v450, 64
    %v453 = vpop.permute.xlu0 %452
    %v455 = vmul.f32 %v437, %v453
    %457 = vrot.lane.b32.xlu0 %v430, 32
    %v458 = vpop.permute.xlu0 %457
    %v459 = vsel %vm131, %v458, 0
    %461 = vmatprep.subr.mxu0 0.0
    %462 = vmatpush1.msra.mxu0 %v44
    %463 = vmatprep.subr.mxu0 0.0
    %464 = vmatpush1.msra.mxu0 %v45
    %465 = vmatprep.subr.mxu0 0.0
    %466 = vmatpush1.msra.mxu0 %v46
    %467 = vmatprep.subr.mxu0 0.0
    %468 = vmatpush1.msra.mxu0 %v47
    %469 = vmatprep.subr.mxu0 0.0
    %470 = vmatpush1.msra.mxu0 0.0
    %471 = vmatprep.subr.mxu0 0.0
    %472 = vmatpush1.msra.mxu0 0.0
    %473 = vmatprep.subr.mxu0 0.0
    %474 = vmatpush1.msra.mxu0 0.0
    %475 = vmatprep.subr.mxu0 0.0
    %476 = vmatpush1.msra.mxu0 0.0
    %477 = vmatprep.subr.mxu0 0.0
    %478 = vmatpush1.msra.mxu0 0.0
    %479 = vmatprep.subr.mxu0 0.0
    %480 = vmatpush1.msra.mxu0 0.0
    %481 = vmatprep.subr.mxu0 0.0
    %482 = vmatpush1.msra.mxu0 0.0
    %483 = vmatprep.subr.mxu0 0.0
    %484 = vmatpush1.msra.mxu0 0.0
    %485 = vmatprep.subr.mxu0 0.0
    %486 = vmatpush1.msra.mxu0 0.0
    %487 = vmatprep.subr.mxu0 0.0
    %488 = vmatpush1.msra.mxu0 0.0
    %489 = vmatprep.subr.mxu0 0.0
    %490 = vmatpush1.msra.mxu0 0.0
    %491 = vmatprep.subr.mxu0 0.0
    %492 = vmatpush1.msra.mxu0 0.0
    %493 = vmatprep.subr.mxu0 0.0
    %494 = vmatpush1.msra.mxu0 0.0
    %495 = vmatprep.subr.mxu0 0.0
    %496 = vmatpush1.msra.mxu0 0.0
    %497 = vmatprep.subr.mxu0 0.0
    %498 = vmatpush1.msra.mxu0 0.0
    %499 = vmatprep.subr.mxu0 0.0
    %500 = vmatpush1.msra.mxu0 0.0
    %501 = vmatprep.subr.mxu0 0.0
    %502 = vmatpush1.msra.mxu0 0.0
    %503 = vmatprep.subr.mxu0 0.0
    %504 = vmatpush1.msra.mxu0 0.0
    %505 = vmatprep.subr.mxu0 0.0
    %506 = vmatpush1.msra.mxu0 0.0
    %507 = vmatprep.subr.mxu0 0.0
    %508 = vmatpush1.msra.mxu0 0.0
    %509 = vmatprep.subr.mxu0 0.0
    %510 = vmatpush1.msra.mxu0 0.0
    %511 = vmatprep.subr.mxu0 0.0
    %512 = vmatpush1.msra.mxu0 0.0
    %513 = vmatprep.subr.mxu0 0.0
    %514 = vmatpush1.msra.mxu0 0.0
    %515 = vmatprep.subr.mxu0 0.0
    %516 = vmatpush1.msra.mxu0 0.0
    %517 = vmatprep.subr.mxu0 0.0
    %518 = vmatpush1.msra.mxu0 0.0
    %519 = vmatprep.subr.mxu0 0.0
    %520 = vmatpush1.msra.mxu0 0.0
    %521 = vmatprep.subr.mxu0 0.0
    %522 = vmatpush1.msra.mxu0 0.0
    %523 = vmatprep.subr.mxu0 0.0
    %524 = vmatpush1.msra.mxu0 0.0
    %525 = vmatprep.mubr.f32.mxu0 0.0
    %526 = vmatmul.mubr.f32.gmra.mrb[0].mxu0 %v459
    %v527 = vpop.f32.mrb[0].mxu0
    %v528 = vadd.f32 %v35, %v527
    %v529 = vpop.f32.mrb[0].mxu0
    %530 = vdwg.mxu0
    %532 = vrot.lane.b32.xlu0 %v455, 32
    %v533 = vpop.permute.xlu0 %532
    %v534 = vsel %vm131, %v533, 0
    %536 = vmatprep.subr.mxu0 %v37
    %537 = vmatpush1.msra.mxu0 %v36
    %538 = vmatprep.subr.mxu0 %v39
    %539 = vmatpush1.msra.mxu0 %v38
    %540 = vmatprep.subr.mxu0 %v41
    %541 = vmatpush1.msra.mxu0 %v40
    %542 = vmatprep.subr.mxu0 %v43
    %543 = vmatpush1.msra.mxu0 %v42
    %544 = vmatprep.subr.mxu0 0.0
    %545 = vmatpush1.msra.mxu0 0.0
    %546 = vmatprep.subr.mxu0 0.0
    %547 = vmatpush1.msra.mxu0 0.0
    %548 = vmatprep.subr.mxu0 0.0
    %549 = vmatpush1.msra.mxu0 0.0
    %550 = vmatprep.subr.mxu0 0.0
    %551 = vmatpush1.msra.mxu0 0.0
    %552 = vmatprep.subr.mxu0 0.0
    %553 = vmatpush1.msra.mxu0 0.0
    %554 = vmatprep.subr.mxu0 0.0
    %555 = vmatpush1.msra.mxu0 0.0
    %556 = vmatprep.subr.mxu0 0.0
    %557 = vmatpush1.msra.mxu0 0.0
    %558 = vmatprep.subr.mxu0 0.0
    %559 = vmatpush1.msra.mxu0 0.0
    %560 = vmatprep.subr.mxu0 0.0
    %561 = vmatpush1.msra.mxu0 0.0
    %562 = vmatprep.subr.mxu0 0.0
    %563 = vmatpush1.msra.mxu0 0.0
    %564 = vmatprep.subr.mxu0 0.0
    %565 = vmatpush1.msra.mxu0 0.0
    %566 = vmatprep.subr.mxu0 0.0
    %567 = vmatpush1.msra.mxu0 0.0
    %568 = vmatprep.subr.mxu0 0.0
    %569 = vmatpush1.msra.mxu0 0.0
    %570 = vmatprep.subr.mxu0 0.0
    %571 = vmatpush1.msra.mxu0 0.0
    %572 = vmatprep.subr.mxu0 0.0
    %573 = vmatpush1.msra.mxu0 0.0
    %574 = vmatprep.subr.mxu0 0.0
    %575 = vmatpush1.msra.mxu0 0.0
    %576 = vmatprep.subr.mxu0 0.0
    %577 = vmatpush1.msra.mxu0 0.0
    %578 = vmatprep.subr.mxu0 0.0
    %579 = vmatpush1.msra.mxu0 0.0
    %580 = vmatprep.subr.mxu0 0.0
    %581 = vmatpush1.msra.mxu0 0.0
    %582 = vmatprep.subr.mxu0 0.0
    %583 = vmatpush1.msra.mxu0 0.0
    %584 = vmatprep.subr.mxu0 0.0
    %585 = vmatpush1.msra.mxu0 0.0
    %586 = vmatprep.subr.mxu0 0.0
    %587 = vmatpush1.msra.mxu0 0.0
    %588 = vmatprep.subr.mxu0 0.0
    %589 = vmatpush1.msra.mxu0 0.0
    %590 = vmatprep.subr.mxu0 0.0
    %591 = vmatpush1.msra.mxu0 0.0
    %592 = vmatprep.subr.mxu0 0.0
    %593 = vmatpush1.msra.mxu0 0.0
    %594 = vmatprep.subr.mxu0 0.0
    %595 = vmatpush1.msra.mxu0 0.0
    %596 = vmatprep.subr.mxu0 0.0
    %597 = vmatpush1.msra.mxu0 0.0
    %598 = vmatprep.subr.mxu0 0.0
    %599 = vmatpush1.msra.mxu0 0.0
    %600 = vmatprep.mubr.f32.mxu0 0.0
    %601 = vmatmul.mubr.f32.gmra.mrb[0].mxu0 %v534
    %v602 = vpop.f32.mrb[0].mxu0
    %v603 = vadd.f32 0.0, %v602
    %v604 = vpop.f32.mrb[0].mxu0
    %v605 = vadd.f32 0.0, %v604
    %606 = vdwg.mxu0
    %v607 = vadd.f32 %v605, %v528
    %v608 = vxor.u32 %v607, 2147483648
    %v609 = vmul.f32 %v608, 1.442695
    %v610 = vpow.pop %v609
    %v611 = vadd.f32 %v610, 1.0
    %v612 = vrcp.pop %v611
    %v613 = vmul.f32 1.0, %v612
    %v614 = vtanh.pop %v607
    %v615 = vmul.f32 %v613, %v424
    %617 = vrot.lane.b32.xlu0 %v614, 64
    %v618 = vpop.permute.xlu0 %617
    %v620 = vmul.f32 %v613, %v618
    %622 = vrot.lane.b32.xlu0 %v620, 32
    %v623 = vpop.permute.xlu0 %622
    %v625 = vadd.f32 %v615, %v623
    %v626 = vtanh.pop %v625
    %628 = vrot.lane.b32.xlu0 %v626, 64
    %v629 = vpop.permute.xlu0 %628
    %v631 = vmul.f32 %v613, %v629
    %v632 = vadd.f32 %v99, %v603
    %v633 = vxor.u32 %v632, 2147483648
    %v634 = vmul.f32 %v633, 1.442695
    %v635 = vpow.pop %v634
    %v636 = vadd.f32 %v635, 1.0
    %v637 = vrcp.pop %v636
    %v638 = vmul.f32 1.0, %v637
    %v639 = vtanh.pop %v632
    %v640 = vmul.f32 %v638, %v449
    %642 = vrot.lane.b32.xlu0 %v639, 64
    %v643 = vpop.permute.xlu0 %642
    %v645 = vmul.f32 %v638, %v643
    %647 = vrot.lane.b32.xlu0 %v645, 32
    %v648 = vpop.permute.xlu0 %647
    %v650 = vadd.f32 %v640, %v648
    %v651 = vtanh.pop %v650
    %653 = vrot.lane.b32.xlu0 %v651, 64
    %v654 = vpop.permute.xlu0 %653
    %v656 = vmul.f32 %v638, %v654
    %658 = vrot.lane.b32.xlu0 %v631, 32
    %v659 = vpop.permute.xlu0 %658
    %v660 = vsel %vm131, %v659, 0
    %662 = vmatprep.subr.mxu0 0.0
    %663 = vmatpush1.msra.mxu0 %v44
    %664 = vmatprep.subr.mxu0 0.0
    %665 = vmatpush1.msra.mxu0 %v45
    %666 = vmatprep.subr.mxu0 0.0
    %667 = vmatpush1.msra.mxu0 %v46
    %668 = vmatprep.subr.mxu0 0.0
    %669 = vmatpush1.msra.mxu0 %v47
    %670 = vmatprep.subr.mxu0 0.0
    %671 = vmatpush1.msra.mxu0 0.0
    %672 = vmatprep.subr.mxu0 0.0
    %673 = vmatpush1.msra.mxu0 0.0
    %674 = vmatprep.subr.mxu0 0.0
    %675 = vmatpush1.msra.mxu0 0.0
    %676 = vmatprep.subr.mxu0 0.0
    %677 = vmatpush1.msra.mxu0 0.0
    %678 = vmatprep.subr.mxu0 0.0
    %679 = vmatpush1.msra.mxu0 0.0
    %680 = vmatprep.subr.mxu0 0.0
    %681 = vmatpush1.msra.mxu0 0.0
    %682 = vmatprep.subr.mxu0 0.0
    %683 = vmatpush1.msra.mxu0 0.0
    %684 = vmatprep.subr.mxu0 0.0
    %685 = vmatpush1.msra.mxu0 0.0
    %686 = vmatprep.subr.mxu0 0.0
    %687 = vmatpush1.msra.mxu0 0.0
    %688 = vmatprep.subr.mxu0 0.0
    %689 = vmatpush1.msra.mxu0 0.0
    %690 = vmatprep.subr.mxu0 0.0
    %691 = vmatpush1.msra.mxu0 0.0
    %692 = vmatprep.subr.mxu0 0.0
    %693 = vmatpush1.msra.mxu0 0.0
    %694 = vmatprep.subr.mxu0 0.0
    %695 = vmatpush1.msra.mxu0 0.0
    %696 = vmatprep.subr.mxu0 0.0
    %697 = vmatpush1.msra.mxu0 0.0
    %698 = vmatprep.subr.mxu0 0.0
    %699 = vmatpush1.msra.mxu0 0.0
    %700 = vmatprep.subr.mxu0 0.0
    %701 = vmatpush1.msra.mxu0 0.0
    %702 = vmatprep.subr.mxu0 0.0
    %703 = vmatpush1.msra.mxu0 0.0
    %704 = vmatprep.subr.mxu0 0.0
    %705 = vmatpush1.msra.mxu0 0.0
    %706 = vmatprep.subr.mxu0 0.0
    %707 = vmatpush1.msra.mxu0 0.0
    %708 = vmatprep.subr.mxu0 0.0
    %709 = vmatpush1.msra.mxu0 0.0
    %710 = vmatprep.subr.mxu0 0.0
    %711 = vmatpush1.msra.mxu0 0.0
    %712 = vmatprep.subr.mxu0 0.0
    %713 = vmatpush1.msra.mxu0 0.0
    %714 = vmatprep.subr.mxu0 0.0
    %715 = vmatpush1.msra.mxu0 0.0
    %716 = vmatprep.subr.mxu0 0.0
    %717 = vmatpush1.msra.mxu0 0.0
    %718 = vmatprep.subr.mxu0 0.0
    %719 = vmatpush1.msra.mxu0 0.0
    %720 = vmatprep.subr.mxu0 0.0
    %721 = vmatpush1.msra.mxu0 0.0
    %722 = vmatprep.subr.mxu0 0.0
    %723 = vmatpush1.msra.mxu0 0.0
    %724 = vmatprep.subr.mxu0 0.0
    %725 = vmatpush1.msra.mxu0 0.0
    %726 = vmatprep.mubr.f32.mxu0 0.0
    %727 = vmatmul.mubr.f32.gmra.mrb[0].mxu0 %v660
    %v728 = vpop.f32.mrb[0].mxu0
    %v729 = vadd.f32 %v35, %v728
    %v730 = vpop.f32.mrb[0].mxu0
    %731 = vdwg.mxu0
    %733 = vrot.lane.b32.xlu0 %v656, 32
    %v734 = vpop.permute.xlu0 %733
    %v735 = vsel %vm131, %v734, 0
    %737 = vmatprep.subr.mxu0 %v37
    %738 = vmatpush1.msra.mxu0 %v36
    %739 = vmatprep.subr.mxu0 %v39
    %740 = vmatpush1.msra.mxu0 %v38
    %741 = vmatprep.subr.mxu0 %v41
    %742 = vmatpush1.msra.mxu0 %v40
    %743 = vmatprep.subr.mxu0 %v43
    %744 = vmatpush1.msra.mxu0 %v42
    %745 = vmatprep.subr.mxu0 0.0
    %746 = vmatpush1.msra.mxu0 0.0
    %747 = vmatprep.subr.mxu0 0.0
    %748 = vmatpush1.msra.mxu0 0.0
    %749 = vmatprep.subr.mxu0 0.0
    %750 = vmatpush1.msra.mxu0 0.0
    %751 = vmatprep.subr.mxu0 0.0
    %752 = vmatpush1.msra.mxu0 0.0
    %753 = vmatprep.subr.mxu0 0.0
    %754 = vmatpush1.msra.mxu0 0.0
    %755 = vmatprep.subr.mxu0 0.0
    %756 = vmatpush1.msra.mxu0 0.0
    %757 = vmatprep.subr.mxu0 0.0
    %758 = vmatpush1.msra.mxu0 0.0
    %759 = vmatprep.subr.mxu0 0.0
    %760 = vmatpush1.msra.mxu0 0.0
    %761 = vmatprep.subr.mxu0 0.0
    %762 = vmatpush1.msra.mxu0 0.0
    %763 = vmatprep.subr.mxu0 0.0
    %764 = vmatpush1.msra.mxu0 0.0
    %765 = vmatprep.subr.mxu0 0.0
    %766 = vmatpush1.msra.mxu0 0.0
    %767 = vmatprep.subr.mxu0 0.0
    %768 = vmatpush1.msra.mxu0 0.0
    %769 = vmatprep.subr.mxu0 0.0
    %770 = vmatpush1.msra.mxu0 0.0
    %771 = vmatprep.subr.mxu0 0.0
    %772 = vmatpush1.msra.mxu0 0.0
    %773 = vmatprep.subr.mxu0 0.0
    %774 = vmatpush1.msra.mxu0 0.0
    %775 = vmatprep.subr.mxu0 0.0
    %776 = vmatpush1.msra.mxu0 0.0
    %777 = vmatprep.subr.mxu0 0.0
    %778 = vmatpush1.msra.mxu0 0.0
    %779 = vmatprep.subr.mxu0 0.0
    %780 = vmatpush1.msra.mxu0 0.0
    %781 = vmatprep.subr.mxu0 0.0
    %782 = vmatpush1.msra.mxu0 0.0
    %783 = vmatprep.subr.mxu0 0.0
    %784 = vmatpush1.msra.mxu0 0.0
    %785 = vmatprep.subr.mxu0 0.0
    %786 = vmatpush1.msra.mxu0 0.0
    %787 = vmatprep.subr.mxu0 0.0
    %788 = vmatpush1.msra.mxu0 0.0
    %789 = vmatprep.subr.mxu0 0.0
    %790 = vmatpush1.msra.mxu0 0.0
    %791 = vmatprep.subr.mxu0 0.0
    %792 = vmatpush1.msra.mxu0 0.0
    %793 = vmatprep.subr.mxu0 0.0
    %794 = vmatpush1.msra.mxu0 0.0
    %795 = vmatprep.subr.mxu0 0.0
    %796 = vmatpush1.msra.mxu0 0.0
    %797 = vmatprep.subr.mxu0 0.0
    %798 = vmatpush1.msra.mxu0 0.0
    %799 = vmatprep.subr.mxu0 0.0
    %800 = vmatpush1.msra.mxu0 0.0
    %801 = vmatprep.mubr.f32.mxu0 0.0
    %802 = vmatmul.mubr.f32.gmra.mrb[0].mxu0 %v735
    %v803 = vpop.f32.mrb[0].mxu0
    %v804 = vadd.f32 0.0, %v803
    %v805 = vpop.f32.mrb[0].mxu0
    %v806 = vadd.f32 0.0, %v805
    %807 = vdwg.mxu0
    %v808 = vadd.f32 %v806, %v729
    %v809 = vxor.u32 %v808, 2147483648
    %v810 = vmul.f32 %v809, 1.442695
    %v811 = vpow.pop %v810
    %v812 = vadd.f32 %v811, 1.0
    %v813 = vrcp.pop %v812
    %v814 = vmul.f32 1.0, %v813
    %v815 = vtanh.pop %v808
    %v816 = vmul.f32 %v814, %v625
    %818 = vrot.lane.b32.xlu0 %v815, 64
    %v819 = vpop.permute.xlu0 %818
    %v821 = vmul.f32 %v814, %v819
    %823 = vrot.lane.b32.xlu0 %v821, 32
    %v824 = vpop.permute.xlu0 %823
    %v826 = vadd.f32 %v816, %v824
    %v827 = vtanh.pop %v826
    %829 = vrot.lane.b32.xlu0 %v827, 64
    %v830 = vpop.permute.xlu0 %829
    %v832 = vmul.f32 %v814, %v830
    %v833 = vadd.f32 %v100, %v804
    %v834 = vxor.u32 %v833, 2147483648
    %v835 = vmul.f32 %v834, 1.442695
    %v836 = vpow.pop %v835
    %v837 = vadd.f32 %v836, 1.0
    %v838 = vrcp.pop %v837
    %v839 = vmul.f32 1.0, %v838
    %v840 = vtanh.pop %v833
    %v841 = vmul.f32 %v839, %v650
    %843 = vrot.lane.b32.xlu0 %v840, 64
    %v844 = vpop.permute.xlu0 %843
    %v846 = vmul.f32 %v839, %v844
    %848 = vrot.lane.b32.xlu0 %v846, 32
    %v849 = vpop.permute.xlu0 %848
    %v851 = vadd.f32 %v841, %v849
    %v852 = vtanh.pop %v851
    %854 = vrot.lane.b32.xlu0 %v852, 64
    %v855 = vpop.permute.xlu0 %854
    %v857 = vmul.f32 %v839, %v855
    %859 = vrot.lane.b32.xlu0 %v832, 32
    %v860 = vpop.permute.xlu0 %859
    %v861 = vsel %vm131, %v860, 0
    %863 = vmatprep.subr.mxu0 0.0
    %864 = vmatpush1.msra.mxu0 %v44
    %865 = vmatprep.subr.mxu0 0.0
    %866 = vmatpush1.msra.mxu0 %v45
    %867 = vmatprep.subr.mxu0 0.0
    %868 = vmatpush1.msra.mxu0 %v46
    %869 = vmatprep.subr.mxu0 0.0
    %870 = vmatpush1.msra.mxu0 %v47
    %871 = vmatprep.subr.mxu0 0.0
    %872 = vmatpush1.msra.mxu0 0.0
    %873 = vmatprep.subr.mxu0 0.0
    %874 = vmatpush1.msra.mxu0 0.0
    %875 = vmatprep.subr.mxu0 0.0
    %876 = vmatpush1.msra.mxu0 0.0
    %877 = vmatprep.subr.mxu0 0.0
    %878 = vmatpush1.msra.mxu0 0.0
    %879 = vmatprep.subr.mxu0 0.0
    %880 = vmatpush1.msra.mxu0 0.0
    %881 = vmatprep.subr.mxu0 0.0
    %882 = vmatpush1.msra.mxu0 0.0
    %883 = vmatprep.subr.mxu0 0.0
    %884 = vmatpush1.msra.mxu0 0.0
    %885 = vmatprep.subr.mxu0 0.0
    %886 = vmatpush1.msra.mxu0 0.0
    %887 = vmatprep.subr.mxu0 0.0
    %888 = vmatpush1.msra.mxu0 0.0
    %889 = vmatprep.subr.mxu0 0.0
    %890 = vmatpush1.msra.mxu0 0.0
    %891 = vmatprep.subr.mxu0 0.0
    %892 = vmatpush1.msra.mxu0 0.0
    %893 = vmatprep.subr.mxu0 0.0
    %894 = vmatpush1.msra.mxu0 0.0
    %895 = vmatprep.subr.mxu0 0.0
    %896 = vmatpush1.msra.mxu0 0.0
    %897 = vmatprep.subr.mxu0 0.0
    %898 = vmatpush1.msra.mxu0 0.0
    %899 = vmatprep.subr.mxu0 0.0
    %900 = vmatpush1.msra.mxu0 0.0
    %901 = vmatprep.subr.mxu0 0.0
    %902 = vmatpush1.msra.mxu0 0.0
    %903 = vmatprep.subr.mxu0 0.0
    %904 = vmatpush1.msra.mxu0 0.0
    %905 = vmatprep.subr.mxu0 0.0
    %906 = vmatpush1.msra.mxu0 0.0
    %907 = vmatprep.subr.mxu0 0.0
    %908 = vmatpush1.msra.mxu0 0.0
    %909 = vmatprep.subr.mxu0 0.0
    %910 = vmatpush1.msra.mxu0 0.0
    %911 = vmatprep.subr.mxu0 0.0
    %912 = vmatpush1.msra.mxu0 0.0
    %913 = vmatprep.subr.mxu0 0.0
    %914 = vmatpush1.msra.mxu0 0.0
    %915 = vmatprep.subr.mxu0 0.0
    %916 = vmatpush1.msra.mxu0 0.0
    %917 = vmatprep.subr.mxu0 0.0
    %918 = vmatpush1.msra.mxu0 0.0
    %919 = vmatprep.subr.mxu0 0.0
    %920 = vmatpush1.msra.mxu0 0.0
    %921 = vmatprep.subr.mxu0 0.0
    %922 = vmatpush1.msra.mxu0 0.0
    %923 = vmatprep.subr.mxu0 0.0
    %924 = vmatpush1.msra.mxu0 0.0
    %925 = vmatprep.subr.mxu0 0.0
    %926 = vmatpush1.msra.mxu0 0.0
    %927 = vmatprep.mubr.f32.mxu0 0.0
    %928 = vmatmul.mubr.f32.gmra.mrb[0].mxu0 %v861
    %v929 = vpop.f32.mrb[0].mxu0
    %v930 = vadd.f32 %v35, %v929
    %v931 = vpop.f32.mrb[0].mxu0
    %932 = vdwg.mxu0
    %934 = vrot.lane.b32.xlu0 %v857, 32
    %v935 = vpop.permute.xlu0 %934
    %v936 = vsel %vm131, %v935, 0
    %938 = vmatprep.subr.mxu0 %v37
    %939 = vmatpush1.msra.mxu0 %v36
    %940 = vmatprep.subr.mxu0 %v39
    %941 = vmatpush1.msra.mxu0 %v38
    %942 = vmatprep.subr.mxu0 %v41
    %943 = vmatpush1.msra.mxu0 %v40
    %944 = vmatprep.subr.mxu0 %v43
    %945 = vmatpush1.msra.mxu0 %v42
    %946 = vmatprep.subr.mxu0 0.0
    %947 = vmatpush1.msra.mxu0 0.0
    %948 = vmatprep.subr.mxu0 0.0
    %949 = vmatpush1.msra.mxu0 0.0
    %950 = vmatprep.subr.mxu0 0.0
    %951 = vmatpush1.msra.mxu0 0.0
    %952 = vmatprep.subr.mxu0 0.0
    %953 = vmatpush1.msra.mxu0 0.0
    %954 = vmatprep.subr.mxu0 0.0
    %955 = vmatpush1.msra.mxu0 0.0
    %956 = vmatprep.subr.mxu0 0.0
    %957 = vmatpush1.msra.mxu0 0.0
    %958 = vmatprep.subr.mxu0 0.0
    %959 = vmatpush1.msra.mxu0 0.0
    %960 = vmatprep.subr.mxu0 0.0
    %961 = vmatpush1.msra.mxu0 0.0
    %962 = vmatprep.subr.mxu0 0.0
    %963 = vmatpush1.msra.mxu0 0.0
    %964 = vmatprep.subr.mxu0 0.0
    %965 = vmatpush1.msra.mxu0 0.0
    %966 = vmatprep.subr.mxu0 0.0
    %967 = vmatpush1.msra.mxu0 0.0
    %968 = vmatprep.subr.mxu0 0.0
    %969 = vmatpush1.msra.mxu0 0.0
    %970 = vmatprep.subr.mxu0 0.0
    %971 = vmatpush1.msra.mxu0 0.0
    %972 = vmatprep.subr.mxu0 0.0
    %973 = vmatpush1.msra.mxu0 0.0
    %974 = vmatprep.subr.mxu0 0.0
    %975 = vmatpush1.msra.mxu0 0.0
    %976 = vmatprep.subr.mxu0 0.0
    %977 = vmatpush1.msra.mxu0 0.0
    %978 = vmatprep.subr.mxu0 0.0
    %979 = vmatpush1.msra.mxu0 0.0
    %980 = vmatprep.subr.mxu0 0.0
    %981 = vmatpush1.msra.mxu0 0.0
    %982 = vmatprep.subr.mxu0 0.0
    %983 = vmatpush1.msra.mxu0 0.0
    %984 = vmatprep.subr.mxu0 0.0
    %985 = vmatpush1.msra.mxu0 0.0
    %986 = vmatprep.subr.mxu0 0.0
    %987 = vmatpush1.msra.mxu0 0.0
    %988 = vmatprep.subr.mxu0 0.0
    %989 = vmatpush1.msra.mxu0 0.0
    %990 = vmatprep.subr.mxu0 0.0
    %991 = vmatpush1.msra.mxu0 0.0
    %992 = vmatprep.subr.mxu0 0.0
    %993 = vmatpush1.msra.mxu0 0.0
    %994 = vmatprep.subr.mxu0 0.0
    %995 = vmatpush1.msra.mxu0 0.0
    %996 = vmatprep.subr.mxu0 0.0
    %997 = vmatpush1.msra.mxu0 0.0
    %998 = vmatprep.subr.mxu0 0.0
    %999 = vmatpush1.msra.mxu0 0.0
    %1000 = vmatprep.subr.mxu0 0.0
    %1001 = vmatpush1.msra.mxu0 0.0
    %1002 = vmatprep.mubr.f32.mxu0 0.0
    %1003 = vmatmul.mubr.f32.gmra.mrb[0].mxu0 %v936
    %v1004 = vpop.f32.mrb[0].mxu0
    %v1005 = vadd.f32 0.0, %v1004
    %v1006 = vpop.f32.mrb[0].mxu0
    %v1007 = vadd.f32 0.0, %v1006
    %1008 = vdwg.mxu0
    %v1009 = vadd.f32 %v1007, %v930
    %v1010 = vxor.u32 %v1009, 2147483648
    %v1011 = vmul.f32 %v1010, 1.442695
    %v1012 = vpow.pop %v1011
    %v1013 = vadd.f32 %v1012, 1.0
    %v1014 = vrcp.pop %v1013
    %v1015 = vmul.f32 1.0, %v1014
    %v1016 = vtanh.pop %v1009
    %v1017 = vmul.f32 %v1015, %v826
    %1019 = vrot.lane.b32.xlu0 %v1016, 64
    %v1020 = vpop.permute.xlu0 %1019
    %v1022 = vmul.f32 %v1015, %v1020
    %1024 = vrot.lane.b32.xlu0 %v1022, 32
    %v1025 = vpop.permute.xlu0 %1024
    %v1027 = vadd.f32 %v1017, %v1025
    %v1028 = vtanh.pop %v1027
    %1030 = vrot.lane.b32.xlu0 %v1028, 64
    %v1031 = vpop.permute.xlu0 %1030
    %v1033 = vmul.f32 %v1015, %v1031
    %v1034 = vadd.f32 %v101, %v1005
    %v1035 = vxor.u32 %v1034, 2147483648
    %v1036 = vmul.f32 %v1035, 1.442695
    %v1037 = vpow.pop %v1036
    %v1038 = vadd.f32 %v1037, 1.0
    %v1039 = vrcp.pop %v1038
    %v1040 = vmul.f32 1.0, %v1039
    %v1041 = vtanh.pop %v1034
    %v1042 = vmul.f32 %v1040, %v851
    %1044 = vrot.lane.b32.xlu0 %v1041, 64
    %v1045 = vpop.permute.xlu0 %1044
    %v1047 = vmul.f32 %v1040, %v1045
    %1049 = vrot.lane.b32.xlu0 %v1047, 32
    %v1050 = vpop.permute.xlu0 %1049
    %v1052 = vadd.f32 %v1042, %v1050
    %v1053 = vtanh.pop %v1052
    %1055 = vrot.lane.b32.xlu0 %v1053, 64
    %v1056 = vpop.permute.xlu0 %1055
    %v1058 = vmul.f32 %v1040, %v1056
    %1060 = vrot.lane.b32.xlu0 %v1033, 32
    %v1061 = vpop.permute.xlu0 %1060
    %v1062 = vsel %vm131, %v1061, 0
    %1064 = vmatprep.subr.mxu0 0.0
    %1065 = vmatpush1.msra.mxu0 %v44
    %1066 = vmatprep.subr.mxu0 0.0
    %1067 = vmatpush1.msra.mxu0 %v45
    %1068 = vmatprep.subr.mxu0 0.0
    %1069 = vmatpush1.msra.mxu0 %v46
    %1070 = vmatprep.subr.mxu0 0.0
    %1071 = vmatpush1.msra.mxu0 %v47
    %1072 = vmatprep.subr.mxu0 0.0
    %1073 = vmatpush1.msra.mxu0 0.0
    %1074 = vmatprep.subr.mxu0 0.0
    %1075 = vmatpush1.msra.mxu0 0.0
    %1076 = vmatprep.subr.mxu0 0.0
    %1077 = vmatpush1.msra.mxu0 0.0
    %1078 = vmatprep.subr.mxu0 0.0
    %1079 = vmatpush1.msra.mxu0 0.0
    %1080 = vmatprep.subr.mxu0 0.0
    %1081 = vmatpush1.msra.mxu0 0.0
    %1082 = vmatprep.subr.mxu0 0.0
    %1083 = vmatpush1.msra.mxu0 0.0
    %1084 = vmatprep.subr.mxu0 0.0
    %1085 = vmatpush1.msra.mxu0 0.0
    %1086 = vmatprep.subr.mxu0 0.0
    %1087 = vmatpush1.msra.mxu0 0.0
    %1088 = vmatprep.subr.mxu0 0.0
    %1089 = vmatpush1.msra.mxu0 0.0
    %1090 = vmatprep.subr.mxu0 0.0
    %1091 = vmatpush1.msra.mxu0 0.0
    %1092 = vmatprep.subr.mxu0 0.0
    %1093 = vmatpush1.msra.mxu0 0.0
    %1094 = vmatprep.subr.mxu0 0.0
    %1095 = vmatpush1.msra.mxu0 0.0
    %1096 = vmatprep.subr.mxu0 0.0
    %1097 = vmatpush1.msra.mxu0 0.0
    %1098 = vmatprep.subr.mxu0 0.0
    %1099 = vmatpush1.msra.mxu0 0.0
    %1100 = vmatprep.subr.mxu0 0.0
    %1101 = vmatpush1.msra.mxu0 0.0
    %1102 = vmatprep.subr.mxu0 0.0
    %1103 = vmatpush1.msra.mxu0 0.0
    %1104 = vmatprep.subr.mxu0 0.0
    %1105 = vmatpush1.msra.mxu0 0.0
    %1106 = vmatprep.subr.mxu0 0.0
    %1107 = vmatpush1.msra.mxu0 0.0
    %1108 = vmatprep.subr.mxu0 0.0
    %1109 = vmatpush1.msra.mxu0 0.0
    %1110 = vmatprep.subr.mxu0 0.0
    %1111 = vmatpush1.msra.mxu0 0.0
    %1112 = vmatprep.subr.mxu0 0.0
    %1113 = vmatpush1.msra.mxu0 0.0
    %1114 = vmatprep.subr.mxu0 0.0
    %1115 = vmatpush1.msra.mxu0 0.0
    %1116 = vmatprep.subr.mxu0 0.0
    %1117 = vmatpush1.msra.mxu0 0.0
    %1118 = vmatprep.subr.mxu0 0.0
    %1119 = vmatpush1.msra.mxu0 0.0
    %1120 = vmatprep.subr.mxu0 0.0
    %1121 = vmatpush1.msra.mxu0 0.0
    %1122 = vmatprep.subr.mxu0 0.0
    %1123 = vmatpush1.msra.mxu0 0.0
    %1124 = vmatprep.subr.mxu0 0.0
    %1125 = vmatpush1.msra.mxu0 0.0
    %1126 = vmatprep.subr.mxu0 0.0
    %1127 = vmatpush1.msra.mxu0 0.0
    %1128 = vmatprep.mubr.f32.mxu0 0.0
    %1129 = vmatmul.mubr.f32.gmra.mrb[0].mxu0 %v1062
    %v1130 = vpop.f32.mrb[0].mxu0
    %v1131 = vadd.f32 %v35, %v1130
    %v1132 = vpop.f32.mrb[0].mxu0
    %1133 = vdwg.mxu0
    %1135 = vrot.lane.b32.xlu0 %v1058, 32
    %v1136 = vpop.permute.xlu0 %1135
    %v1137 = vsel %vm131, %v1136, 0
    %1139 = vmatprep.subr.mxu0 %v37
    %1140 = vmatpush1.msra.mxu0 %v36
    %1141 = vmatprep.subr.mxu0 %v39
    %1142 = vmatpush1.msra.mxu0 %v38
    %1143 = vmatprep.subr.mxu0 %v41
    %1144 = vmatpush1.msra.mxu0 %v40
    %1145 = vmatprep.subr.mxu0 %v43
    %1146 = vmatpush1.msra.mxu0 %v42
    %1147 = vmatprep.subr.mxu0 0.0
    %1148 = vmatpush1.msra.mxu0 0.0
    %1149 = vmatprep.subr.mxu0 0.0
    %1150 = vmatpush1.msra.mxu0 0.0
    %1151 = vmatprep.subr.mxu0 0.0
    %1152 = vmatpush1.msra.mxu0 0.0
    %1153 = vmatprep.subr.mxu0 0.0
    %1154 = vmatpush1.msra.mxu0 0.0
    %1155 = vmatprep.subr.mxu0 0.0
    %1156 = vmatpush1.msra.mxu0 0.0
    %1157 = vmatprep.subr.mxu0 0.0
    %1158 = vmatpush1.msra.mxu0 0.0
    %1159 = vmatprep.subr.mxu0 0.0
    %1160 = vmatpush1.msra.mxu0 0.0
    %1161 = vmatprep.subr.mxu0 0.0
    %1162 = vmatpush1.msra.mxu0 0.0
    %1163 = vmatprep.subr.mxu0 0.0
    %1164 = vmatpush1.msra.mxu0 0.0
    %1165 = vmatprep.subr.mxu0 0.0
    %1166 = vmatpush1.msra.mxu0 0.0
    %1167 = vmatprep.subr.mxu0 0.0
    %1168 = vmatpush1.msra.mxu0 0.0
    %1169 = vmatprep.subr.mxu0 0.0
    %1170 = vmatpush1.msra.mxu0 0.0
    %1171 = vmatprep.subr.mxu0 0.0
    %1172 = vmatpush1.msra.mxu0 0.0
    %1173 = vmatprep.subr.mxu0 0.0
    %1174 = vmatpush1.msra.mxu0 0.0
    %1175 = vmatprep.subr.mxu0 0.0
    %1176 = vmatpush1.msra.mxu0 0.0
    %1177 = vmatprep.subr.mxu0 0.0
    %1178 = vmatpush1.msra.mxu0 0.0
    %1179 = vmatprep.subr.mxu0 0.0
    %1180 = vmatpush1.msra.mxu0 0.0
    %1181 = vmatprep.subr.mxu0 0.0
    %1182 = vmatpush1.msra.mxu0 0.0
    %1183 = vmatprep.subr.mxu0 0.0
    %1184 = vmatpush1.msra.mxu0 0.0
    %1185 = vmatprep.subr.mxu0 0.0
    %1186 = vmatpush1.msra.mxu0 0.0
    %1187 = vmatprep.subr.mxu0 0.0
    %1188 = vmatpush1.msra.mxu0 0.0
    %1189 = vmatprep.subr.mxu0 0.0
    %1190 = vmatpush1.msra.mxu0 0.0
    %1191 = vmatprep.subr.mxu0 0.0
    %1192 = vmatpush1.msra.mxu0 0.0
    %1193 = vmatprep.subr.mxu0 0.0
    %1194 = vmatpush1.msra.mxu0 0.0
    %1195 = vmatprep.subr.mxu0 0.0
    %1196 = vmatpush1.msra.mxu0 0.0
    %1197 = vmatprep.subr.mxu0 0.0
    %1198 = vmatpush1.msra.mxu0 0.0
    %1199 = vmatprep.subr.mxu0 0.0
    %1200 = vmatpush1.msra.mxu0 0.0
    %1201 = vmatprep.subr.mxu0 0.0
    %1202 = vmatpush1.msra.mxu0 0.0
    %1203 = vmatprep.mubr.f32.mxu0 0.0
    %1204 = vmatmul.mubr.f32.gmra.mrb[0].mxu0 %v1137
    %v1205 = vpop.f32.mrb[0].mxu0
    %v1206 = vadd.f32 0.0, %v1205
    %v1207 = vpop.f32.mrb[0].mxu0
    %v1208 = vadd.f32 0.0, %v1207
    %1209 = vdwg.mxu0
    %v1210 = vadd.f32 %v1208, %v1131
    %v1211 = vxor.u32 %v1210, 2147483648
    %v1212 = vmul.f32 %v1211, 1.442695
    %v1213 = vpow.pop %v1212
    %v1214 = vadd.f32 %v1213, 1.0
    %v1215 = vrcp.pop %v1214
    %v1216 = vmul.f32 1.0, %v1215
    %v1217 = vtanh.pop %v1210
    %v1218 = vmul.f32 %v1216, %v1027
    %1220 = vrot.lane.b32.xlu0 %v1217, 64
    %v1221 = vpop.permute.xlu0 %1220
    %v1223 = vmul.f32 %v1216, %v1221
    %1225 = vrot.lane.b32.xlu0 %v1223, 32
    %v1226 = vpop.permute.xlu0 %1225
    %v1228 = vadd.f32 %v1218, %v1226
    %v1229 = vtanh.pop %v1228
    %1231 = vrot.lane.b32.xlu0 %v1229, 64
    %v1232 = vpop.permute.xlu0 %1231
    %v1234 = vmul.f32 %v1216, %v1232
    %v1235 = vadd.f32 %v102, %v1206
    %v1236 = vxor.u32 %v1235, 2147483648
    %v1237 = vmul.f32 %v1236, 1.442695
    %v1238 = vpow.pop %v1237
    %v1239 = vadd.f32 %v1238, 1.0
    %v1240 = vrcp.pop %v1239
    %v1241 = vmul.f32 1.0, %v1240
    %v1242 = vtanh.pop %v1235
    %v1243 = vmul.f32 %v1241, %v1052
    %1245 = vrot.lane.b32.xlu0 %v1242, 64
    %v1246 = vpop.permute.xlu0 %1245
    %v1248 = vmul.f32 %v1241, %v1246
    %1250 = vrot.lane.b32.xlu0 %v1248, 32
    %v1251 = vpop.permute.xlu0 %1250
    %v1253 = vadd.f32 %v1243, %v1251
    %v1254 = vtanh.pop %v1253
    %1256 = vrot.lane.b32.xlu0 %v1254, 64
    %v1257 = vpop.permute.xlu0 %1256
    %v1259 = vmul.f32 %v1241, %v1257
    %1261 = vrot.lane.b32.xlu0 %v1234, 32
    %v1262 = vpop.permute.xlu0 %1261
    %v1263 = vsel %vm131, %v1262, 0
    %1265 = vmatprep.subr.mxu0 0.0
    %1266 = vmatpush1.msra.mxu0 %v44
    %1267 = vmatprep.subr.mxu0 0.0
    %1268 = vmatpush1.msra.mxu0 %v45
    %1269 = vmatprep.subr.mxu0 0.0
    %1270 = vmatpush1.msra.mxu0 %v46
    %1271 = vmatprep.subr.mxu0 0.0
    %1272 = vmatpush1.msra.mxu0 %v47
    %1273 = vmatprep.subr.mxu0 0.0
    %1274 = vmatpush1.msra.mxu0 0.0
    %1275 = vmatprep.subr.mxu0 0.0
    %1276 = vmatpush1.msra.mxu0 0.0
    %1277 = vmatprep.subr.mxu0 0.0
    %1278 = vmatpush1.msra.mxu0 0.0
    %1279 = vmatprep.subr.mxu0 0.0
    %1280 = vmatpush1.msra.mxu0 0.0
    %1281 = vmatprep.subr.mxu0 0.0
    %1282 = vmatpush1.msra.mxu0 0.0
    %1283 = vmatprep.subr.mxu0 0.0
    %1284 = vmatpush1.msra.mxu0 0.0
    %1285 = vmatprep.subr.mxu0 0.0
    %1286 = vmatpush1.msra.mxu0 0.0
    %1287 = vmatprep.subr.mxu0 0.0
    %1288 = vmatpush1.msra.mxu0 0.0
    %1289 = vmatprep.subr.mxu0 0.0
    %1290 = vmatpush1.msra.mxu0 0.0
    %1291 = vmatprep.subr.mxu0 0.0
    %1292 = vmatpush1.msra.mxu0 0.0
    %1293 = vmatprep.subr.mxu0 0.0
    %1294 = vmatpush1.msra.mxu0 0.0
    %1295 = vmatprep.subr.mxu0 0.0
    %1296 = vmatpush1.msra.mxu0 0.0
    %1297 = vmatprep.subr.mxu0 0.0
    %1298 = vmatpush1.msra.mxu0 0.0
    %1299 = vmatprep.subr.mxu0 0.0
    %1300 = vmatpush1.msra.mxu0 0.0
    %1301 = vmatprep.subr.mxu0 0.0
    %1302 = vmatpush1.msra.mxu0 0.0
    %1303 = vmatprep.subr.mxu0 0.0
    %1304 = vmatpush1.msra.mxu0 0.0
    %1305 = vmatprep.subr.mxu0 0.0
    %1306 = vmatpush1.msra.mxu0 0.0
    %1307 = vmatprep.subr.mxu0 0.0
    %1308 = vmatpush1.msra.mxu0 0.0
    %1309 = vmatprep.subr.mxu0 0.0
    %1310 = vmatpush1.msra.mxu0 0.0
    %1311 = vmatprep.subr.mxu0 0.0
    %1312 = vmatpush1.msra.mxu0 0.0
    %1313 = vmatprep.subr.mxu0 0.0
    %1314 = vmatpush1.msra.mxu0 0.0
    %1315 = vmatprep.subr.mxu0 0.0
    %1316 = vmatpush1.msra.mxu0 0.0
    %1317 = vmatprep.subr.mxu0 0.0
    %1318 = vmatpush1.msra.mxu0 0.0
    %1319 = vmatprep.subr.mxu0 0.0
    %1320 = vmatpush1.msra.mxu0 0.0
    %1321 = vmatprep.subr.mxu0 0.0
    %1322 = vmatpush1.msra.mxu0 0.0
    %1323 = vmatprep.subr.mxu0 0.0
    %1324 = vmatpush1.msra.mxu0 0.0
    %1325 = vmatprep.subr.mxu0 0.0
    %1326 = vmatpush1.msra.mxu0 0.0
    %1327 = vmatprep.subr.mxu0 0.0
    %1328 = vmatpush1.msra.mxu0 0.0
    %1329 = vmatprep.mubr.f32.mxu0 0.0
    %1330 = vmatmul.mubr.f32.gmra.mrb[0].mxu0 %v1263
    %v1331 = vpop.f32.mrb[0].mxu0
    %v1332 = vadd.f32 %v35, %v1331
    %v1333 = vpop.f32.mrb[0].mxu0
    %1334 = vdwg.mxu0
    %1336 = vrot.lane.b32.xlu0 %v1259, 32
    %v1337 = vpop.permute.xlu0 %1336
    %v1338 = vsel %vm131, %v1337, 0
    %1340 = vmatprep.subr.mxu0 %v37
    %1341 = vmatpush1.msra.mxu0 %v36
    %1342 = vmatprep.subr.mxu0 %v39
    %1343 = vmatpush1.msra.mxu0 %v38
    %1344 = vmatprep.subr.mxu0 %v41
    %1345 = vmatpush1.msra.mxu0 %v40
    %1346 = vmatprep.subr.mxu0 %v43
    %1347 = vmatpush1.msra.mxu0 %v42
    %1348 = vmatprep.subr.mxu0 0.0
    %1349 = vmatpush1.msra.mxu0 0.0
    %1350 = vmatprep.subr.mxu0 0.0
    %1351 = vmatpush1.msra.mxu0 0.0
    %1352 = vmatprep.subr.mxu0 0.0
    %1353 = vmatpush1.msra.mxu0 0.0
    %1354 = vmatprep.subr.mxu0 0.0
    %1355 = vmatpush1.msra.mxu0 0.0
    %1356 = vmatprep.subr.mxu0 0.0
    %1357 = vmatpush1.msra.mxu0 0.0
    %1358 = vmatprep.subr.mxu0 0.0
    %1359 = vmatpush1.msra.mxu0 0.0
    %1360 = vmatprep.subr.mxu0 0.0
    %1361 = vmatpush1.msra.mxu0 0.0
    %1362 = vmatprep.subr.mxu0 0.0
    %1363 = vmatpush1.msra.mxu0 0.0
    %1364 = vmatprep.subr.mxu0 0.0
    %1365 = vmatpush1.msra.mxu0 0.0
    %1366 = vmatprep.subr.mxu0 0.0
    %1367 = vmatpush1.msra.mxu0 0.0
    %1368 = vmatprep.subr.mxu0 0.0
    %1369 = vmatpush1.msra.mxu0 0.0
    %1370 = vmatprep.subr.mxu0 0.0
    %1371 = vmatpush1.msra.mxu0 0.0
    %1372 = vmatprep.subr.mxu0 0.0
    %1373 = vmatpush1.msra.mxu0 0.0
    %1374 = vmatprep.subr.mxu0 0.0
    %1375 = vmatpush1.msra.mxu0 0.0
    %1376 = vmatprep.subr.mxu0 0.0
    %1377 = vmatpush1.msra.mxu0 0.0
    %1378 = vmatprep.subr.mxu0 0.0
    %1379 = vmatpush1.msra.mxu0 0.0
    %1380 = vmatprep.subr.mxu0 0.0
    %1381 = vmatpush1.msra.mxu0 0.0
    %1382 = vmatprep.subr.mxu0 0.0
    %1383 = vmatpush1.msra.mxu0 0.0
    %1384 = vmatprep.subr.mxu0 0.0
    %1385 = vmatpush1.msra.mxu0 0.0
    %1386 = vmatprep.subr.mxu0 0.0
    %1387 = vmatpush1.msra.mxu0 0.0
    %1388 = vmatprep.subr.mxu0 0.0
    %1389 = vmatpush1.msra.mxu0 0.0
    %1390 = vmatprep.subr.mxu0 0.0
    %1391 = vmatpush1.msra.mxu0 0.0
    %1392 = vmatprep.subr.mxu0 0.0
    %1393 = vmatpush1.msra.mxu0 0.0
    %1394 = vmatprep.subr.mxu0 0.0
    %1395 = vmatpush1.msra.mxu0 0.0
    %1396 = vmatprep.subr.mxu0 0.0
    %1397 = vmatpush1.msra.mxu0 0.0
    %1398 = vmatprep.subr.mxu0 0.0
    %1399 = vmatpush1.msra.mxu0 0.0
    %1400 = vmatprep.subr.mxu0 0.0
    %1401 = vmatpush1.msra.mxu0 0.0
    %1402 = vmatprep.subr.mxu0 0.0
    %1403 = vmatpush1.msra.mxu0 0.0
    %1404 = vmatprep.mubr.f32.mxu0 0.0
    %1405 = vmatmul.mubr.f32.gmra.mrb[0].mxu0 %v1338
    %v1406 = vpop.f32.mrb[0].mxu0
    %v1407 = vadd.f32 0.0, %v1406
    %v1408 = vpop.f32.mrb[0].mxu0
    %v1409 = vadd.f32 0.0, %v1408
    %1410 = vdwg.mxu0
    %v1411 = vadd.f32 %v1409, %v1332
    %v1412 = vxor.u32 %v1411, 2147483648
    %v1413 = vmul.f32 %v1412, 1.442695
    %v1414 = vpow.pop %v1413
    %v1415 = vadd.f32 %v1414, 1.0
    %v1416 = vrcp.pop %v1415
    %v1417 = vmul.f32 1.0, %v1416
    %v1418 = vtanh.pop %v1411
    %v1419 = vmul.f32 %v1417, %v1228
    %1421 = vrot.lane.b32.xlu0 %v1418, 64
    %v1422 = vpop.permute.xlu0 %1421
    %v1424 = vmul.f32 %v1417, %v1422
    %1426 = vrot.lane.b32.xlu0 %v1424, 32
    %v1427 = vpop.permute.xlu0 %1426
    %v1429 = vadd.f32 %v1419, %v1427
    %v1430 = vtanh.pop %v1429
    %1432 = vrot.lane.b32.xlu0 %v1430, 64
    %v1433 = vpop.permute.xlu0 %1432
    %v1435 = vmul.f32 %v1417, %v1433
    %v1436 = vadd.f32 %v103, %v1407
    %v1437 = vxor.u32 %v1436, 2147483648
    %v1438 = vmul.f32 %v1437, 1.442695
    %v1439 = vpow.pop %v1438
    %v1440 = vadd.f32 %v1439, 1.0
    %v1441 = vrcp.pop %v1440
    %v1442 = vmul.f32 1.0, %v1441
    %v1443 = vtanh.pop %v1436
    %v1444 = vmul.f32 %v1442, %v1253
    %1446 = vrot.lane.b32.xlu0 %v1443, 64
    %v1447 = vpop.permute.xlu0 %1446
    %v1449 = vmul.f32 %v1442, %v1447
    %1451 = vrot.lane.b32.xlu0 %v1449, 32
    %v1452 = vpop.permute.xlu0 %1451
    %v1454 = vadd.f32 %v1444, %v1452
    %v1455 = vtanh.pop %v1454
    %1457 = vrot.lane.b32.xlu0 %v1455, 64
    %v1458 = vpop.permute.xlu0 %1457
    %v1460 = vmul.f32 %v1442, %v1458
    %1462 = vrot.lane.b32.xlu0 %v1435, 32
    %v1463 = vpop.permute.xlu0 %1462
    %v1464 = vsel %vm131, %v1463, 0
    %1466 = vmatprep.subr.mxu0 0.0
    %1467 = vmatpush1.msra.mxu0 %v44
    %1468 = vmatprep.subr.mxu0 0.0
    %1469 = vmatpush1.msra.mxu0 %v45
    %1470 = vmatprep.subr.mxu0 0.0
    %1471 = vmatpush1.msra.mxu0 %v46
    %1472 = vmatprep.subr.mxu0 0.0
    %1473 = vmatpush1.msra.mxu0 %v47
    %1474 = vmatprep.subr.mxu0 0.0
    %1475 = vmatpush1.msra.mxu0 0.0
    %1476 = vmatprep.subr.mxu0 0.0
    %1477 = vmatpush1.msra.mxu0 0.0
    %1478 = vmatprep.subr.mxu0 0.0
    %1479 = vmatpush1.msra.mxu0 0.0
    %1480 = vmatprep.subr.mxu0 0.0
    %1481 = vmatpush1.msra.mxu0 0.0
    %1482 = vmatprep.subr.mxu0 0.0
    %1483 = vmatpush1.msra.mxu0 0.0
    %1484 = vmatprep.subr.mxu0 0.0
    %1485 = vmatpush1.msra.mxu0 0.0
    %1486 = vmatprep.subr.mxu0 0.0
    %1487 = vmatpush1.msra.mxu0 0.0
    %1488 = vmatprep.subr.mxu0 0.0
    %1489 = vmatpush1.msra.mxu0 0.0
    %1490 = vmatprep.subr.mxu0 0.0
    %1491 = vmatpush1.msra.mxu0 0.0
    %1492 = vmatprep.subr.mxu0 0.0
    %1493 = vmatpush1.msra.mxu0 0.0
    %1494 = vmatprep.subr.mxu0 0.0
    %1495 = vmatpush1.msra.mxu0 0.0
    %1496 = vmatprep.subr.mxu0 0.0
    %1497 = vmatpush1.msra.mxu0 0.0
    %1498 = vmatprep.subr.mxu0 0.0
    %1499 = vmatpush1.msra.mxu0 0.0
    %1500 = vmatprep.subr.mxu0 0.0
    %1501 = vmatpush1.msra.mxu0 0.0
    %1502 = vmatprep.subr.mxu0 0.0
    %1503 = vmatpush1.msra.mxu0 0.0
    %1504 = vmatprep.subr.mxu0 0.0
    %1505 = vmatpush1.msra.mxu0 0.0
    %1506 = vmatprep.subr.mxu0 0.0
    %1507 = vmatpush1.msra.mxu0 0.0
    %1508 = vmatprep.subr.mxu0 0.0
    %1509 = vmatpush1.msra.mxu0 0.0
    %1510 = vmatprep.subr.mxu0 0.0
    %1511 = vmatpush1.msra.mxu0 0.0
    %1512 = vmatprep.subr.mxu0 0.0
    %1513 = vmatpush1.msra.mxu0 0.0
    %1514 = vmatprep.subr.mxu0 0.0
    %1515 = vmatpush1.msra.mxu0 0.0
    %1516 = vmatprep.subr.mxu0 0.0
    %1517 = vmatpush1.msra.mxu0 0.0
    %1518 = vmatprep.subr.mxu0 0.0
    %1519 = vmatpush1.msra.mxu0 0.0
    %1520 = vmatprep.subr.mxu0 0.0
    %1521 = vmatpush1.msra.mxu0 0.0
    %1522 = vmatprep.subr.mxu0 0.0
    %1523 = vmatpush1.msra.mxu0 0.0
    %1524 = vmatprep.subr.mxu0 0.0
    %1525 = vmatpush1.msra.mxu0 0.0
    %1526 = vmatprep.subr.mxu0 0.0
    %1527 = vmatpush1.msra.mxu0 0.0
    %1528 = vmatprep.subr.mxu0 0.0
    %1529 = vmatpush1.msra.mxu0 0.0
    %1530 = vmatprep.mubr.f32.mxu0 0.0
    %1531 = vmatmul.mubr.f32.gmra.mrb[0].mxu0 %v1464
    %v1532 = vpop.f32.mrb[0].mxu0
    %v1533 = vadd.f32 %v35, %v1532
    %v1534 = vpop.f32.mrb[0].mxu0
    %1535 = vdwg.mxu0
    %1537 = vrot.lane.b32.xlu0 %v1460, 32
    %v1538 = vpop.permute.xlu0 %1537
    %v1539 = vsel %vm131, %v1538, 0
    %1541 = vmatprep.subr.mxu0 %v37
    %1542 = vmatpush1.msra.mxu0 %v36
    %1543 = vmatprep.subr.mxu0 %v39
    %1544 = vmatpush1.msra.mxu0 %v38
    %1545 = vmatprep.subr.mxu0 %v41
    %1546 = vmatpush1.msra.mxu0 %v40
    %1547 = vmatprep.subr.mxu0 %v43
    %1548 = vmatpush1.msra.mxu0 %v42
    %1549 = vmatprep.subr.mxu0 0.0
    %1550 = vmatpush1.msra.mxu0 0.0
    %1551 = vmatprep.subr.mxu0 0.0
    %1552 = vmatpush1.msra.mxu0 0.0
    %1553 = vmatprep.subr.mxu0 0.0
    %1554 = vmatpush1.msra.mxu0 0.0
    %1555 = vmatprep.subr.mxu0 0.0
    %1556 = vmatpush1.msra.mxu0 0.0
    %1557 = vmatprep.subr.mxu0 0.0
    %1558 = vmatpush1.msra.mxu0 0.0
    %1559 = vmatprep.subr.mxu0 0.0
    %1560 = vmatpush1.msra.mxu0 0.0
    %1561 = vmatprep.subr.mxu0 0.0
    %1562 = vmatpush1.msra.mxu0 0.0
    %1563 = vmatprep.subr.mxu0 0.0
    %1564 = vmatpush1.msra.mxu0 0.0
    %1565 = vmatprep.subr.mxu0 0.0
    %1566 = vmatpush1.msra.mxu0 0.0
    %1567 = vmatprep.subr.mxu0 0.0
    %1568 = vmatpush1.msra.mxu0 0.0
    %1569 = vmatprep.subr.mxu0 0.0
    %1570 = vmatpush1.msra.mxu0 0.0
    %1571 = vmatprep.subr.mxu0 0.0
    %1572 = vmatpush1.msra.mxu0 0.0
    %1573 = vmatprep.subr.mxu0 0.0
    %1574 = vmatpush1.msra.mxu0 0.0
    %1575 = vmatprep.subr.mxu0 0.0
    %1576 = vmatpush1.msra.mxu0 0.0
    %1577 = vmatprep.subr.mxu0 0.0
    %1578 = vmatpush1.msra.mxu0 0.0
    %1579 = vmatprep.subr.mxu0 0.0
    %1580 = vmatpush1.msra.mxu0 0.0
    %1581 = vmatprep.subr.mxu0 0.0
    %1582 = vmatpush1.msra.mxu0 0.0
    %1583 = vmatprep.subr.mxu0 0.0
    %1584 = vmatpush1.msra.mxu0 0.0
    %1585 = vmatprep.subr.mxu0 0.0
    %1586 = vmatpush1.msra.mxu0 0.0
    %1587 = vmatprep.subr.mxu0 0.0
    %1588 = vmatpush1.msra.mxu0 0.0
    %1589 = vmatprep.subr.mxu0 0.0
    %1590 = vmatpush1.msra.mxu0 0.0
    %1591 = vmatprep.subr.mxu0 0.0
    %1592 = vmatpush1.msra.mxu0 0.0
    %1593 = vmatprep.subr.mxu0 0.0
    %1594 = vmatpush1.msra.mxu0 0.0
    %1595 = vmatprep.subr.mxu0 0.0
    %1596 = vmatpush1.msra.mxu0 0.0
    %1597 = vmatprep.subr.mxu0 0.0
    %1598 = vmatpush1.msra.mxu0 0.0
    %1599 = vmatprep.subr.mxu0 0.0
    %1600 = vmatpush1.msra.mxu0 0.0
    %1601 = vmatprep.subr.mxu0 0.0
    %1602 = vmatpush1.msra.mxu0 0.0
    %1603 = vmatprep.subr.mxu0 0.0
    %1604 = vmatpush1.msra.mxu0 0.0
    %1605 = vmatprep.mubr.f32.mxu0 0.0
    %1606 = vmatmul.mubr.f32.gmra.mrb[0].mxu0 %v1539
    %v1607 = vpop.f32.mrb[0].mxu0
    %v1608 = vpop.f32.mrb[0].mxu0
    %v1609 = vadd.f32 0.0, %v1608
    %1610 = vdwg.mxu0
    %v1611 = vadd.f32 %v1609, %v1533
    %v1612 = vxor.u32 %v1611, 2147483648
    %v1613 = vmul.f32 %v1612, 1.442695
    %v1614 = vpow.pop %v1613
    %v1615 = vadd.f32 %v1614, 1.0
    %v1616 = vrcp.pop %v1615
    %v1617 = vmul.f32 1.0, %v1616
    %v1618 = vtanh.pop %v1611
    %v1619 = vmul.f32 %v1617, %v1429
    %1621 = vrot.lane.b32.xlu0 %v1618, 64
    %v1622 = vpop.permute.xlu0 %1621
    %v1624 = vmul.f32 %v1617, %v1622
    %1626 = vrot.lane.b32.xlu0 %v1624, 32
    %v1627 = vpop.permute.xlu0 %1626
    %v1629 = vadd.f32 %v1619, %v1627
    %v1630 = vtanh.pop %v1629
    %1632 = vrot.lane.b32.xlu0 %v1630, 64
    %v1633 = vpop.permute.xlu0 %1632
    %v1635 = vmul.f32 %v1617, %v1633
    %v1636 = vld [vmem:[#allocation2 + $0xc0] sm:$0xff]
    %v1637 = vld [vmem:[#allocation2 + $0xd0] sm:$0xff]
    %v1638 = vld [vmem:[#allocation2 + $0xe0] sm:$0xff]
    %v1639 = vld [vmem:[#allocation2 + $0xf0] sm:$0xff]
    %v1640 = vld [vmem:[#allocation2 + $0x120] ss:$0 sm:$0xff]
    %v1641 = vld [vmem:[#allocation2 + $0x128] ss:$0 sm:$0xff]
    %v1642 = vld [vmem:[#allocation2 + $0x40] sm:$0xff]
    %v1643 = vld [vmem:[#allocation2 + $0x48] sm:$0xff]
    %v1644 = vld [vmem:[#allocation2 + $0x50] sm:$0xff]
    %v1645 = vld [vmem:[#allocation2 + $0x58] sm:$0xff]
    %v1646 = vld [vmem:[#allocation2 + $0x60] sm:$0xff]
    %v1647 = vld [vmem:[#allocation2 + $0x68] sm:$0xff]
    %v1648 = vld [vmem:[#allocation2 + $0x70] sm:$0xff]
    %v1649 = vld [vmem:[#allocation2 + $0x78] sm:$0xff]
    %v1650 = vld [vmem:[#allocation2 + $0x88] sm:$0xff]
    %v1651 = vld [vmem:[#allocation2 + $0x98] sm:$0xff]
    %v1652 = vld [vmem:[#allocation2 + $0xa8] sm:$0xff]
    %v1653 = vld [vmem:[#allocation2 + $0xb8] sm:$0xff]
    %1655 = vrot.lane.b32.xlu0 %v1635, 32
    %v1656 = vpop.permute.xlu0 %1655
    %v1657 = vsel %vm131, %v1656, 0
    %1659 = vmatprep.subr.mxu0 0.0
    %1660 = vmatpush1.msra.mxu0 %v1636
    %1661 = vmatprep.subr.mxu0 0.0
    %1662 = vmatpush1.msra.mxu0 %v1637
    %1663 = vmatprep.subr.mxu0 0.0
    %1664 = vmatpush1.msra.mxu0 %v1638
    %1665 = vmatprep.subr.mxu0 0.0
    %1666 = vmatpush1.msra.mxu0 %v1639
    %1667 = vmatprep.subr.mxu0 0.0
    %1668 = vmatpush1.msra.mxu0 0.0
    %1669 = vmatprep.subr.mxu0 0.0
    %1670 = vmatpush1.msra.mxu0 0.0
    %1671 = vmatprep.subr.mxu0 0.0
    %1672 = vmatpush1.msra.mxu0 0.0
    %1673 = vmatprep.subr.mxu0 0.0
    %1674 = vmatpush1.msra.mxu0 0.0
    %1675 = vmatprep.subr.mxu0 0.0
    %1676 = vmatpush1.msra.mxu0 0.0
    %1677 = vmatprep.subr.mxu0 0.0
    %1678 = vmatpush1.msra.mxu0 0.0
    %1679 = vmatprep.subr.mxu0 0.0
    %1680 = vmatpush1.msra.mxu0 0.0
    %1681 = vmatprep.subr.mxu0 0.0
    %1682 = vmatpush1.msra.mxu0 0.0
    %1683 = vmatprep.subr.mxu0 0.0
    %1684 = vmatpush1.msra.mxu0 0.0
    %1685 = vmatprep.subr.mxu0 0.0
    %1686 = vmatpush1.msra.mxu0 0.0
    %1687 = vmatprep.subr.mxu0 0.0
    %1688 = vmatpush1.msra.mxu0 0.0
    %1689 = vmatprep.subr.mxu0 0.0
    %1690 = vmatpush1.msra.mxu0 0.0
    %1691 = vmatprep.subr.mxu0 0.0
    %1692 = vmatpush1.msra.mxu0 0.0
    %1693 = vmatprep.subr.mxu0 0.0
    %1694 = vmatpush1.msra.mxu0 0.0
    %1695 = vmatprep.subr.mxu0 0.0
    %1696 = vmatpush1.msra.mxu0 0.0
    %1697 = vmatprep.subr.mxu0 0.0
    %1698 = vmatpush1.msra.mxu0 0.0
    %1699 = vmatprep.subr.mxu0 0.0
    %1700 = vmatpush1.msra.mxu0 0.0
    %1701 = vmatprep.subr.mxu0 0.0
    %1702 = vmatpush1.msra.mxu0 0.0
    %1703 = vmatprep.subr.mxu0 0.0
    %1704 = vmatpush1.msra.mxu0 0.0
    %1705 = vmatprep.subr.mxu0 0.0
    %1706 = vmatpush1.msra.mxu0 0.0
    %1707 = vmatprep.subr.mxu0 0.0
    %1708 = vmatpush1.msra.mxu0 0.0
    %1709 = vmatprep.subr.mxu0 0.0
    %1710 = vmatpush1.msra.mxu0 0.0
    %1711 = vmatprep.subr.mxu0 0.0
    %1712 = vmatpush1.msra.mxu0 0.0
    %1713 = vmatprep.subr.mxu0 0.0
    %1714 = vmatpush1.msra.mxu0 0.0
    %1715 = vmatprep.subr.mxu0 0.0
    %1716 = vmatpush1.msra.mxu0 0.0
    %1717 = vmatprep.subr.mxu0 0.0
    %1718 = vmatpush1.msra.mxu0 0.0
    %1719 = vmatprep.subr.mxu0 0.0
    %1720 = vmatpush1.msra.mxu0 0.0
    %1721 = vmatprep.subr.mxu0 0.0
    %1722 = vmatpush1.msra.mxu0 0.0
    %1723 = vmatprep.mubr.f32.mxu0 0.0
    %1724 = vmatmul.mubr.f32.gmra.mrb[0].mxu0 %v1657
    %v1725 = vpop.f32.mrb[0].mxu0
    %v1726 = vadd.f32 %v1640, %v1725
    %v1727 = vpop.f32.mrb[0].mxu0
    %1728 = vdwg.mxu0
    %1729 = vmatprep.subr.mxu0 %v1643
    %1730 = vmatpush1.msra.mxu0 %v1642
    %1731 = vmatprep.subr.mxu0 %v1645
    %1732 = vmatpush1.msra.mxu0 %v1644
    %1733 = vmatprep.subr.mxu0 %v1647
    %1734 = vmatpush1.msra.mxu0 %v1646
    %1735 = vmatprep.subr.mxu0 %v1649
    %1736 = vmatpush1.msra.mxu0 %v1648
    %1737 = vmatprep.subr.mxu0 0.0
    %1738 = vmatpush1.msra.mxu0 0.0
    %1739 = vmatprep.subr.mxu0 0.0
    %1740 = vmatpush1.msra.mxu0 0.0
    %1741 = vmatprep.subr.mxu0 0.0
    %1742 = vmatpush1.msra.mxu0 0.0
    %1743 = vmatprep.subr.mxu0 0.0
    %1744 = vmatpush1.msra.mxu0 0.0
    %1745 = vmatprep.subr.mxu0 0.0
    %1746 = vmatpush1.msra.mxu0 0.0
    %1747 = vmatprep.subr.mxu0 0.0
    %1748 = vmatpush1.msra.mxu0 0.0
    %1749 = vmatprep.subr.mxu0 0.0
    %1750 = vmatpush1.msra.mxu0 0.0
    %1751 = vmatprep.subr.mxu0 0.0
    %1752 = vmatpush1.msra.mxu0 0.0
    %1753 = vmatprep.subr.mxu0 0.0
    %1754 = vmatpush1.msra.mxu0 0.0
    %1755 = vmatprep.subr.mxu0 0.0
    %1756 = vmatpush1.msra.mxu0 0.0
    %1757 = vmatprep.subr.mxu0 0.0
    %1758 = vmatpush1.msra.mxu0 0.0
    %1759 = vmatprep.subr.mxu0 0.0
    %1760 = vmatpush1.msra.mxu0 0.0
    %1761 = vmatprep.subr.mxu0 0.0
    %1762 = vmatpush1.msra.mxu0 0.0
    %1763 = vmatprep.subr.mxu0 0.0
    %1764 = vmatpush1.msra.mxu0 0.0
    %1765 = vmatprep.subr.mxu0 0.0
    %1766 = vmatpush1.msra.mxu0 0.0
    %1767 = vmatprep.subr.mxu0 0.0
    %1768 = vmatpush1.msra.mxu0 0.0
    %1769 = vmatprep.subr.mxu0 0.0
    %1770 = vmatpush1.msra.mxu0 0.0
    %1771 = vmatprep.subr.mxu0 0.0
    %1772 = vmatpush1.msra.mxu0 0.0
    %1773 = vmatprep.subr.mxu0 0.0
    %1774 = vmatpush1.msra.mxu0 0.0
    %1775 = vmatprep.subr.mxu0 0.0
    %1776 = vmatpush1.msra.mxu0 0.0
    %1777 = vmatprep.subr.mxu0 0.0
    %1778 = vmatpush1.msra.mxu0 0.0
    %1779 = vmatprep.subr.mxu0 0.0
    %1780 = vmatpush1.msra.mxu0 0.0
    %1781 = vmatprep.subr.mxu0 0.0
    %1782 = vmatpush1.msra.mxu0 0.0
    %1783 = vmatprep.subr.mxu0 0.0
    %1784 = vmatpush1.msra.mxu0 0.0
    %1785 = vmatprep.subr.mxu0 0.0
    %1786 = vmatpush1.msra.mxu0 0.0
    %1787 = vmatprep.subr.mxu0 0.0
    %1788 = vmatpush1.msra.mxu0 0.0
    %1789 = vmatprep.subr.mxu0 0.0
    %1790 = vmatpush1.msra.mxu0 0.0
    %1791 = vmatprep.subr.mxu0 0.0
    %1792 = vmatpush1.msra.mxu0 0.0
    %1793 = vmatprep.mubr.f32.mxu0 0.0
    %1794 = vmatmul.mubr.f32.gmra.mrb[0].mxu0 %v1539
    %v1795 = vpop.f32.mrb[0].mxu0
    %v1796 = vadd.f32 0.0, %v1795
    %v1797 = vpop.f32.mrb[0].mxu0
    %1798 = vdwg.mxu0
    %v1799 = vadd.f32 %v1726, %v1796
    %v1800 = vxor.u32 %v1799, 2147483648
    %v1801 = vmul.f32 %v1800, 1.442695
    %v1802 = vpow.pop %v1801
    %v1803 = vadd.f32 %v1802, 1.0
    %v1804 = vrcp.pop %v1803
    %v1805 = vmul.f32 1.0, %v1804
    %v1806 = vtanh.pop %v1799
    %v1807 = vmul.f32 %v1805, %v1454
    %1809 = vrot.lane.b32.xlu0 %v1806, 64
    %v1810 = vpop.permute.xlu0 %1809
    %v1812 = vmul.f32 %v1805, %v1810
    %1814 = vrot.lane.b32.xlu0 %v1812, 32
    %v1815 = vpop.permute.xlu0 %1814
    %v1817 = vadd.f32 %v1807, %v1815
    %v1818 = vtanh.pop %v1817
    %1820 = vrot.lane.b32.xlu0 %v1818, 64
    %v1821 = vpop.permute.xlu0 %1820
    %v1823 = vmul.f32 %v1805, %v1821
    %1824 = vmatprep.subr.mxu0 0.0
    %1825 = vmatpush1.msra.mxu0 %v1650
    %1826 = vmatprep.subr.mxu0 0.0
    %1827 = vmatpush1.msra.mxu0 %v1651
    %1828 = vmatprep.subr.mxu0 0.0
    %1829 = vmatpush1.msra.mxu0 %v1652
    %1830 = vmatprep.subr.mxu0 0.0
    %1831 = vmatpush1.msra.mxu0 %v1653
    %1832 = vmatprep.subr.mxu0 0.0
    %1833 = vmatpush1.msra.mxu0 0.0
    %1834 = vmatprep.subr.mxu0 0.0
    %1835 = vmatpush1.msra.mxu0 0.0
    %1836 = vmatprep.subr.mxu0 0.0
    %1837 = vmatpush1.msra.mxu0 0.0
    %1838 = vmatprep.subr.mxu0 0.0
    %1839 = vmatpush1.msra.mxu0 0.0
    %1840 = vmatprep.subr.mxu0 0.0
    %1841 = vmatpush1.msra.mxu0 0.0
    %1842 = vmatprep.subr.mxu0 0.0
    %1843 = vmatpush1.msra.mxu0 0.0
    %1844 = vmatprep.subr.mxu0 0.0
    %1845 = vmatpush1.msra.mxu0 0.0
    %1846 = vmatprep.subr.mxu0 0.0
    %1847 = vmatpush1.msra.mxu0 0.0
    %1848 = vmatprep.subr.mxu0 0.0
    %1849 = vmatpush1.msra.mxu0 0.0
    %1850 = vmatprep.subr.mxu0 0.0
    %1851 = vmatpush1.msra.mxu0 0.0
    %1852 = vmatprep.subr.mxu0 0.0
    %1853 = vmatpush1.msra.mxu0 0.0
    %1854 = vmatprep.subr.mxu0 0.0
    %1855 = vmatpush1.msra.mxu0 0.0
    %1856 = vmatprep.subr.mxu0 0.0
    %1857 = vmatpush1.msra.mxu0 0.0
    %1858 = vmatprep.subr.mxu0 0.0
    %1859 = vmatpush1.msra.mxu0 0.0
    %1860 = vmatprep.subr.mxu0 0.0
    %1861 = vmatpush1.msra.mxu0 0.0
    %1862 = vmatprep.subr.mxu0 0.0
    %1863 = vmatpush1.msra.mxu0 0.0
    %1864 = vmatprep.subr.mxu0 0.0
    %1865 = vmatpush1.msra.mxu0 0.0
    %1866 = vmatprep.subr.mxu0 0.0
    %1867 = vmatpush1.msra.mxu0 0.0
    %1868 = vmatprep.subr.mxu0 0.0
    %1869 = vmatpush1.msra.mxu0 0.0
    %1870 = vmatprep.subr.mxu0 0.0
    %1871 = vmatpush1.msra.mxu0 0.0
    %1872 = vmatprep.subr.mxu0 0.0
    %1873 = vmatpush1.msra.mxu0 0.0
    %1874 = vmatprep.subr.mxu0 0.0
    %1875 = vmatpush1.msra.mxu0 0.0
    %1876 = vmatprep.subr.mxu0 0.0
    %1877 = vmatpush1.msra.mxu0 0.0
    %1878 = vmatprep.subr.mxu0 0.0
    %1879 = vmatpush1.msra.mxu0 0.0
    %1880 = vmatprep.subr.mxu0 0.0
    %1881 = vmatpush1.msra.mxu0 0.0
    %1882 = vmatprep.subr.mxu0 0.0
    %1883 = vmatpush1.msra.mxu0 0.0
    %1884 = vmatprep.subr.mxu0 0.0
    %1885 = vmatpush1.msra.mxu0 0.0
    %1886 = vmatprep.subr.mxu0 0.0
    %1887 = vmatpush1.msra.mxu0 0.0
    %1888 = vmatprep.mubr.f32.mxu0 0.0
    %1889 = vmatmul.mubr.f32.gmra.mrb[0].mxu0 %v1657
    %v1890 = vpop.f32.mrb[0].mxu0
    %v1891 = vadd.f32 %v1641, %v1890
    %v1892 = vpop.f32.mrb[0].mxu0
    %1893 = vdwg.mxu0
    %1895 = vrot.lane.b32.xlu0 %v1823, 32
    %v1896 = vpop.permute.xlu0 %1895
    %v1897 = vsel %vm131, %v1896, 0
    %1899 = vmatprep.subr.mxu0 %v1643
    %1900 = vmatpush1.msra.mxu0 %v1642
    %1901 = vmatprep.subr.mxu0 %v1645
    %1902 = vmatpush1.msra.mxu0 %v1644
    %1903 = vmatprep.subr.mxu0 %v1647
    %1904 = vmatpush1.msra.mxu0 %v1646
    %1905 = vmatprep.subr.mxu0 %v1649
    %1906 = vmatpush1.msra.mxu0 %v1648
    %1907 = vmatprep.subr.mxu0 0.0
    %1908 = vmatpush1.msra.mxu0 0.0
    %1909 = vmatprep.subr.mxu0 0.0
    %1910 = vmatpush1.msra.mxu0 0.0
    %1911 = vmatprep.subr.mxu0 0.0
    %1912 = vmatpush1.msra.mxu0 0.0
    %1913 = vmatprep.subr.mxu0 0.0
    %1914 = vmatpush1.msra.mxu0 0.0
    %1915 = vmatprep.subr.mxu0 0.0
    %1916 = vmatpush1.msra.mxu0 0.0
    %1917 = vmatprep.subr.mxu0 0.0
    %1918 = vmatpush1.msra.mxu0 0.0
    %1919 = vmatprep.subr.mxu0 0.0
    %1920 = vmatpush1.msra.mxu0 0.0
    %1921 = vmatprep.subr.mxu0 0.0
    %1922 = vmatpush1.msra.mxu0 0.0
    %1923 = vmatprep.subr.mxu0 0.0
    %1924 = vmatpush1.msra.mxu0 0.0
    %1925 = vmatprep.subr.mxu0 0.0
    %1926 = vmatpush1.msra.mxu0 0.0
    %1927 = vmatprep.subr.mxu0 0.0
    %1928 = vmatpush1.msra.mxu0 0.0
    %1929 = vmatprep.subr.mxu0 0.0
    %1930 = vmatpush1.msra.mxu0 0.0
    %1931 = vmatprep.subr.mxu0 0.0
    %1932 = vmatpush1.msra.mxu0 0.0
    %1933 = vmatprep.subr.mxu0 0.0
    %1934 = vmatpush1.msra.mxu0 0.0
    %1935 = vmatprep.subr.mxu0 0.0
    %1936 = vmatpush1.msra.mxu0 0.0
    %1937 = vmatprep.subr.mxu0 0.0
    %1938 = vmatpush1.msra.mxu0 0.0
    %1939 = vmatprep.subr.mxu0 0.0
    %1940 = vmatpush1.msra.mxu0 0.0
    %1941 = vmatprep.subr.mxu0 0.0
    %1942 = vmatpush1.msra.mxu0 0.0
    %1943 = vmatprep.subr.mxu0 0.0
    %1944 = vmatpush1.msra.mxu0 0.0
    %1945 = vmatprep.subr.mxu0 0.0
    %1946 = vmatpush1.msra.mxu0 0.0
    %1947 = vmatprep.subr.mxu0 0.0
    %1948 = vmatpush1.msra.mxu0 0.0
    %1949 = vmatprep.subr.mxu0 0.0
    %1950 = vmatpush1.msra.mxu0 0.0
    %1951 = vmatprep.subr.mxu0 0.0
    %1952 = vmatpush1.msra.mxu0 0.0
    %1953 = vmatprep.subr.mxu0 0.0
    %1954 = vmatpush1.msra.mxu0 0.0
    %1955 = vmatprep.subr.mxu0 0.0
    %1956 = vmatpush1.msra.mxu0 0.0
    %1957 = vmatprep.subr.mxu0 0.0
    %1958 = vmatpush1.msra.mxu0 0.0
    %1959 = vmatprep.subr.mxu0 0.0
    %1960 = vmatpush1.msra.mxu0 0.0
    %1961 = vmatprep.subr.mxu0 0.0
    %1962 = vmatpush1.msra.mxu0 0.0
    %1963 = vmatprep.mubr.f32.mxu0 0.0
    %1964 = vmatmul.mubr.f32.gmra.mrb[0].mxu0 %v1897
    %v1965 = vpop.f32.mrb[0].mxu0
    %v1966 = vadd.f32 0.0, %v1965
    %v1967 = vpop.f32.mrb[0].mxu0
    %v1968 = vadd.f32 0.0, %v1967
    %1969 = vdwg.mxu0
    %v1970 = vadd.f32 %v1968, %v1891
    %v1971 = vxor.u32 %v1970, 2147483648
    %v1972 = vmul.f32 %v1971, 1.442695
    %v1973 = vpow.pop %v1972
    %v1974 = vadd.f32 %v1973, 1.0
    %v1975 = vrcp.pop %v1974
    %v1976 = vmul.f32 1.0, %v1975
    %v1977 = vtanh.pop %v1970
    %v1978 = vmul.f32 %v1976, %v1629
    %1980 = vrot.lane.b32.xlu0 %v1977, 64
    %v1981 = vpop.permute.xlu0 %1980
    %v1983 = vmul.f32 %v1976, %v1981
    %1985 = vrot.lane.b32.xlu0 %v1983, 32
    %v1986 = vpop.permute.xlu0 %1985
    %v1988 = vadd.f32 %v1978, %v1986
    %v1989 = vtanh.pop %v1988
    %1991 = vrot.lane.b32.xlu0 %v1989, 64
    %v1992 = vpop.permute.xlu0 %1991
    %v1994 = vmul.f32 %v1976, %v1992
    %v1995 = vadd.f32 %v1726, %v1966
    %v1996 = vxor.u32 %v1995, 2147483648
    %v1997 = vmul.f32 %v1996, 1.442695
    %v1998 = vpow.pop %v1997
    %v1999 = vadd.f32 %v1998, 1.0
    %v2000 = vrcp.pop %v1999
    %v2001 = vmul.f32 1.0, %v2000
    %v2002 = vtanh.pop %v1995
    %v2003 = vmul.f32 %v2001, %v1817
    %2005 = vrot.lane.b32.xlu0 %v2002, 64
    %v2006 = vpop.permute.xlu0 %2005
    %v2008 = vmul.f32 %v2001, %v2006
    %2010 = vrot.lane.b32.xlu0 %v2008, 32
    %v2011 = vpop.permute.xlu0 %2010
    %v2013 = vadd.f32 %v2003, %v2011
    %v2014 = vtanh.pop %v2013
    %2016 = vrot.lane.b32.xlu0 %v2014, 64
    %v2017 = vpop.permute.xlu0 %2016
    %v2019 = vmul.f32 %v2001, %v2017
    %2021 = vrot.lane.b32.xlu0 %v1994, 32
    %v2022 = vpop.permute.xlu0 %2021
    %v2023 = vsel %vm131, %v2022, 0
    %2025 = vmatprep.subr.mxu0 0.0
    %2026 = vmatpush1.msra.mxu0 %v1650
    %2027 = vmatprep.subr.mxu0 0.0
    %2028 = vmatpush1.msra.mxu0 %v1651
    %2029 = vmatprep.subr.mxu0 0.0
    %2030 = vmatpush1.msra.mxu0 %v1652
    %2031 = vmatprep.subr.mxu0 0.0
    %2032 = vmatpush1.msra.mxu0 %v1653
    %2033 = vmatprep.subr.mxu0 0.0
    %2034 = vmatpush1.msra.mxu0 0.0
    %2035 = vmatprep.subr.mxu0 0.0
    %2036 = vmatpush1.msra.mxu0 0.0
    %2037 = vmatprep.subr.mxu0 0.0
    %2038 = vmatpush1.msra.mxu0 0.0
    %2039 = vmatprep.subr.mxu0 0.0
    %2040 = vmatpush1.msra.mxu0 0.0
    %2041 = vmatprep.subr.mxu0 0.0
    %2042 = vmatpush1.msra.mxu0 0.0
    %2043 = vmatprep.subr.mxu0 0.0
    %2044 = vmatpush1.msra.mxu0 0.0
    %2045 = vmatprep.subr.mxu0 0.0
    %2046 = vmatpush1.msra.mxu0 0.0
    %2047 = vmatprep.subr.mxu0 0.0
    %2048 = vmatpush1.msra.mxu0 0.0
    %2049 = vmatprep.subr.mxu0 0.0
    %2050 = vmatpush1.msra.mxu0 0.0
    %2051 = vmatprep.subr.mxu0 0.0
    %2052 = vmatpush1.msra.mxu0 0.0
    %2053 = vmatprep.subr.mxu0 0.0
    %2054 = vmatpush1.msra.mxu0 0.0
    %2055 = vmatprep.subr.mxu0 0.0
    %2056 = vmatpush1.msra.mxu0 0.0
    %2057 = vmatprep.subr.mxu0 0.0
    %2058 = vmatpush1.msra.mxu0 0.0
    %2059 = vmatprep.subr.mxu0 0.0
    %2060 = vmatpush1.msra.mxu0 0.0
    %2061 = vmatprep.subr.mxu0 0.0
    %2062 = vmatpush1.msra.mxu0 0.0
    %2063 = vmatprep.subr.mxu0 0.0
    %2064 = vmatpush1.msra.mxu0 0.0
    %2065 = vmatprep.subr.mxu0 0.0
    %2066 = vmatpush1.msra.mxu0 0.0
    %2067 = vmatprep.subr.mxu0 0.0
    %2068 = vmatpush1.msra.mxu0 0.0
    %2069 = vmatprep.subr.mxu0 0.0
    %2070 = vmatpush1.msra.mxu0 0.0
    %2071 = vmatprep.subr.mxu0 0.0
    %2072 = vmatpush1.msra.mxu0 0.0
    %2073 = vmatprep.subr.mxu0 0.0
    %2074 = vmatpush1.msra.mxu0 0.0
    %2075 = vmatprep.subr.mxu0 0.0
    %2076 = vmatpush1.msra.mxu0 0.0
    %2077 = vmatprep.subr.mxu0 0.0
    %2078 = vmatpush1.msra.mxu0 0.0
    %2079 = vmatprep.subr.mxu0 0.0
    %2080 = vmatpush1.msra.mxu0 0.0
    %2081 = vmatprep.subr.mxu0 0.0
    %2082 = vmatpush1.msra.mxu0 0.0
    %2083 = vmatprep.subr.mxu0 0.0
    %2084 = vmatpush1.msra.mxu0 0.0
    %2085 = vmatprep.subr.mxu0 0.0
    %2086 = vmatpush1.msra.mxu0 0.0
    %2087 = vmatprep.subr.mxu0 0.0
    %2088 = vmatpush1.msra.mxu0 0.0
    %2089 = vmatprep.mubr.f32.mxu0 0.0
    %2090 = vmatmul.mubr.f32.gmra.mrb[0].mxu0 %v2023
    %v2091 = vpop.f32.mrb[0].mxu0
    %v2092 = vadd.f32 %v1641, %v2091
    %v2093 = vpop.f32.mrb[0].mxu0
    %2094 = vdwg.mxu0
    %2096 = vrot.lane.b32.xlu0 %v2019, 32
    %v2097 = vpop.permute.xlu0 %2096
    %v2098 = vsel %vm131, %v2097, 0
    %2100 = vmatprep.subr.mxu0 %v1643
    %2101 = vmatpush1.msra.mxu0 %v1642
    %2102 = vmatprep.subr.mxu0 %v1645
    %2103 = vmatpush1.msra.mxu0 %v1644
    %2104 = vmatprep.subr.mxu0 %v1647
    %2105 = vmatpush1.msra.mxu0 %v1646
    %2106 = vmatprep.subr.mxu0 %v1649
    %2107 = vmatpush1.msra.mxu0 %v1648
    %2108 = vmatprep.subr.mxu0 0.0
    %2109 = vmatpush1.msra.mxu0 0.0
    %2110 = vmatprep.subr.mxu0 0.0
    %2111 = vmatpush1.msra.mxu0 0.0
    %2112 = vmatprep.subr.mxu0 0.0
    %2113 = vmatpush1.msra.mxu0 0.0
    %2114 = vmatprep.subr.mxu0 0.0
    %2115 = vmatpush1.msra.mxu0 0.0
    %2116 = vmatprep.subr.mxu0 0.0
    %2117 = vmatpush1.msra.mxu0 0.0
    %2118 = vmatprep.subr.mxu0 0.0
    %2119 = vmatpush1.msra.mxu0 0.0
    %2120 = vmatprep.subr.mxu0 0.0
    %2121 = vmatpush1.msra.mxu0 0.0
    %2122 = vmatprep.subr.mxu0 0.0
    %2123 = vmatpush1.msra.mxu0 0.0
    %2124 = vmatprep.subr.mxu0 0.0
    %2125 = vmatpush1.msra.mxu0 0.0
    %2126 = vmatprep.subr.mxu0 0.0
    %2127 = vmatpush1.msra.mxu0 0.0
    %2128 = vmatprep.subr.mxu0 0.0
    %2129 = vmatpush1.msra.mxu0 0.0
    %2130 = vmatprep.subr.mxu0 0.0
    %2131 = vmatpush1.msra.mxu0 0.0
    %2132 = vmatprep.subr.mxu0 0.0
    %2133 = vmatpush1.msra.mxu0 0.0
    %2134 = vmatprep.subr.mxu0 0.0
    %2135 = vmatpush1.msra.mxu0 0.0
    %2136 = vmatprep.subr.mxu0 0.0
    %2137 = vmatpush1.msra.mxu0 0.0
    %2138 = vmatprep.subr.mxu0 0.0
    %2139 = vmatpush1.msra.mxu0 0.0
    %2140 = vmatprep.subr.mxu0 0.0
    %2141 = vmatpush1.msra.mxu0 0.0
    %2142 = vmatprep.subr.mxu0 0.0
    %2143 = vmatpush1.msra.mxu0 0.0
    %2144 = vmatprep.subr.mxu0 0.0
    %2145 = vmatpush1.msra.mxu0 0.0
    %2146 = vmatprep.subr.mxu0 0.0
    %2147 = vmatpush1.msra.mxu0 0.0
    %2148 = vmatprep.subr.mxu0 0.0
    %2149 = vmatpush1.msra.mxu0 0.0
    %2150 = vmatprep.subr.mxu0 0.0
    %2151 = vmatpush1.msra.mxu0 0.0
    %2152 = vmatprep.subr.mxu0 0.0
    %2153 = vmatpush1.msra.mxu0 0.0
    %2154 = vmatprep.subr.mxu0 0.0
    %2155 = vmatpush1.msra.mxu0 0.0
    %2156 = vmatprep.subr.mxu0 0.0
    %2157 = vmatpush1.msra.mxu0 0.0
    %2158 = vmatprep.subr.mxu0 0.0
    %2159 = vmatpush1.msra.mxu0 0.0
    %2160 = vmatprep.subr.mxu0 0.0
    %2161 = vmatpush1.msra.mxu0 0.0
    %2162 = vmatprep.subr.mxu0 0.0
    %2163 = vmatpush1.msra.mxu0 0.0
    %2164 = vmatprep.mubr.f32.mxu0 0.0
    %2165 = vmatmul.mubr.f32.gmra.mrb[0].mxu0 %v2098
    %v2166 = vpop.f32.mrb[0].mxu0
    %v2167 = vadd.f32 0.0, %v2166
    %v2168 = vpop.f32.mrb[0].mxu0
    %v2169 = vadd.f32 0.0, %v2168
    %2170 = vdwg.mxu0
    %v2171 = vadd.f32 %v2169, %v2092
    %v2172 = vxor.u32 %v2171, 2147483648
    %v2173 = vmul.f32 %v2172, 1.442695
    %v2174 = vpow.pop %v2173
    %v2175 = vadd.f32 %v2174, 1.0
    %v2176 = vrcp.pop %v2175
    %v2177 = vmul.f32 1.0, %v2176
    %v2178 = vtanh.pop %v2171
    %v2179 = vmul.f32 %v2177, %v1988
    %2181 = vrot.lane.b32.xlu0 %v2178, 64
    %v2182 = vpop.permute.xlu0 %2181
    %v2184 = vmul.f32 %v2177, %v2182
    %2186 = vrot.lane.b32.xlu0 %v2184, 32
    %v2187 = vpop.permute.xlu0 %2186
    %v2189 = vadd.f32 %v2179, %v2187
    %v2190 = vtanh.pop %v2189
    %2192 = vrot.lane.b32.xlu0 %v2190, 64
    %v2193 = vpop.permute.xlu0 %2192
    %v2195 = vmul.f32 %v2177, %v2193
    %v2196 = vadd.f32 %v1726, %v2167
    %v2197 = vxor.u32 %v2196, 2147483648
    %v2198 = vmul.f32 %v2197, 1.442695
    %v2199 = vpow.pop %v2198
    %v2200 = vadd.f32 %v2199, 1.0
    %v2201 = vrcp.pop %v2200
    %v2202 = vmul.f32 1.0, %v2201
    %v2203 = vtanh.pop %v2196
    %v2204 = vmul.f32 %v2202, %v2013
    %2206 = vrot.lane.b32.xlu0 %v2203, 64
    %v2207 = vpop.permute.xlu0 %2206
    %v2209 = vmul.f32 %v2202, %v2207
    %2211 = vrot.lane.b32.xlu0 %v2209, 32
    %v2212 = vpop.permute.xlu0 %2211
    %v2214 = vadd.f32 %v2204, %v2212
    %v2215 = vtanh.pop %v2214
    %2217 = vrot.lane.b32.xlu0 %v2215, 64
    %v2218 = vpop.permute.xlu0 %2217
    %v2220 = vmul.f32 %v2202, %v2218
    %2222 = vrot.lane.b32.xlu0 %v2195, 32
    %v2223 = vpop.permute.xlu0 %2222
    %v2224 = vsel %vm131, %v2223, 0
    %2226 = vmatprep.subr.mxu0 0.0
    %2227 = vmatpush1.msra.mxu0 %v1650
    %2228 = vmatprep.subr.mxu0 0.0
    %2229 = vmatpush1.msra.mxu0 %v1651
    %2230 = vmatprep.subr.mxu0 0.0
    %2231 = vmatpush1.msra.mxu0 %v1652
    %2232 = vmatprep.subr.mxu0 0.0
    %2233 = vmatpush1.msra.mxu0 %v1653
    %2234 = vmatprep.subr.mxu0 0.0
    %2235 = vmatpush1.msra.mxu0 0.0
    %2236 = vmatprep.subr.mxu0 0.0
    %2237 = vmatpush1.msra.mxu0 0.0
    %2238 = vmatprep.subr.mxu0 0.0
    %2239 = vmatpush1.msra.mxu0 0.0
    %2240 = vmatprep.subr.mxu0 0.0
    %2241 = vmatpush1.msra.mxu0 0.0
    %2242 = vmatprep.subr.mxu0 0.0
    %2243 = vmatpush1.msra.mxu0 0.0
    %2244 = vmatprep.subr.mxu0 0.0
    %2245 = vmatpush1.msra.mxu0 0.0
    %2246 = vmatprep.subr.mxu0 0.0
    %2247 = vmatpush1.msra.mxu0 0.0
    %2248 = vmatprep.subr.mxu0 0.0
    %2249 = vmatpush1.msra.mxu0 0.0
    %2250 = vmatprep.subr.mxu0 0.0
    %2251 = vmatpush1.msra.mxu0 0.0
    %2252 = vmatprep.subr.mxu0 0.0
    %2253 = vmatpush1.msra.mxu0 0.0
    %2254 = vmatprep.subr.mxu0 0.0
    %2255 = vmatpush1.msra.mxu0 0.0
    %2256 = vmatprep.subr.mxu0 0.0
    %2257 = vmatpush1.msra.mxu0 0.0
    %2258 = vmatprep.subr.mxu0 0.0
    %2259 = vmatpush1.msra.mxu0 0.0
    %2260 = vmatprep.subr.mxu0 0.0
    %2261 = vmatpush1.msra.mxu0 0.0
    %2262 = vmatprep.subr.mxu0 0.0
    %2263 = vmatpush1.msra.mxu0 0.0
    %2264 = vmatprep.subr.mxu0 0.0
    %2265 = vmatpush1.msra.mxu0 0.0
    %2266 = vmatprep.subr.mxu0 0.0
    %2267 = vmatpush1.msra.mxu0 0.0
    %2268 = vmatprep.subr.mxu0 0.0
    %2269 = vmatpush1.msra.mxu0 0.0
    %2270 = vmatprep.subr.mxu0 0.0
    %2271 = vmatpush1.msra.mxu0 0.0
    %2272 = vmatprep.subr.mxu0 0.0
    %2273 = vmatpush1.msra.mxu0 0.0
    %2274 = vmatprep.subr.mxu0 0.0
    %2275 = vmatpush1.msra.mxu0 0.0
    %2276 = vmatprep.subr.mxu0 0.0
    %2277 = vmatpush1.msra.mxu0 0.0
    %2278 = vmatprep.subr.mxu0 0.0
    %2279 = vmatpush1.msra.mxu0 0.0
    %2280 = vmatprep.subr.mxu0 0.0
    %2281 = vmatpush1.msra.mxu0 0.0
    %2282 = vmatprep.subr.mxu0 0.0
    %2283 = vmatpush1.msra.mxu0 0.0
    %2284 = vmatprep.subr.mxu0 0.0
    %2285 = vmatpush1.msra.mxu0 0.0
    %2286 = vmatprep.subr.mxu0 0.0
    %2287 = vmatpush1.msra.mxu0 0.0
    %2288 = vmatprep.subr.mxu0 0.0
    %2289 = vmatpush1.msra.mxu0 0.0
    %2290 = vmatprep.mubr.f32.mxu0 0.0
    %2291 = vmatmul.mubr.f32.gmra.mrb[0].mxu0 %v2224
    %v2292 = vpop.f32.mrb[0].mxu0
    %v2293 = vadd.f32 %v1641, %v2292
    %v2294 = vpop.f32.mrb[0].mxu0
    %2295 = vdwg.mxu0
    %2297 = vrot.lane.b32.xlu0 %v2220, 32
    %v2298 = vpop.permute.xlu0 %2297
    %v2299 = vsel %vm131, %v2298, 0
    %2301 = vmatprep.subr.mxu0 %v1643
    %2302 = vmatpush1.msra.mxu0 %v1642
    %2303 = vmatprep.subr.mxu0 %v1645
    %2304 = vmatpush1.msra.mxu0 %v1644
    %2305 = vmatprep.subr.mxu0 %v1647
    %2306 = vmatpush1.msra.mxu0 %v1646
    %2307 = vmatprep.subr.mxu0 %v1649
    %2308 = vmatpush1.msra.mxu0 %v1648
    %2309 = vmatprep.subr.mxu0 0.0
    %2310 = vmatpush1.msra.mxu0 0.0
    %2311 = vmatprep.subr.mxu0 0.0
    %2312 = vmatpush1.msra.mxu0 0.0
    %2313 = vmatprep.subr.mxu0 0.0
    %2314 = vmatpush1.msra.mxu0 0.0
    %2315 = vmatprep.subr.mxu0 0.0
    %2316 = vmatpush1.msra.mxu0 0.0
    %2317 = vmatprep.subr.mxu0 0.0
    %2318 = vmatpush1.msra.mxu0 0.0
    %2319 = vmatprep.subr.mxu0 0.0
    %2320 = vmatpush1.msra.mxu0 0.0
    %2321 = vmatprep.subr.mxu0 0.0
    %2322 = vmatpush1.msra.mxu0 0.0
    %2323 = vmatprep.subr.mxu0 0.0
    %2324 = vmatpush1.msra.mxu0 0.0
    %2325 = vmatprep.subr.mxu0 0.0
    %2326 = vmatpush1.msra.mxu0 0.0
    %2327 = vmatprep.subr.mxu0 0.0
    %2328 = vmatpush1.msra.mxu0 0.0
    %2329 = vmatprep.subr.mxu0 0.0
    %2330 = vmatpush1.msra.mxu0 0.0
    %2331 = vmatprep.subr.mxu0 0.0
    %2332 = vmatpush1.msra.mxu0 0.0
    %2333 = vmatprep.subr.mxu0 0.0
    %2334 = vmatpush1.msra.mxu0 0.0
    %2335 = vmatprep.subr.mxu0 0.0
    %2336 = vmatpush1.msra.mxu0 0.0
    %2337 = vmatprep.subr.mxu0 0.0
    %2338 = vmatpush1.msra.mxu0 0.0
    %2339 = vmatprep.subr.mxu0 0.0
    %2340 = vmatpush1.msra.mxu0 0.0
    %2341 = vmatprep.subr.mxu0 0.0
    %2342 = vmatpush1.msra.mxu0 0.0
    %2343 = vmatprep.subr.mxu0 0.0
    %2344 = vmatpush1.msra.mxu0 0.0
    %2345 = vmatprep.subr.mxu0 0.0
    %2346 = vmatpush1.msra.mxu0 0.0
    %2347 = vmatprep.subr.mxu0 0.0
    %2348 = vmatpush1.msra.mxu0 0.0
    %2349 = vmatprep.subr.mxu0 0.0
    %2350 = vmatpush1.msra.mxu0 0.0
    %2351 = vmatprep.subr.mxu0 0.0
    %2352 = vmatpush1.msra.mxu0 0.0
    %2353 = vmatprep.subr.mxu0 0.0
    %2354 = vmatpush1.msra.mxu0 0.0
    %2355 = vmatprep.subr.mxu0 0.0
    %2356 = vmatpush1.msra.mxu0 0.0
    %2357 = vmatprep.subr.mxu0 0.0
    %2358 = vmatpush1.msra.mxu0 0.0
    %2359 = vmatprep.subr.mxu0 0.0
    %2360 = vmatpush1.msra.mxu0 0.0
    %2361 = vmatprep.subr.mxu0 0.0
    %2362 = vmatpush1.msra.mxu0 0.0
    %2363 = vmatprep.subr.mxu0 0.0
    %2364 = vmatpush1.msra.mxu0 0.0
    %2365 = vmatprep.mubr.f32.mxu0 0.0
    %2366 = vmatmul.mubr.f32.gmra.mrb[0].mxu0 %v2299
    %v2367 = vpop.f32.mrb[0].mxu0
    %v2368 = vadd.f32 0.0, %v2367
    %v2369 = vpop.f32.mrb[0].mxu0
    %v2370 = vadd.f32 0.0, %v2369
    %2371 = vdwg.mxu0
    %v2372 = vadd.f32 %v2370, %v2293
    %v2373 = vxor.u32 %v2372, 2147483648
    %v2374 = vmul.f32 %v2373, 1.442695
    %v2375 = vpow.pop %v2374
    %v2376 = vadd.f32 %v2375, 1.0
    %v2377 = vrcp.pop %v2376
    %v2378 = vmul.f32 1.0, %v2377
    %v2379 = vtanh.pop %v2372
    %v2380 = vmul.f32 %v2378, %v2189
    %2382 = vrot.lane.b32.xlu0 %v2379, 64
    %v2383 = vpop.permute.xlu0 %2382
    %v2385 = vmul.f32 %v2378, %v2383
    %2387 = vrot.lane.b32.xlu0 %v2385, 32
    %v2388 = vpop.permute.xlu0 %2387
    %v2390 = vadd.f32 %v2380, %v2388
    %v2391 = vtanh.pop %v2390
    %2393 = vrot.lane.b32.xlu0 %v2391, 64
    %v2394 = vpop.permute.xlu0 %2393
    %v2396 = vmul.f32 %v2378, %v2394
    %v2397 = vadd.f32 %v1726, %v2368
    %v2398 = vxor.u32 %v2397, 2147483648
    %v2399 = vmul.f32 %v2398, 1.442695
    %v2400 = vpow.pop %v2399
    %v2401 = vadd.f32 %v2400, 1.0
    %v2402 = vrcp.pop %v2401
    %v2403 = vmul.f32 1.0, %v2402
    %v2404 = vtanh.pop %v2397
    %v2405 = vmul.f32 %v2403, %v2214
    %2407 = vrot.lane.b32.xlu0 %v2404, 64
    %v2408 = vpop.permute.xlu0 %2407
    %v2410 = vmul.f32 %v2403, %v2408
    %2412 = vrot.lane.b32.xlu0 %v2410, 32
    %v2413 = vpop.permute.xlu0 %2412
    %v2415 = vadd.f32 %v2405, %v2413
    %v2416 = vtanh.pop %v2415
    %2418 = vrot.lane.b32.xlu0 %v2416, 64
    %v2419 = vpop.permute.xlu0 %2418
    %v2421 = vmul.f32 %v2403, %v2419
    %2423 = vrot.lane.b32.xlu0 %v2396, 32
    %v2424 = vpop.permute.xlu0 %2423
    %v2425 = vsel %vm131, %v2424, 0
    %2427 = vmatprep.subr.mxu0 0.0
    %2428 = vmatpush1.msra.mxu0 %v1650
    %2429 = vmatprep.subr.mxu0 0.0
    %2430 = vmatpush1.msra.mxu0 %v1651
    %2431 = vmatprep.subr.mxu0 0.0
    %2432 = vmatpush1.msra.mxu0 %v1652
    %2433 = vmatprep.subr.mxu0 0.0
    %2434 = vmatpush1.msra.mxu0 %v1653
    %2435 = vmatprep.subr.mxu0 0.0
    %2436 = vmatpush1.msra.mxu0 0.0
    %2437 = vmatprep.subr.mxu0 0.0
    %2438 = vmatpush1.msra.mxu0 0.0
    %2439 = vmatprep.subr.mxu0 0.0
    %2440 = vmatpush1.msra.mxu0 0.0
    %2441 = vmatprep.subr.mxu0 0.0
    %2442 = vmatpush1.msra.mxu0 0.0
    %2443 = vmatprep.subr.mxu0 0.0
    %2444 = vmatpush1.msra.mxu0 0.0
    %2445 = vmatprep.subr.mxu0 0.0
    %2446 = vmatpush1.msra.mxu0 0.0
    %2447 = vmatprep.subr.mxu0 0.0
    %2448 = vmatpush1.msra.mxu0 0.0
    %2449 = vmatprep.subr.mxu0 0.0
    %2450 = vmatpush1.msra.mxu0 0.0
    %2451 = vmatprep.subr.mxu0 0.0
    %2452 = vmatpush1.msra.mxu0 0.0
    %2453 = vmatprep.subr.mxu0 0.0
    %2454 = vmatpush1.msra.mxu0 0.0
    %2455 = vmatprep.subr.mxu0 0.0
    %2456 = vmatpush1.msra.mxu0 0.0
    %2457 = vmatprep.subr.mxu0 0.0
    %2458 = vmatpush1.msra.mxu0 0.0
    %2459 = vmatprep.subr.mxu0 0.0
    %2460 = vmatpush1.msra.mxu0 0.0
    %2461 = vmatprep.subr.mxu0 0.0
    %2462 = vmatpush1.msra.mxu0 0.0
    %2463 = vmatprep.subr.mxu0 0.0
    %2464 = vmatpush1.msra.mxu0 0.0
    %2465 = vmatprep.subr.mxu0 0.0
    %2466 = vmatpush1.msra.mxu0 0.0
    %2467 = vmatprep.subr.mxu0 0.0
    %2468 = vmatpush1.msra.mxu0 0.0
    %2469 = vmatprep.subr.mxu0 0.0
    %2470 = vmatpush1.msra.mxu0 0.0
    %2471 = vmatprep.subr.mxu0 0.0
    %2472 = vmatpush1.msra.mxu0 0.0
    %2473 = vmatprep.subr.mxu0 0.0
    %2474 = vmatpush1.msra.mxu0 0.0
    %2475 = vmatprep.subr.mxu0 0.0
    %2476 = vmatpush1.msra.mxu0 0.0
    %2477 = vmatprep.subr.mxu0 0.0
    %2478 = vmatpush1.msra.mxu0 0.0
    %2479 = vmatprep.subr.mxu0 0.0
    %2480 = vmatpush1.msra.mxu0 0.0
    %2481 = vmatprep.subr.mxu0 0.0
    %2482 = vmatpush1.msra.mxu0 0.0
    %2483 = vmatprep.subr.mxu0 0.0
    %2484 = vmatpush1.msra.mxu0 0.0
    %2485 = vmatprep.subr.mxu0 0.0
    %2486 = vmatpush1.msra.mxu0 0.0
    %2487 = vmatprep.subr.mxu0 0.0
    %2488 = vmatpush1.msra.mxu0 0.0
    %2489 = vmatprep.subr.mxu0 0.0
    %2490 = vmatpush1.msra.mxu0 0.0
    %2491 = vmatprep.mubr.f32.mxu0 0.0
    %2492 = vmatmul.mubr.f32.gmra.mrb[0].mxu0 %v2425
    %v2493 = vpop.f32.mrb[0].mxu0
    %v2494 = vadd.f32 %v1641, %v2493
    %v2495 = vpop.f32.mrb[0].mxu0
    %2496 = vdwg.mxu0
    %2498 = vrot.lane.b32.xlu0 %v2421, 32
    %v2499 = vpop.permute.xlu0 %2498
    %v2500 = vsel %vm131, %v2499, 0
    %2502 = vmatprep.subr.mxu0 %v1643
    %2503 = vmatpush1.msra.mxu0 %v1642
    %2504 = vmatprep.subr.mxu0 %v1645
    %2505 = vmatpush1.msra.mxu0 %v1644
    %2506 = vmatprep.subr.mxu0 %v1647
    %2507 = vmatpush1.msra.mxu0 %v1646
    %2508 = vmatprep.subr.mxu0 %v1649
    %2509 = vmatpush1.msra.mxu0 %v1648
    %2510 = vmatprep.subr.mxu0 0.0
    %2511 = vmatpush1.msra.mxu0 0.0
    %2512 = vmatprep.subr.mxu0 0.0
    %2513 = vmatpush1.msra.mxu0 0.0
    %2514 = vmatprep.subr.mxu0 0.0
    %2515 = vmatpush1.msra.mxu0 0.0
    %2516 = vmatprep.subr.mxu0 0.0
    %2517 = vmatpush1.msra.mxu0 0.0
    %2518 = vmatprep.subr.mxu0 0.0
    %2519 = vmatpush1.msra.mxu0 0.0
    %2520 = vmatprep.subr.mxu0 0.0
    %2521 = vmatpush1.msra.mxu0 0.0
    %2522 = vmatprep.subr.mxu0 0.0
    %2523 = vmatpush1.msra.mxu0 0.0
    %2524 = vmatprep.subr.mxu0 0.0
    %2525 = vmatpush1.msra.mxu0 0.0
    %2526 = vmatprep.subr.mxu0 0.0
    %2527 = vmatpush1.msra.mxu0 0.0
    %2528 = vmatprep.subr.mxu0 0.0
    %2529 = vmatpush1.msra.mxu0 0.0
    %2530 = vmatprep.subr.mxu0 0.0
    %2531 = vmatpush1.msra.mxu0 0.0
    %2532 = vmatprep.subr.mxu0 0.0
    %2533 = vmatpush1.msra.mxu0 0.0
    %2534 = vmatprep.subr.mxu0 0.0
    %2535 = vmatpush1.msra.mxu0 0.0
    %2536 = vmatprep.subr.mxu0 0.0
    %2537 = vmatpush1.msra.mxu0 0.0
    %2538 = vmatprep.subr.mxu0 0.0
    %2539 = vmatpush1.msra.mxu0 0.0
    %2540 = vmatprep.subr.mxu0 0.0
    %2541 = vmatpush1.msra.mxu0 0.0
    %2542 = vmatprep.subr.mxu0 0.0
    %2543 = vmatpush1.msra.mxu0 0.0
    %2544 = vmatprep.subr.mxu0 0.0
    %2545 = vmatpush1.msra.mxu0 0.0
    %2546 = vmatprep.subr.mxu0 0.0
    %2547 = vmatpush1.msra.mxu0 0.0
    %2548 = vmatprep.subr.mxu0 0.0
    %2549 = vmatpush1.msra.mxu0 0.0
    %2550 = vmatprep.subr.mxu0 0.0
    %2551 = vmatpush1.msra.mxu0 0.0
    %2552 = vmatprep.subr.mxu0 0.0
    %2553 = vmatpush1.msra.mxu0 0.0
    %2554 = vmatprep.subr.mxu0 0.0
    %2555 = vmatpush1.msra.mxu0 0.0
    %2556 = vmatprep.subr.mxu0 0.0
    %2557 = vmatpush1.msra.mxu0 0.0
    %2558 = vmatprep.subr.mxu0 0.0
    %2559 = vmatpush1.msra.mxu0 0.0
    %2560 = vmatprep.subr.mxu0 0.0
    %2561 = vmatpush1.msra.mxu0 0.0
    %2562 = vmatprep.subr.mxu0 0.0
    %2563 = vmatpush1.msra.mxu0 0.0
    %2564 = vmatprep.subr.mxu0 0.0
    %2565 = vmatpush1.msra.mxu0 0.0
    %2566 = vmatprep.mubr.f32.mxu0 0.0
    %2567 = vmatmul.mubr.f32.gmra.mrb[0].mxu0 %v2500
    %v2568 = vpop.f32.mrb[0].mxu0
    %v2569 = vadd.f32 0.0, %v2568
    %v2570 = vpop.f32.mrb[0].mxu0
    %v2571 = vadd.f32 0.0, %v2570
    %2572 = vdwg.mxu0
    %v2573 = vadd.f32 %v2571, %v2494
    %v2574 = vxor.u32 %v2573, 2147483648
    %v2575 = vmul.f32 %v2574, 1.442695
    %v2576 = vpow.pop %v2575
    %v2577 = vadd.f32 %v2576, 1.0
    %v2578 = vrcp.pop %v2577
    %v2579 = vmul.f32 1.0, %v2578
    %v2580 = vtanh.pop %v2573
    %v2581 = vmul.f32 %v2579, %v2390
    %2583 = vrot.lane.b32.xlu0 %v2580, 64
    %v2584 = vpop.permute.xlu0 %2583
    %v2586 = vmul.f32 %v2579, %v2584
    %2588 = vrot.lane.b32.xlu0 %v2586, 32
    %v2589 = vpop.permute.xlu0 %2588
    %v2591 = vadd.f32 %v2581, %v2589
    %v2592 = vtanh.pop %v2591
    %2594 = vrot.lane.b32.xlu0 %v2592, 64
    %v2595 = vpop.permute.xlu0 %2594
    %v2597 = vmul.f32 %v2579, %v2595
    %v2598 = vadd.f32 %v1726, %v2569
    %v2599 = vxor.u32 %v2598, 2147483648
    %v2600 = vmul.f32 %v2599, 1.442695
    %v2601 = vpow.pop %v2600
    %v2602 = vadd.f32 %v2601, 1.0
    %v2603 = vrcp.pop %v2602
    %v2604 = vmul.f32 1.0, %v2603
    %v2605 = vtanh.pop %v2598
    %v2606 = vmul.f32 %v2604, %v2415
    %2608 = vrot.lane.b32.xlu0 %v2605, 64
    %v2609 = vpop.permute.xlu0 %2608
    %v2611 = vmul.f32 %v2604, %v2609
    %2613 = vrot.lane.b32.xlu0 %v2611, 32
    %v2614 = vpop.permute.xlu0 %2613
    %v2616 = vadd.f32 %v2606, %v2614
    %v2617 = vtanh.pop %v2616
    %2619 = vrot.lane.b32.xlu0 %v2617, 64
    %v2620 = vpop.permute.xlu0 %2619
    %v2622 = vmul.f32 %v2604, %v2620
    %2624 = vrot.lane.b32.xlu0 %v2597, 32
    %v2625 = vpop.permute.xlu0 %2624
    %v2626 = vsel %vm131, %v2625, 0
    %2628 = vmatprep.subr.mxu0 0.0
    %2629 = vmatpush1.msra.mxu0 %v1650
    %2630 = vmatprep.subr.mxu0 0.0
    %2631 = vmatpush1.msra.mxu0 %v1651
    %2632 = vmatprep.subr.mxu0 0.0
    %2633 = vmatpush1.msra.mxu0 %v1652
    %2634 = vmatprep.subr.mxu0 0.0
    %2635 = vmatpush1.msra.mxu0 %v1653
    %2636 = vmatprep.subr.mxu0 0.0
    %2637 = vmatpush1.msra.mxu0 0.0
    %2638 = vmatprep.subr.mxu0 0.0
    %2639 = vmatpush1.msra.mxu0 0.0
    %2640 = vmatprep.subr.mxu0 0.0
    %2641 = vmatpush1.msra.mxu0 0.0
    %2642 = vmatprep.subr.mxu0 0.0
    %2643 = vmatpush1.msra.mxu0 0.0
    %2644 = vmatprep.subr.mxu0 0.0
    %2645 = vmatpush1.msra.mxu0 0.0
    %2646 = vmatprep.subr.mxu0 0.0
    %2647 = vmatpush1.msra.mxu0 0.0
    %2648 = vmatprep.subr.mxu0 0.0
    %2649 = vmatpush1.msra.mxu0 0.0
    %2650 = vmatprep.subr.mxu0 0.0
    %2651 = vmatpush1.msra.mxu0 0.0
    %2652 = vmatprep.subr.mxu0 0.0
    %2653 = vmatpush1.msra.mxu0 0.0
    %2654 = vmatprep.subr.mxu0 0.0
    %2655 = vmatpush1.msra.mxu0 0.0
    %2656 = vmatprep.subr.mxu0 0.0
    %2657 = vmatpush1.msra.mxu0 0.0
    %2658 = vmatprep.subr.mxu0 0.0
    %2659 = vmatpush1.msra.mxu0 0.0
    %2660 = vmatprep.subr.mxu0 0.0
    %2661 = vmatpush1.msra.mxu0 0.0
    %2662 = vmatprep.subr.mxu0 0.0
    %2663 = vmatpush1.msra.mxu0 0.0
    %2664 = vmatprep.subr.mxu0 0.0
    %2665 = vmatpush1.msra.mxu0 0.0
    %2666 = vmatprep.subr.mxu0 0.0
    %2667 = vmatpush1.msra.mxu0 0.0
    %2668 = vmatprep.subr.mxu0 0.0
    %2669 = vmatpush1.msra.mxu0 0.0
    %2670 = vmatprep.subr.mxu0 0.0
    %2671 = vmatpush1.msra.mxu0 0.0
    %2672 = vmatprep.subr.mxu0 0.0
    %2673 = vmatpush1.msra.mxu0 0.0
    %2674 = vmatprep.subr.mxu0 0.0
    %2675 = vmatpush1.msra.mxu0 0.0
    %2676 = vmatprep.subr.mxu0 0.0
    %2677 = vmatpush1.msra.mxu0 0.0
    %2678 = vmatprep.subr.mxu0 0.0
    %2679 = vmatpush1.msra.mxu0 0.0
    %2680 = vmatprep.subr.mxu0 0.0
    %2681 = vmatpush1.msra.mxu0 0.0
    %2682 = vmatprep.subr.mxu0 0.0
    %2683 = vmatpush1.msra.mxu0 0.0
    %2684 = vmatprep.subr.mxu0 0.0
    %2685 = vmatpush1.msra.mxu0 0.0
    %2686 = vmatprep.subr.mxu0 0.0
    %2687 = vmatpush1.msra.mxu0 0.0
    %2688 = vmatprep.subr.mxu0 0.0
    %2689 = vmatpush1.msra.mxu0 0.0
    %2690 = vmatprep.subr.mxu0 0.0
    %2691 = vmatpush1.msra.mxu0 0.0
    %2692 = vmatprep.mubr.f32.mxu0 0.0
    %2693 = vmatmul.mubr.f32.gmra.mrb[0].mxu0 %v2626
    %v2694 = vpop.f32.mrb[0].mxu0
    %v2695 = vadd.f32 %v1641, %v2694
    %v2696 = vpop.f32.mrb[0].mxu0
    %2697 = vdwg.mxu0
    %2699 = vrot.lane.b32.xlu0 %v2622, 32
    %v2700 = vpop.permute.xlu0 %2699
    %v2701 = vsel %vm131, %v2700, 0
    %2703 = vmatprep.subr.mxu0 %v1643
    %2704 = vmatpush1.msra.mxu0 %v1642
    %2705 = vmatprep.subr.mxu0 %v1645
    %2706 = vmatpush1.msra.mxu0 %v1644
    %2707 = vmatprep.subr.mxu0 %v1647
    %2708 = vmatpush1.msra.mxu0 %v1646
    %2709 = vmatprep.subr.mxu0 %v1649
    %2710 = vmatpush1.msra.mxu0 %v1648
    %2711 = vmatprep.subr.mxu0 0.0
    %2712 = vmatpush1.msra.mxu0 0.0
    %2713 = vmatprep.subr.mxu0 0.0
    %2714 = vmatpush1.msra.mxu0 0.0
    %2715 = vmatprep.subr.mxu0 0.0
    %2716 = vmatpush1.msra.mxu0 0.0
    %2717 = vmatprep.subr.mxu0 0.0
    %2718 = vmatpush1.msra.mxu0 0.0
    %2719 = vmatprep.subr.mxu0 0.0
    %2720 = vmatpush1.msra.mxu0 0.0
    %2721 = vmatprep.subr.mxu0 0.0
    %2722 = vmatpush1.msra.mxu0 0.0
    %2723 = vmatprep.subr.mxu0 0.0
    %2724 = vmatpush1.msra.mxu0 0.0
    %2725 = vmatprep.subr.mxu0 0.0
    %2726 = vmatpush1.msra.mxu0 0.0
    %2727 = vmatprep.subr.mxu0 0.0
    %2728 = vmatpush1.msra.mxu0 0.0
    %2729 = vmatprep.subr.mxu0 0.0
    %2730 = vmatpush1.msra.mxu0 0.0
    %2731 = vmatprep.subr.mxu0 0.0
    %2732 = vmatpush1.msra.mxu0 0.0
    %2733 = vmatprep.subr.mxu0 0.0
    %2734 = vmatpush1.msra.mxu0 0.0
    %2735 = vmatprep.subr.mxu0 0.0
    %2736 = vmatpush1.msra.mxu0 0.0
    %2737 = vmatprep.subr.mxu0 0.0
    %2738 = vmatpush1.msra.mxu0 0.0
    %2739 = vmatprep.subr.mxu0 0.0
    %2740 = vmatpush1.msra.mxu0 0.0
    %2741 = vmatprep.subr.mxu0 0.0
    %2742 = vmatpush1.msra.mxu0 0.0
    %2743 = vmatprep.subr.mxu0 0.0
    %2744 = vmatpush1.msra.mxu0 0.0
    %2745 = vmatprep.subr.mxu0 0.0
    %2746 = vmatpush1.msra.mxu0 0.0
    %2747 = vmatprep.subr.mxu0 0.0
    %2748 = vmatpush1.msra.mxu0 0.0
    %2749 = vmatprep.subr.mxu0 0.0
    %2750 = vmatpush1.msra.mxu0 0.0
    %2751 = vmatprep.subr.mxu0 0.0
    %2752 = vmatpush1.msra.mxu0 0.0
    %2753 = vmatprep.subr.mxu0 0.0
    %2754 = vmatpush1.msra.mxu0 0.0
    %2755 = vmatprep.subr.mxu0 0.0
    %2756 = vmatpush1.msra.mxu0 0.0
    %2757 = vmatprep.subr.mxu0 0.0
    %2758 = vmatpush1.msra.mxu0 0.0
    %2759 = vmatprep.subr.mxu0 0.0
    %2760 = vmatpush1.msra.mxu0 0.0
    %2761 = vmatprep.subr.mxu0 0.0
    %2762 = vmatpush1.msra.mxu0 0.0
    %2763 = vmatprep.subr.mxu0 0.0
    %2764 = vmatpush1.msra.mxu0 0.0
    %2765 = vmatprep.subr.mxu0 0.0
    %2766 = vmatpush1.msra.mxu0 0.0
    %2767 = vmatprep.mubr.f32.mxu0 0.0
    %2768 = vmatmul.mubr.f32.gmra.mrb[0].mxu0 %v2701
    %v2769 = vpop.f32.mrb[0].mxu0
    %v2770 = vadd.f32 0.0, %v2769
    %v2771 = vpop.f32.mrb[0].mxu0
    %v2772 = vadd.f32 0.0, %v2771
    %2773 = vdwg.mxu0
    %v2774 = vadd.f32 %v2772, %v2695
    %v2775 = vxor.u32 %v2774, 2147483648
    %v2776 = vmul.f32 %v2775, 1.442695
    %v2777 = vpow.pop %v2776
    %v2778 = vadd.f32 %v2777, 1.0
    %v2779 = vrcp.pop %v2778
    %v2780 = vmul.f32 1.0, %v2779
    %v2781 = vtanh.pop %v2774
    %v2782 = vmul.f32 %v2780, %v2591
    %2784 = vrot.lane.b32.xlu0 %v2781, 64
    %v2785 = vpop.permute.xlu0 %2784
    %v2787 = vmul.f32 %v2780, %v2785
    %2789 = vrot.lane.b32.xlu0 %v2787, 32
    %v2790 = vpop.permute.xlu0 %2789
    %v2792 = vadd.f32 %v2782, %v2790
    %v2793 = vtanh.pop %v2792
    %2795 = vrot.lane.b32.xlu0 %v2793, 64
    %v2796 = vpop.permute.xlu0 %2795
    %v2798 = vmul.f32 %v2780, %v2796
    %v2799 = vadd.f32 %v1726, %v2770
    %v2800 = vxor.u32 %v2799, 2147483648
    %v2801 = vmul.f32 %v2800, 1.442695
    %v2802 = vpow.pop %v2801
    %v2803 = vadd.f32 %v2802, 1.0
    %v2804 = vrcp.pop %v2803
    %v2805 = vmul.f32 1.0, %v2804
    %v2806 = vtanh.pop %v2799
    %v2807 = vmul.f32 %v2805, %v2616
    %2809 = vrot.lane.b32.xlu0 %v2806, 64
    %v2810 = vpop.permute.xlu0 %2809
    %v2812 = vmul.f32 %v2805, %v2810
    %2814 = vrot.lane.b32.xlu0 %v2812, 32
    %v2815 = vpop.permute.xlu0 %2814
    %v2817 = vadd.f32 %v2807, %v2815
    %v2818 = vtanh.pop %v2817
    %2820 = vrot.lane.b32.xlu0 %v2818, 64
    %v2821 = vpop.permute.xlu0 %2820
    %v2823 = vmul.f32 %v2805, %v2821
    %2825 = vrot.lane.b32.xlu0 %v2798, 32
    %v2826 = vpop.permute.xlu0 %2825
    %v2827 = vsel %vm131, %v2826, 0
    %2829 = vmatprep.subr.mxu0 0.0
    %2830 = vmatpush1.msra.mxu0 %v1650
    %2831 = vmatprep.subr.mxu0 0.0
    %2832 = vmatpush1.msra.mxu0 %v1651
    %2833 = vmatprep.subr.mxu0 0.0
    %2834 = vmatpush1.msra.mxu0 %v1652
    %2835 = vmatprep.subr.mxu0 0.0
    %2836 = vmatpush1.msra.mxu0 %v1653
    %2837 = vmatprep.subr.mxu0 0.0
    %2838 = vmatpush1.msra.mxu0 0.0
    %2839 = vmatprep.subr.mxu0 0.0
    %2840 = vmatpush1.msra.mxu0 0.0
    %2841 = vmatprep.subr.mxu0 0.0
    %2842 = vmatpush1.msra.mxu0 0.0
    %2843 = vmatprep.subr.mxu0 0.0
    %2844 = vmatpush1.msra.mxu0 0.0
    %2845 = vmatprep.subr.mxu0 0.0
    %2846 = vmatpush1.msra.mxu0 0.0
    %2847 = vmatprep.subr.mxu0 0.0
    %2848 = vmatpush1.msra.mxu0 0.0
    %2849 = vmatprep.subr.mxu0 0.0
    %2850 = vmatpush1.msra.mxu0 0.0
    %2851 = vmatprep.subr.mxu0 0.0
    %2852 = vmatpush1.msra.mxu0 0.0
    %2853 = vmatprep.subr.mxu0 0.0
    %2854 = vmatpush1.msra.mxu0 0.0
    %2855 = vmatprep.subr.mxu0 0.0
    %2856 = vmatpush1.msra.mxu0 0.0
    %2857 = vmatprep.subr.mxu0 0.0
    %2858 = vmatpush1.msra.mxu0 0.0
    %2859 = vmatprep.subr.mxu0 0.0
    %2860 = vmatpush1.msra.mxu0 0.0
    %2861 = vmatprep.subr.mxu0 0.0
    %2862 = vmatpush1.msra.mxu0 0.0
    %2863 = vmatprep.subr.mxu0 0.0
    %2864 = vmatpush1.msra.mxu0 0.0
    %2865 = vmatprep.subr.mxu0 0.0
    %2866 = vmatpush1.msra.mxu0 0.0
    %2867 = vmatprep.subr.mxu0 0.0
    %2868 = vmatpush1.msra.mxu0 0.0
    %2869 = vmatprep.subr.mxu0 0.0
    %2870 = vmatpush1.msra.mxu0 0.0
    %2871 = vmatprep.subr.mxu0 0.0
    %2872 = vmatpush1.msra.mxu0 0.0
    %2873 = vmatprep.subr.mxu0 0.0
    %2874 = vmatpush1.msra.mxu0 0.0
    %2875 = vmatprep.subr.mxu0 0.0
    %2876 = vmatpush1.msra.mxu0 0.0
    %2877 = vmatprep.subr.mxu0 0.0
    %2878 = vmatpush1.msra.mxu0 0.0
    %2879 = vmatprep.subr.mxu0 0.0
    %2880 = vmatpush1.msra.mxu0 0.0
    %2881 = vmatprep.subr.mxu0 0.0
    %2882 = vmatpush1.msra.mxu0 0.0
    %2883 = vmatprep.subr.mxu0 0.0
    %2884 = vmatpush1.msra.mxu0 0.0
    %2885 = vmatprep.subr.mxu0 0.0
    %2886 = vmatpush1.msra.mxu0 0.0
    %2887 = vmatprep.subr.mxu0 0.0
    %2888 = vmatpush1.msra.mxu0 0.0
    %2889 = vmatprep.subr.mxu0 0.0
    %2890 = vmatpush1.msra.mxu0 0.0
    %2891 = vmatprep.subr.mxu0 0.0
    %2892 = vmatpush1.msra.mxu0 0.0
    %2893 = vmatprep.mubr.f32.mxu0 0.0
    %2894 = vmatmul.mubr.f32.gmra.mrb[0].mxu0 %v2827
    %v2895 = vpop.f32.mrb[0].mxu0
    %v2896 = vadd.f32 %v1641, %v2895
    %v2897 = vpop.f32.mrb[0].mxu0
    %2898 = vdwg.mxu0
    %2900 = vrot.lane.b32.xlu0 %v2823, 32
    %v2901 = vpop.permute.xlu0 %2900
    %v2902 = vsel %vm131, %v2901, 0
    %2904 = vmatprep.subr.mxu0 %v1643
    %2905 = vmatpush1.msra.mxu0 %v1642
    %2906 = vmatprep.subr.mxu0 %v1645
    %2907 = vmatpush1.msra.mxu0 %v1644
    %2908 = vmatprep.subr.mxu0 %v1647
    %2909 = vmatpush1.msra.mxu0 %v1646
    %2910 = vmatprep.subr.mxu0 %v1649
    %2911 = vmatpush1.msra.mxu0 %v1648
    %2912 = vmatprep.subr.mxu0 0.0
    %2913 = vmatpush1.msra.mxu0 0.0
    %2914 = vmatprep.subr.mxu0 0.0
    %2915 = vmatpush1.msra.mxu0 0.0
    %2916 = vmatprep.subr.mxu0 0.0
    %2917 = vmatpush1.msra.mxu0 0.0
    %2918 = vmatprep.subr.mxu0 0.0
    %2919 = vmatpush1.msra.mxu0 0.0
    %2920 = vmatprep.subr.mxu0 0.0
    %2921 = vmatpush1.msra.mxu0 0.0
    %2922 = vmatprep.subr.mxu0 0.0
    %2923 = vmatpush1.msra.mxu0 0.0
    %2924 = vmatprep.subr.mxu0 0.0
    %2925 = vmatpush1.msra.mxu0 0.0
    %2926 = vmatprep.subr.mxu0 0.0
    %2927 = vmatpush1.msra.mxu0 0.0
    %2928 = vmatprep.subr.mxu0 0.0
    %2929 = vmatpush1.msra.mxu0 0.0
    %2930 = vmatprep.subr.mxu0 0.0
    %2931 = vmatpush1.msra.mxu0 0.0
    %2932 = vmatprep.subr.mxu0 0.0
    %2933 = vmatpush1.msra.mxu0 0.0
    %2934 = vmatprep.subr.mxu0 0.0
    %2935 = vmatpush1.msra.mxu0 0.0
    %2936 = vmatprep.subr.mxu0 0.0
    %2937 = vmatpush1.msra.mxu0 0.0
    %2938 = vmatprep.subr.mxu0 0.0
    %2939 = vmatpush1.msra.mxu0 0.0
    %2940 = vmatprep.subr.mxu0 0.0
    %2941 = vmatpush1.msra.mxu0 0.0
    %2942 = vmatprep.subr.mxu0 0.0
    %2943 = vmatpush1.msra.mxu0 0.0
    %2944 = vmatprep.subr.mxu0 0.0
    %2945 = vmatpush1.msra.mxu0 0.0
    %2946 = vmatprep.subr.mxu0 0.0
    %2947 = vmatpush1.msra.mxu0 0.0
    %2948 = vmatprep.subr.mxu0 0.0
    %2949 = vmatpush1.msra.mxu0 0.0
    %2950 = vmatprep.subr.mxu0 0.0
    %2951 = vmatpush1.msra.mxu0 0.0
    %2952 = vmatprep.subr.mxu0 0.0
    %2953 = vmatpush1.msra.mxu0 0.0
    %2954 = vmatprep.subr.mxu0 0.0
    %2955 = vmatpush1.msra.mxu0 0.0
    %2956 = vmatprep.subr.mxu0 0.0
    %2957 = vmatpush1.msra.mxu0 0.0
    %2958 = vmatprep.subr.mxu0 0.0
    %2959 = vmatpush1.msra.mxu0 0.0
    %2960 = vmatprep.subr.mxu0 0.0
    %2961 = vmatpush1.msra.mxu0 0.0
    %2962 = vmatprep.subr.mxu0 0.0
    %2963 = vmatpush1.msra.mxu0 0.0
    %2964 = vmatprep.subr.mxu0 0.0
    %2965 = vmatpush1.msra.mxu0 0.0
    %2966 = vmatprep.subr.mxu0 0.0
    %2967 = vmatpush1.msra.mxu0 0.0
    %2968 = vmatprep.mubr.f32.mxu0 0.0
    %2969 = vmatmul.mubr.f32.gmra.mrb[0].mxu0 %v2902
    %v2970 = vpop.f32.mrb[0].mxu0
    %v2971 = vadd.f32 0.0, %v2970
    %v2972 = vpop.f32.mrb[0].mxu0
    %v2973 = vadd.f32 0.0, %v2972
    %2974 = vdwg.mxu0
    %v2975 = vadd.f32 %v2973, %v2896
    %v2976 = vxor.u32 %v2975, 2147483648
    %v2977 = vmul.f32 %v2976, 1.442695
    %v2978 = vpow.pop %v2977
    %v2979 = vadd.f32 %v2978, 1.0
    %v2980 = vrcp.pop %v2979
    %v2981 = vmul.f32 1.0, %v2980
    %v2982 = vtanh.pop %v2975
    %v2983 = vmul.f32 %v2981, %v2792
    %2985 = vrot.lane.b32.xlu0 %v2982, 64
    %v2986 = vpop.permute.xlu0 %2985
    %v2988 = vmul.f32 %v2981, %v2986
    %2990 = vrot.lane.b32.xlu0 %v2988, 32
    %v2991 = vpop.permute.xlu0 %2990
    %v2993 = vadd.f32 %v2983, %v2991
    %v2994 = vtanh.pop %v2993
    %2996 = vrot.lane.b32.xlu0 %v2994, 64
    %v2997 = vpop.permute.xlu0 %2996
    %v2999 = vmul.f32 %v2981, %v2997
    %v3000 = vadd.f32 %v1726, %v2971
    %v3001 = vxor.u32 %v3000, 2147483648
    %v3002 = vmul.f32 %v3001, 1.442695
    %v3003 = vpow.pop %v3002
    %v3004 = vadd.f32 %v3003, 1.0
    %v3005 = vrcp.pop %v3004
    %v3006 = vmul.f32 1.0, %v3005
    %v3007 = vtanh.pop %v3000
    %v3008 = vmul.f32 %v3006, %v2817
    %3010 = vrot.lane.b32.xlu0 %v3007, 64
    %v3011 = vpop.permute.xlu0 %3010
    %v3013 = vmul.f32 %v3006, %v3011
    %3015 = vrot.lane.b32.xlu0 %v3013, 32
    %v3016 = vpop.permute.xlu0 %3015
    %v3018 = vadd.f32 %v3008, %v3016
    %v3019 = vtanh.pop %v3018
    %3021 = vrot.lane.b32.xlu0 %v3019, 64
    %v3022 = vpop.permute.xlu0 %3021
    %v3024 = vmul.f32 %v3006, %v3022
    %3026 = vrot.lane.b32.xlu0 %v2999, 32
    %v3027 = vpop.permute.xlu0 %3026
    %v3028 = vsel %vm131, %v3027, 0
    %3030 = vmatprep.subr.mxu0 0.0
    %3031 = vmatpush1.msra.mxu0 %v1650
    %3032 = vmatprep.subr.mxu0 0.0
    %3033 = vmatpush1.msra.mxu0 %v1651
    %3034 = vmatprep.subr.mxu0 0.0
    %3035 = vmatpush1.msra.mxu0 %v1652
    %3036 = vmatprep.subr.mxu0 0.0
    %3037 = vmatpush1.msra.mxu0 %v1653
    %3038 = vmatprep.subr.mxu0 0.0
    %3039 = vmatpush1.msra.mxu0 0.0
    %3040 = vmatprep.subr.mxu0 0.0
    %3041 = vmatpush1.msra.mxu0 0.0
    %3042 = vmatprep.subr.mxu0 0.0
    %3043 = vmatpush1.msra.mxu0 0.0
    %3044 = vmatprep.subr.mxu0 0.0
    %3045 = vmatpush1.msra.mxu0 0.0
    %3046 = vmatprep.subr.mxu0 0.0
    %3047 = vmatpush1.msra.mxu0 0.0
    %3048 = vmatprep.subr.mxu0 0.0
    %3049 = vmatpush1.msra.mxu0 0.0
    %3050 = vmatprep.subr.mxu0 0.0
    %3051 = vmatpush1.msra.mxu0 0.0
    %3052 = vmatprep.subr.mxu0 0.0
    %3053 = vmatpush1.msra.mxu0 0.0
    %3054 = vmatprep.subr.mxu0 0.0
    %3055 = vmatpush1.msra.mxu0 0.0
    %3056 = vmatprep.subr.mxu0 0.0
    %3057 = vmatpush1.msra.mxu0 0.0
    %3058 = vmatprep.subr.mxu0 0.0
    %3059 = vmatpush1.msra.mxu0 0.0
    %3060 = vmatprep.subr.mxu0 0.0
    %3061 = vmatpush1.msra.mxu0 0.0
    %3062 = vmatprep.subr.mxu0 0.0
    %3063 = vmatpush1.msra.mxu0 0.0
    %3064 = vmatprep.subr.mxu0 0.0
    %3065 = vmatpush1.msra.mxu0 0.0
    %3066 = vmatprep.subr.mxu0 0.0
    %3067 = vmatpush1.msra.mxu0 0.0
    %3068 = vmatprep.subr.mxu0 0.0
    %3069 = vmatpush1.msra.mxu0 0.0
    %3070 = vmatprep.subr.mxu0 0.0
    %3071 = vmatpush1.msra.mxu0 0.0
    %3072 = vmatprep.subr.mxu0 0.0
    %3073 = vmatpush1.msra.mxu0 0.0
    %3074 = vmatprep.subr.mxu0 0.0
    %3075 = vmatpush1.msra.mxu0 0.0
    %3076 = vmatprep.subr.mxu0 0.0
    %3077 = vmatpush1.msra.mxu0 0.0
    %3078 = vmatprep.subr.mxu0 0.0
    %3079 = vmatpush1.msra.mxu0 0.0
    %3080 = vmatprep.subr.mxu0 0.0
    %3081 = vmatpush1.msra.mxu0 0.0
    %3082 = vmatprep.subr.mxu0 0.0
    %3083 = vmatpush1.msra.mxu0 0.0
    %3084 = vmatprep.subr.mxu0 0.0
    %3085 = vmatpush1.msra.mxu0 0.0
    %3086 = vmatprep.subr.mxu0 0.0
    %3087 = vmatpush1.msra.mxu0 0.0
    %3088 = vmatprep.subr.mxu0 0.0
    %3089 = vmatpush1.msra.mxu0 0.0
    %3090 = vmatprep.subr.mxu0 0.0
    %3091 = vmatpush1.msra.mxu0 0.0
    %3092 = vmatprep.subr.mxu0 0.0
    %3093 = vmatpush1.msra.mxu0 0.0
    %3094 = vmatprep.mubr.f32.mxu0 0.0
    %3095 = vmatmul.mubr.f32.gmra.mrb[0].mxu0 %v3028
    %v3096 = vpop.f32.mrb[0].mxu0
    %v3097 = vadd.f32 %v1641, %v3096
    %v3098 = vpop.f32.mrb[0].mxu0
    %3099 = vdwg.mxu0
    %3101 = vrot.lane.b32.xlu0 %v3024, 32
    %v3102 = vpop.permute.xlu0 %3101
    %v3103 = vsel %vm131, %v3102, 0
    %3105 = vmatprep.subr.mxu0 %v1643
    %3106 = vmatpush1.msra.mxu0 %v1642
    %3107 = vmatprep.subr.mxu0 %v1645
    %3108 = vmatpush1.msra.mxu0 %v1644
    %3109 = vmatprep.subr.mxu0 %v1647
    %3110 = vmatpush1.msra.mxu0 %v1646
    %3111 = vmatprep.subr.mxu0 %v1649
    %3112 = vmatpush1.msra.mxu0 %v1648
    %3113 = vmatprep.subr.mxu0 0.0
    %3114 = vmatpush1.msra.mxu0 0.0
    %3115 = vmatprep.subr.mxu0 0.0
    %3116 = vmatpush1.msra.mxu0 0.0
    %3117 = vmatprep.subr.mxu0 0.0
    %3118 = vmatpush1.msra.mxu0 0.0
    %3119 = vmatprep.subr.mxu0 0.0
    %3120 = vmatpush1.msra.mxu0 0.0
    %3121 = vmatprep.subr.mxu0 0.0
    %3122 = vmatpush1.msra.mxu0 0.0
    %3123 = vmatprep.subr.mxu0 0.0
    %3124 = vmatpush1.msra.mxu0 0.0
    %3125 = vmatprep.subr.mxu0 0.0
    %3126 = vmatpush1.msra.mxu0 0.0
    %3127 = vmatprep.subr.mxu0 0.0
    %3128 = vmatpush1.msra.mxu0 0.0
    %3129 = vmatprep.subr.mxu0 0.0
    %3130 = vmatpush1.msra.mxu0 0.0
    %3131 = vmatprep.subr.mxu0 0.0
    %3132 = vmatpush1.msra.mxu0 0.0
    %3133 = vmatprep.subr.mxu0 0.0
    %3134 = vmatpush1.msra.mxu0 0.0
    %3135 = vmatprep.subr.mxu0 0.0
    %3136 = vmatpush1.msra.mxu0 0.0
    %3137 = vmatprep.subr.mxu0 0.0
    %3138 = vmatpush1.msra.mxu0 0.0
    %3139 = vmatprep.subr.mxu0 0.0
    %3140 = vmatpush1.msra.mxu0 0.0
    %3141 = vmatprep.subr.mxu0 0.0
    %3142 = vmatpush1.msra.mxu0 0.0
    %3143 = vmatprep.subr.mxu0 0.0
    %3144 = vmatpush1.msra.mxu0 0.0
    %3145 = vmatprep.subr.mxu0 0.0
    %3146 = vmatpush1.msra.mxu0 0.0
    %3147 = vmatprep.subr.mxu0 0.0
    %3148 = vmatpush1.msra.mxu0 0.0
    %3149 = vmatprep.subr.mxu0 0.0
    %3150 = vmatpush1.msra.mxu0 0.0
    %3151 = vmatprep.subr.mxu0 0.0
    %3152 = vmatpush1.msra.mxu0 0.0
    %3153 = vmatprep.subr.mxu0 0.0
    %3154 = vmatpush1.msra.mxu0 0.0
    %3155 = vmatprep.subr.mxu0 0.0
    %3156 = vmatpush1.msra.mxu0 0.0
    %3157 = vmatprep.subr.mxu0 0.0
    %3158 = vmatpush1.msra.mxu0 0.0
    %3159 = vmatprep.subr.mxu0 0.0
    %3160 = vmatpush1.msra.mxu0 0.0
    %3161 = vmatprep.subr.mxu0 0.0
    %3162 = vmatpush1.msra.mxu0 0.0
    %3163 = vmatprep.subr.mxu0 0.0
    %3164 = vmatpush1.msra.mxu0 0.0
    %3165 = vmatprep.subr.mxu0 0.0
    %3166 = vmatpush1.msra.mxu0 0.0
    %3167 = vmatprep.subr.mxu0 0.0
    %3168 = vmatpush1.msra.mxu0 0.0
    %3169 = vmatprep.mubr.f32.mxu0 0.0
    %3170 = vmatmul.mubr.f32.gmra.mrb[0].mxu0 %v3103
    %v3171 = vpop.f32.mrb[0].mxu0
    %v3172 = vadd.f32 0.0, %v3171
    %v3173 = vpop.f32.mrb[0].mxu0
    %v3174 = vadd.f32 0.0, %v3173
    %3175 = vdwg.mxu0
    %v3176 = vadd.f32 %v3174, %v3097
    %v3177 = vxor.u32 %v3176, 2147483648
    %v3178 = vmul.f32 %v3177, 1.442695
    %v3179 = vpow.pop %v3178
    %v3180 = vadd.f32 %v3179, 1.0
    %v3181 = vrcp.pop %v3180
    %v3182 = vmul.f32 1.0, %v3181
    %v3183 = vtanh.pop %v3176
    %v3184 = vmul.f32 %v3182, %v2993
    %3186 = vrot.lane.b32.xlu0 %v3183, 64
    %v3187 = vpop.permute.xlu0 %3186
    %v3189 = vmul.f32 %v3182, %v3187
    %3191 = vrot.lane.b32.xlu0 %v3189, 32
    %v3192 = vpop.permute.xlu0 %3191
    %v3194 = vadd.f32 %v3184, %v3192
    %v3195 = vtanh.pop %v3194
    %3197 = vrot.lane.b32.xlu0 %v3195, 64
    %v3198 = vpop.permute.xlu0 %3197
    %v3200 = vmul.f32 %v3182, %v3198
    %v3201 = vadd.f32 %v1726, %v3172
    %v3202 = vxor.u32 %v3201, 2147483648
    %v3203 = vmul.f32 %v3202, 1.442695
    %v3204 = vpow.pop %v3203
    %v3205 = vadd.f32 %v3204, 1.0
    %v3206 = vrcp.pop %v3205
    %v3207 = vmul.f32 1.0, %v3206
    %v3208 = vtanh.pop %v3201
    %v3209 = vmul.f32 %v3207, %v3018
    %3211 = vrot.lane.b32.xlu0 %v3208, 64
    %v3212 = vpop.permute.xlu0 %3211
    %v3214 = vmul.f32 %v3207, %v3212
    %3216 = vrot.lane.b32.xlu0 %v3214, 32
    %v3217 = vpop.permute.xlu0 %3216
    %v3219 = vadd.f32 %v3209, %v3217
    %v3220 = vtanh.pop %v3219
    %3222 = vrot.lane.b32.xlu0 %v3220, 64
    %v3223 = vpop.permute.xlu0 %3222
    %v3225 = vmul.f32 %v3207, %v3223
    %3227 = vrot.lane.b32.xlu0 %v3200, 32
    %v3228 = vpop.permute.xlu0 %3227
    %v3229 = vsel %vm131, %v3228, 0
    %3231 = vmatprep.subr.mxu0 0.0
    %3232 = vmatpush1.msra.mxu0 %v1650
    %3233 = vmatprep.subr.mxu0 0.0
    %3234 = vmatpush1.msra.mxu0 %v1651
    %3235 = vmatprep.subr.mxu0 0.0
    %3236 = vmatpush1.msra.mxu0 %v1652
    %3237 = vmatprep.subr.mxu0 0.0
    %3238 = vmatpush1.msra.mxu0 %v1653
    %3239 = vmatprep.subr.mxu0 0.0
    %3240 = vmatpush1.msra.mxu0 0.0
    %3241 = vmatprep.subr.mxu0 0.0
    %3242 = vmatpush1.msra.mxu0 0.0
    %3243 = vmatprep.subr.mxu0 0.0
    %3244 = vmatpush1.msra.mxu0 0.0
    %3245 = vmatprep.subr.mxu0 0.0
    %3246 = vmatpush1.msra.mxu0 0.0
    %3247 = vmatprep.subr.mxu0 0.0
    %3248 = vmatpush1.msra.mxu0 0.0
    %3249 = vmatprep.subr.mxu0 0.0
    %3250 = vmatpush1.msra.mxu0 0.0
    %3251 = vmatprep.subr.mxu0 0.0
    %3252 = vmatpush1.msra.mxu0 0.0
    %3253 = vmatprep.subr.mxu0 0.0
    %3254 = vmatpush1.msra.mxu0 0.0
    %3255 = vmatprep.subr.mxu0 0.0
    %3256 = vmatpush1.msra.mxu0 0.0
    %3257 = vmatprep.subr.mxu0 0.0
    %3258 = vmatpush1.msra.mxu0 0.0
    %3259 = vmatprep.subr.mxu0 0.0
    %3260 = vmatpush1.msra.mxu0 0.0
    %3261 = vmatprep.subr.mxu0 0.0
    %3262 = vmatpush1.msra.mxu0 0.0
    %3263 = vmatprep.subr.mxu0 0.0
    %3264 = vmatpush1.msra.mxu0 0.0
    %3265 = vmatprep.subr.mxu0 0.0
    %3266 = vmatpush1.msra.mxu0 0.0
    %3267 = vmatprep.subr.mxu0 0.0
    %3268 = vmatpush1.msra.mxu0 0.0
    %3269 = vmatprep.subr.mxu0 0.0
    %3270 = vmatpush1.msra.mxu0 0.0
    %3271 = vmatprep.subr.mxu0 0.0
    %3272 = vmatpush1.msra.mxu0 0.0
    %3273 = vmatprep.subr.mxu0 0.0
    %3274 = vmatpush1.msra.mxu0 0.0
    %3275 = vmatprep.subr.mxu0 0.0
    %3276 = vmatpush1.msra.mxu0 0.0
    %3277 = vmatprep.subr.mxu0 0.0
    %3278 = vmatpush1.msra.mxu0 0.0
    %3279 = vmatprep.subr.mxu0 0.0
    %3280 = vmatpush1.msra.mxu0 0.0
    %3281 = vmatprep.subr.mxu0 0.0
    %3282 = vmatpush1.msra.mxu0 0.0
    %3283 = vmatprep.subr.mxu0 0.0
    %3284 = vmatpush1.msra.mxu0 0.0
    %3285 = vmatprep.subr.mxu0 0.0
    %3286 = vmatpush1.msra.mxu0 0.0
    %3287 = vmatprep.subr.mxu0 0.0
    %3288 = vmatpush1.msra.mxu0 0.0
    %3289 = vmatprep.subr.mxu0 0.0
    %3290 = vmatpush1.msra.mxu0 0.0
    %3291 = vmatprep.subr.mxu0 0.0
    %3292 = vmatpush1.msra.mxu0 0.0
    %3293 = vmatprep.subr.mxu0 0.0
    %3294 = vmatpush1.msra.mxu0 0.0
    %3295 = vmatprep.mubr.f32.mxu0 0.0
    %3296 = vmatmul.mubr.f32.gmra.mrb[0].mxu0 %v3229
    %v3297 = vpop.f32.mrb[0].mxu0
    %v3298 = vadd.f32 %v1641, %v3297
    %v3299 = vpop.f32.mrb[0].mxu0
    %3300 = vdwg.mxu0
    %3302 = vrot.lane.b32.xlu0 %v3225, 32
    %v3303 = vpop.permute.xlu0 %3302
    %v3304 = vsel %vm131, %v3303, 0
    %3306 = vmatprep.subr.mxu0 %v1643
    %3307 = vmatpush1.msra.mxu0 %v1642
    %3308 = vmatprep.subr.mxu0 %v1645
    %3309 = vmatpush1.msra.mxu0 %v1644
    %3310 = vmatprep.subr.mxu0 %v1647
    %3311 = vmatpush1.msra.mxu0 %v1646
    %3312 = vmatprep.subr.mxu0 %v1649
    %3313 = vmatpush1.msra.mxu0 %v1648
    %3314 = vmatprep.subr.mxu0 0.0
    %3315 = vmatpush1.msra.mxu0 0.0
    %3316 = vmatprep.subr.mxu0 0.0
    %3317 = vmatpush1.msra.mxu0 0.0
    %3318 = vmatprep.subr.mxu0 0.0
    %3319 = vmatpush1.msra.mxu0 0.0
    %3320 = vmatprep.subr.mxu0 0.0
    %3321 = vmatpush1.msra.mxu0 0.0
    %3322 = vmatprep.subr.mxu0 0.0
    %3323 = vmatpush1.msra.mxu0 0.0
    %3324 = vmatprep.subr.mxu0 0.0
    %3325 = vmatpush1.msra.mxu0 0.0
    %3326 = vmatprep.subr.mxu0 0.0
    %3327 = vmatpush1.msra.mxu0 0.0
    %3328 = vmatprep.subr.mxu0 0.0
    %3329 = vmatpush1.msra.mxu0 0.0
    %3330 = vmatprep.subr.mxu0 0.0
    %3331 = vmatpush1.msra.mxu0 0.0
    %3332 = vmatprep.subr.mxu0 0.0
    %3333 = vmatpush1.msra.mxu0 0.0
    %3334 = vmatprep.subr.mxu0 0.0
    %3335 = vmatpush1.msra.mxu0 0.0
    %3336 = vmatprep.subr.mxu0 0.0
    %3337 = vmatpush1.msra.mxu0 0.0
    %3338 = vmatprep.subr.mxu0 0.0
    %3339 = vmatpush1.msra.mxu0 0.0
    %3340 = vmatprep.subr.mxu0 0.0
    %3341 = vmatpush1.msra.mxu0 0.0
    %3342 = vmatprep.subr.mxu0 0.0
    %3343 = vmatpush1.msra.mxu0 0.0
    %3344 = vmatprep.subr.mxu0 0.0
    %3345 = vmatpush1.msra.mxu0 0.0
    %3346 = vmatprep.subr.mxu0 0.0
    %3347 = vmatpush1.msra.mxu0 0.0
    %3348 = vmatprep.subr.mxu0 0.0
    %3349 = vmatpush1.msra.mxu0 0.0
    %3350 = vmatprep.subr.mxu0 0.0
    %3351 = vmatpush1.msra.mxu0 0.0
    %3352 = vmatprep.subr.mxu0 0.0
    %3353 = vmatpush1.msra.mxu0 0.0
    %3354 = vmatprep.subr.mxu0 0.0
    %3355 = vmatpush1.msra.mxu0 0.0
    %3356 = vmatprep.subr.mxu0 0.0
    %3357 = vmatpush1.msra.mxu0 0.0
    %3358 = vmatprep.subr.mxu0 0.0
    %3359 = vmatpush1.msra.mxu0 0.0
    %3360 = vmatprep.subr.mxu0 0.0
    %3361 = vmatpush1.msra.mxu0 0.0
    %3362 = vmatprep.subr.mxu0 0.0
    %3363 = vmatpush1.msra.mxu0 0.0
    %3364 = vmatprep.subr.mxu0 0.0
    %3365 = vmatpush1.msra.mxu0 0.0
    %3366 = vmatprep.subr.mxu0 0.0
    %3367 = vmatpush1.msra.mxu0 0.0
    %3368 = vmatprep.subr.mxu0 0.0
    %3369 = vmatpush1.msra.mxu0 0.0
    %3370 = vmatprep.mubr.f32.mxu0 0.0
    %3371 = vmatmul.mubr.f32.gmra.mrb[0].mxu0 %v3304
    %v3372 = vpop.f32.mrb[0].mxu0
    %v3373 = vpop.f32.mrb[0].mxu0
    %v3374 = vadd.f32 0.0, %v3373
    %3375 = vdwg.mxu0
    %v3376 = vadd.f32 %v3374, %v3298
    %v3377 = vxor.u32 %v3376, 2147483648
    %v3378 = vmul.f32 %v3377, 1.442695
    %v3379 = vpow.pop %v3378
    %v3380 = vadd.f32 %v3379, 1.0
    %v3381 = vrcp.pop %v3380
    %v3382 = vmul.f32 1.0, %v3381
    %v3383 = vtanh.pop %v3376
    %v3384 = vmul.f32 %v3382, %v3194
    %3386 = vrot.lane.b32.xlu0 %v3383, 64
    %v3387 = vpop.permute.xlu0 %3386
    %v3389 = vmul.f32 %v3382, %v3387
    %3391 = vrot.lane.b32.xlu0 %v3389, 32
    %v3392 = vpop.permute.xlu0 %3391
    %v3394 = vadd.f32 %v3384, %v3392
    %v3395 = vtanh.pop %v3394
    %3397 = vrot.lane.b32.xlu0 %v3395, 64
    %v3398 = vpop.permute.xlu0 %3397
    %v3400 = vmul.f32 %v3382, %v3398
    %v3401 = vld [vmem:[#allocation2 + $0x130] ss:$0 sm:$0xff]
    %v3402 = vld [vmem:[#allocation2 + $0x140] ss:$0 sm:$0xff]
    %3404 = vrot.lane.b32.xlu0 %v3401, 96
    %v3405 = vpop.permute.xlu0 %3404
    %v3407 = vmul.f32 %v1994, %v3405
    %v3408 = vmul.f32 %v2195, %v3405
    %v3409 = vmul.f32 %v2396, %v3405
    %v3410 = vmul.f32 %v2597, %v3405
    %v3411 = vmul.f32 %v2798, %v3405
    %v3412 = vmul.f32 %v2999, %v3405
    %v3413 = vmul.f32 %v3200, %v3405
    %v3414 = vmul.f32 %v3400, %v3405
    %3423 = vrot.lane.b32.xlu0 %v3407, 32
    %v3424 = vpop.permute.xlu0 %3423
    %3425 = vrot.lane.b32.xlu0 %v3408, 32
    %v3426 = vpop.permute.xlu0 %3425
    %3427 = vrot.lane.b32.xlu0 %v3409, 32
    %v3428 = vpop.permute.xlu0 %3427
    %3429 = vrot.lane.b32.xlu0 %v3410, 32
    %v3430 = vpop.permute.xlu0 %3429
    %3431 = vrot.lane.b32.xlu0 %v3411, 32
    %v3432 = vpop.permute.xlu0 %3431
    %3433 = vrot.lane.b32.xlu0 %v3412, 32
    %v3434 = vpop.permute.xlu0 %3433
    %3435 = vrot.lane.b32.xlu0 %v3413, 32
    %v3436 = vpop.permute.xlu0 %3435
    %3437 = vrot.lane.b32.xlu0 %v3414, 32
    %v3438 = vpop.permute.xlu0 %3437
    %v3447 = vsel %vm131, %v3424, 0.0
    %3448 = vadd.xlane.f32.xlu0 %v3447
    %v3449 = vpop.xlane.xlu0 %3448
    %v3450 = vsel %vm131, %v3426, 0.0
    %3451 = vadd.xlane.f32.xlu0 %v3450
    %v3452 = vpop.xlane.xlu0 %3451
    %v3453 = vsel %vm131, %v3428, 0.0
    %3454 = vadd.xlane.f32.xlu0 %v3453
    %v3455 = vpop.xlane.xlu0 %3454
    %v3456 = vsel %vm131, %v3430, 0.0
    %3457 = vadd.xlane.f32.xlu0 %v3456
    %v3458 = vpop.xlane.xlu0 %3457
    %v3459 = vsel %vm131, %v3432, 0.0
    %3460 = vadd.xlane.f32.xlu0 %v3459
    %v3461 = vpop.xlane.xlu0 %3460
    %v3462 = vsel %vm131, %v3434, 0.0
    %3463 = vadd.xlane.f32.xlu0 %v3462
    %v3464 = vpop.xlane.xlu0 %3463
    %v3465 = vsel %vm131, %v3436, 0.0
    %3466 = vadd.xlane.f32.xlu0 %v3465
    %v3467 = vpop.xlane.xlu0 %3466
    %v3468 = vsel %vm131, %v3438, 0.0
    %3469 = vadd.xlane.f32.xlu0 %v3468
    %v3470 = vpop.xlane.xlu0 %3469
    %v3471 = vadd.f32 %v3449, %v3402
    %v3472 = vadd.f32 %v3452, %v3402
    %v3473 = vadd.f32 %v3455, %v3402
    %v3474 = vadd.f32 %v3458, %v3402
    %v3475 = vadd.f32 %v3461, %v3402
    %v3476 = vadd.f32 %v3464, %v3402
    %v3477 = vadd.f32 %v3467, %v3402
    %v3478 = vadd.f32 %v3470, %v3402
    %vm3479 = vcmask 7168
    %3480 = vst.msk [vmem:[%s2] sm:$0xff] %vm3479, %v3471
    %3481 = vst.msk [vmem:[%s2 + $0x8] sm:$0xff] %vm3479, %v3472
    %3482 = vst.msk [vmem:[%s2 + $0x10] sm:$0xff] %vm3479, %v3473
    %3483 = vst.msk [vmem:[%s2 + $0x18] sm:$0xff] %vm3479, %v3474
    %3484 = vst.msk [vmem:[%s2 + $0x20] sm:$0xff] %vm3479, %v3475
    %3485 = vst.msk [vmem:[%s2 + $0x28] sm:$0xff] %vm3479, %v3476
    %3486 = vst.msk [vmem:[%s2 + $0x30] sm:$0xff] %vm3479, %v3477
    %3487 = vst.msk [vmem:[%s2 + $0x38] sm:$0xff] %vm3479, %v3478
    // Predicated region
    $region14: #{tpu_custom_call.1} parent=1 // pred_check
      _
    $region15: #{tpu_custom_call.1} parent=1 // pred_check_branch
      %3489 = sbr.rel (0) target = $region17
    $region16: #{tpu_custom_call.1} parent=1 // pred_region
      _
    $region17: #{tpu_custom_call.1} parent=1 // pred_fallthru
      _
    // Predicated region
    $region18: #{tpu_custom_call.1} parent=1 // pred_check
      _
    $region19: #{tpu_custom_call.1} parent=1 // pred_check_branch
      %3491 = sbr.rel (0) target = $region21
    $region20: #{tpu_custom_call.1} parent=1 // pred_region
      _
    $region21: #{tpu_custom_call.1} parent=1 // pred_fallthru
      _
    %3492 = vsyncpa [#allocation3], 1

</llo_original>
